<compile_context>
chip_gen: v5e
topology: v5e:2x2
jax: 0.10.0
libtpu: 0.0.40
codegen_flags: <defaults>
</compile_context>

<pallas_src>
import jax
import jax.numpy as jnp
import numpy as np
from jax import lax
from jax.experimental import pallas as pl
from jax.experimental.pallas import tpu as pltpu


def round_up(n, m):
    return ((n + m - 1) // m) * m


def attention_gru_kernel(x_ref,       # (Bp, Tc, I)    batch-major input chunk (f32)
                         w_icat_ref,  # (I, 3*Hp)      [W_ir|W_iz|W_in]^T padded, bf16
                         b_icat_ref,  # (1, 3*Hp)      f32
                         w_hcat_ref,  # (Hp, 3*Hp)     [W_hr|W_hz|W_hn]^T padded, bf16
                         b_hcat_ref,  # (1, 3*Hp)      f32
                         w_attn_ref,  # (1, Hp)        f32
                         b_attn_ref,  # (1, 1)         f32
                         w_out_ref,   # (Hp, OUTP)     bf16, first 3 cols real
                         b_out_ref,   # (1, OUTP)      f32
                         y_ref,       # (Bp, OUTP)     f32 output (lane-dense store)
                         gx_ref,      # (Tc, Bp, 3*Hp) VMEM scratch: chunk input gates
                         h_ref,       # (Bp, Hp)       hidden-state carry
                         m_ref,       # (Bp, 1)        online-softmax running max
                         l_ref,       # (Bp, 1)        online-softmax running denom
                         acc_ref):    # (Bp, Hp)       online-softmax weighted context
    c = pl.program_id(0)
    num_chunks = pl.num_programs(0)
    Tc, Bp, _ = gx_ref.shape
    Hp = w_hcat_ref.shape[0]

    # ---- chunk 0: initialize recurrence + online-softmax carries ----
    @pl.when(c == 0)
    def _():
        h_ref[...] = jnp.zeros((Bp, Hp), jnp.float32)
        m_ref[...] = jnp.full((Bp, 1), -jnp.inf, jnp.float32)
        l_ref[...] = jnp.zeros((Bp, 1), jnp.float32)
        acc_ref[...] = jnp.zeros((Bp, Hp), jnp.float32)

    # ---- chunk prologue: input-gate projection for every timestep of the chunk,
    #      written straight into the time-major (Tc, Bp, 3*Hp) scratch so the
    #      recurrence below only does aligned whole-tile gx_ref[t] reads. ----
    b_i = b_icat_ref[...]                       # hoisted constants (no re-vld per step)
    w_i = w_icat_ref[...]                       # (I, 3*Hp) bf16
    xc = x_ref[...].astype(jnp.bfloat16)        # (Bp, Tc, I)
    for tt in range(Tc):                        # static indices; off the serial path
        gx_ref[tt] = (
            jnp.dot(xc[:, tt, :], w_i, preferred_element_type=jnp.float32) + b_i)
    # (At production Tc this becomes one (Tc*Bp, I) matmul per chunk with a single
    #  off-critical-path relayout; at demo Tc the per-tt matmuls are negligible.)

    b_h = b_hcat_ref[...]                       # (1, 3*Hp)
    w_a = w_attn_ref[...]                       # (1, Hp)
    b_a = b_attn_ref[...]                       # (1, 1)
    # NOTE: w_hcat (bf16, Hp x 3*Hp ~ 96 KiB) is intentionally re-read each step: it
    # must be streamed into the MXU every step anyway, and keeping it live across the
    # unrolled loop would only force spills.
    # TODO(synk): hold it resident in the MXU (matmul_push_rhs) on v7x/v6e.

    def step(tt, carry):
        h, m, l, acc = carry                    # (Bp,Hp) (Bp,1) (Bp,1) (Bp,Hp), all f32
        gi = gx_ref[tt]                         # (Bp, 3*Hp): aligned whole-tile read
        gh = jnp.dot(h.astype(jnp.bfloat16), w_hcat_ref[...],
                     preferred_element_type=jnp.float32) + b_h
        r = jax.nn.sigmoid(gi[:, :Hp] + gh[:, :Hp])
        z = jax.nn.sigmoid(gi[:, Hp:2 * Hp] + gh[:, Hp:2 * Hp])
        n = jnp.tanh(gi[:, 2 * Hp:] + r * gh[:, 2 * Hp:])
        h_new = (1.0 - z) * n + z * h
        # online-softmax attention pooling over the time axis
        s = jnp.sum(h_new * w_a, axis=-1, keepdims=True) + b_a   # (Bp, 1) score
        m_new = jnp.maximum(m, s)
        alpha = jnp.exp(m - m_new)
        p = jnp.exp(s - m_new)
        l_new = alpha * l + p
        acc_new = alpha * acc + p * h_new
        return h_new, m_new, l_new, acc_new

    carry0 = (h_ref[...], m_ref[...], l_ref[...], acc_ref[...])
    h_f, m_f, l_f, acc_f = lax.fori_loop(0, Tc, step, carry0, unroll=min(Tc, 8))
    h_ref[...] = h_f
    m_ref[...] = m_f
    l_ref[...] = l_f
    acc_ref[...] = acc_f

    # ---- last chunk: normalize context (exact divide, runs once) + output head ----
    @pl.when(c == num_chunks - 1)
    def _():
        context = acc_f / l_f                                    # (Bp, Hp)
        y_ref[...] = (jnp.dot(context.astype(jnp.bfloat16), w_out_ref[...],
                              preferred_element_type=jnp.float32)
                      + b_out_ref[...])


def attention_model_forward(x, kparams):
    """x: (B, T, I) batch-first float32. Returns (B, 3)."""
    B, T, I = x.shape
    Hp = kparams["w_hcat"].shape[0]
    OUTP = kparams["w_out"].shape[1]

    # Sublane-pad the batch to Bp = 8 so every carry / slice / store is full-sublane.
    Bp = max(round_up(B, 8), 8)
    x = x.astype(jnp.float32)
    if Bp != B:
        x = jnp.pad(x, ((0, Bp - B), (0, 0), (0, 0)))

    # T-chunk size: a multiple of 8 sublanes (BlockSpec constraint) that divides T.
    # Size so 2 * Tc * Bp * 3 * Hp * 4B (double-buffered x + gx scratch) stays small
    # relative to VMEM; raise Tc at production T (v5e/v6e can take 2-4x v7x's Tc).
    Tc = 8 if (T % 8 == 0) else T
    num_chunks = T // Tc

    grid_spec = pltpu.PrefetchScalarGridSpec(
        num_scalar_prefetch=0,
        grid=(num_chunks,),
        in_specs=[
            # x streamed chunk-by-chunk, batch-major (no wrapper-side transpose);
            # the pipeline prefetches chunk c+1 behind chunk c's recurrence.
            pl.BlockSpec((Bp, Tc, I), lambda c: (0, c, 0)),
            # weights / biases: constant index_map -> fetched once, stay VMEM-resident
            pl.BlockSpec((I, 3 * Hp), lambda c: (0, 0)),
            pl.BlockSpec((1, 3 * Hp), lambda c: (0, 0)),
            pl.BlockSpec((Hp, 3 * Hp), lambda c: (0, 0)),
            pl.BlockSpec((1, 3 * Hp), lambda c: (0, 0)),
            pl.BlockSpec((1, Hp), lambda c: (0, 0)),
            pl.BlockSpec((1, 1), lambda c: (0, 0)),
            pl.BlockSpec((Hp, OUTP), lambda c: (0, 0)),
            pl.BlockSpec((1, OUTP), lambda c: (0, 0)),
        ],
        out_specs=pl.BlockSpec((Bp, OUTP), lambda c: (0, 0)),
        scratch_shapes=[
            pltpu.VMEM((Tc, Bp, 3 * Hp), jnp.float32),   # per-chunk input gates
            pltpu.VMEM((Bp, Hp), jnp.float32),           # h
            pltpu.VMEM((Bp, 1), jnp.float32),            # m (running max)
            pltpu.VMEM((Bp, 1), jnp.float32),            # l (running denom)
            pltpu.VMEM((Bp, Hp), jnp.float32),           # acc (weighted context)
        ],
    )

    y_pad = pl.pallas_call(
        attention_gru_kernel,
        out_shape=jax.ShapeDtypeStruct((Bp, OUTP), jnp.float32),
        grid_spec=grid_spec,
        compiler_params=pltpu.CompilerParams(
            dimension_semantics=("arbitrary",),          # sequential recurrence axis
            vmem_limit_bytes=32 * 1024 * 1024,           # explicit budget (all gens)
        ),
    )(x,
      kparams["w_icat"], kparams["b_icat"],
      kparams["w_hcat"], kparams["b_hcat"],
      kparams["w_attn"], kparams["b_attn"],
      kparams["w_out"], kparams["b_out"])
    return y_pad[:B, :3]


def reference_forward(x, w_ih, w_hh, b_ih, b_hh, attn_w, attn_b, out_w, out_b):
    """Pure-JAX f32 replica of the PyTorch forward (for verification)."""
    B, T, _ = x.shape
    H = w_hh.shape[1]
    h = jnp.zeros((B, H), jnp.float32)
    outs = []
    for t in range(T):
        x_t = x[:, t, :]
        gi = x_t @ w_ih.T + b_ih
        gh = h @ w_hh.T + b_hh
        r = jax.nn.sigmoid(gi[:, :H] + gh[:, :H])
        z = jax.nn.sigmoid(gi[:, H:2 * H] + gh[:, H:2 * H])
        n = jnp.tanh(gi[:, 2 * H:] + r * gh[:, 2 * H:])
        h = (1.0 - z) * n + z * h
        outs.append(h)
    out = jnp.stack(outs, axis=1)                      # (B, T, H)
    scores = out @ attn_w.T + attn_b                   # (B, T, 1)
    weights = jax.nn.softmax(scores, axis=1)
    context = jnp.sum(weights * out, axis=1)           # (B, H)
    return context @ out_w.T + out_b                   # (B, 3)


def make_params(key, input_size, hidden_size):
    """Deterministic synthetic params in PyTorch layout + fused/padded kernel layout."""
    H, I = hidden_size, input_size
    ks = jax.random.split(key, 8)
    k = 1.0 / np.sqrt(H)
    w_ih = jax.random.uniform(ks[0], (3 * H, I), jnp.float32, -k, k)
    w_hh = jax.random.uniform(ks[1], (3 * H, H), jnp.float32, -k, k)
    b_ih = jax.random.uniform(ks[2], (3 * H,), jnp.float32, -k, k)
    b_hh = jax.random.uniform(ks[3], (3 * H,), jnp.float32, -k, k)
    attn_w = jax.random.uniform(ks[4], (1, H), jnp.float32, -k, k)
    attn_b = jax.random.uniform(ks[5], (1,), jnp.float32, -k, k)
    out_w = jax.random.uniform(ks[6], (3, H), jnp.float32, -k, k)
    out_b = jax.random.uniform(ks[7], (3,), jnp.float32, -k, k)
    torch_params = (w_ih, w_hh, b_ih, b_hh, attn_w, attn_b, out_w, out_b)

    # Kernel layout: pre-transposed, gate-fused (r|z|n), hidden dim zero-padded to Hp
    # lanes, output head zero-padded to OUTP lanes. Matmul weights pre-cast to bf16
    # (MXU operands); biases / attention vector stay f32. Padded lanes stay exactly
    # zero through the recurrence (0 is exact in bf16), so real lanes are unaffected.
    Hp = round_up(H, 128)
    OUTP = 128

    def pad2(a, rows, cols):
        return jnp.pad(a, ((0, rows - a.shape[0]), (0, cols - a.shape[1])))

    def pad1(v):
        return jnp.pad(v, (0, Hp - v.shape[0]))

    w_icat = jnp.concatenate(
        [pad2(w_ih[g * H:(g + 1) * H].T, I, Hp) for g in range(3)], axis=1)   # (I, 3*Hp)
    w_hcat = jnp.concatenate(
        [pad2(w_hh[g * H:(g + 1) * H].T, Hp, Hp) for g in range(3)], axis=1)  # (Hp, 3*Hp)
    b_icat = jnp.concatenate(
        [pad1(b_ih[g * H:(g + 1) * H]) for g in range(3)]).reshape(1, 3 * Hp)
    b_hcat = jnp.concatenate(
        [pad1(b_hh[g * H:(g + 1) * H]) for g in range(3)]).reshape(1, 3 * Hp)

    kparams = {
        "w_icat": w_icat.astype(jnp.bfloat16),
        "b_icat": b_icat,
        "w_hcat": w_hcat.astype(jnp.bfloat16),
        "b_hcat": b_hcat,
        "w_attn": pad2(attn_w, 1, Hp),                               # (1, Hp)  f32
        "b_attn": attn_b.reshape(1, 1),                              # (1, 1)   f32
        "w_out": pad2(out_w.T, Hp, OUTP).astype(jnp.bfloat16),       # (Hp, OUTP)
        "b_out": jnp.pad(out_b, (0, OUTP - 3)).reshape(1, OUTP),     # (1, OUTP) f32
    }
    return kparams, torch_params


if __name__ == "__main__":
    B, T, I, H = 4, 16, 8, 64       # hidden_size=64 matches the module default
    root = jax.random.PRNGKey(0)
    kx, kp = jax.random.split(root)
    x = jax.random.normal(kx, (B, T, I), jnp.float32)
    kparams, torch_params = make_params(kp, I, H)

    y = jax.jit(attention_model_forward)(x, kparams)
    y = jax.block_until_ready(y)

    y_ref = reference_forward(x, *torch_params)
    # Tolerance is set by the bf16 MXU operands (requested by the perf review, f32
    # accumulation kept); the softmax normalization itself is exact f32 division.
    np.testing.assert_allclose(np.asarray(y), np.asarray(y_ref), rtol=2e-2, atol=2e-2)

    print("KERNEL_OK")
</pallas_src>

<mosaic_0001>
module attributes {stable_mosaic.version = 11 : i64} {
  func.func @attention_gru_kernel(%arg0: i32, %arg1: memref<8x8x8xf32, #tpu.memory_space<vmem>>, %arg2: memref<8x384xbf16, #tpu.memory_space<vmem>>, %arg3: memref<1x384xf32, #tpu.memory_space<vmem>>, %arg4: memref<128x384xbf16, #tpu.memory_space<vmem>>, %arg5: memref<1x384xf32, #tpu.memory_space<vmem>>, %arg6: memref<1x128xf32, #tpu.memory_space<vmem>>, %arg7: memref<1x1xf32, #tpu.memory_space<vmem>>, %arg8: memref<128x128xbf16, #tpu.memory_space<vmem>>, %arg9: memref<1x128xf32, #tpu.memory_space<vmem>>, %arg10: memref<8x128xf32, #tpu.memory_space<vmem>>, %arg11: memref<8x8x384xf32, #tpu.memory_space<vmem>>, %arg12: memref<8x128xf32, #tpu.memory_space<vmem>>, %arg13: memref<8x1xf32, #tpu.memory_space<vmem>>, %arg14: memref<8x1xf32, #tpu.memory_space<vmem>>, %arg15: memref<8x128xf32, #tpu.memory_space<vmem>>) attributes {dimension_semantics = [#tpu.dimension_semantics<arbitrary>], iteration_bounds = array<i64: 2>, scalar_prefetch = 0 : i64, scratch_operands = 5 : i64, tpu.core_type = #tpu.core_type<tc>, window_params = [{transform_indices = @transform_0, window_bounds = array<i64: 8, 8, 8>}, {pipeline_mode = #tpu.pipeline_mode<synchronous>, transform_indices = @transform_1, window_bounds = array<i64: 8, 384>}, {pipeline_mode = #tpu.pipeline_mode<synchronous>, transform_indices = @transform_2, window_bounds = array<i64: 1, 384>}, {pipeline_mode = #tpu.pipeline_mode<synchronous>, transform_indices = @transform_3, window_bounds = array<i64: 128, 384>}, {pipeline_mode = #tpu.pipeline_mode<synchronous>, transform_indices = @transform_4, window_bounds = array<i64: 1, 384>}, {pipeline_mode = #tpu.pipeline_mode<synchronous>, transform_indices = @transform_5, window_bounds = array<i64: 1, 128>}, {pipeline_mode = #tpu.pipeline_mode<synchronous>, transform_indices = @transform_6, window_bounds = array<i64: 1, 1>}, {pipeline_mode = #tpu.pipeline_mode<synchronous>, transform_indices = @transform_7, window_bounds = array<i64: 128, 128>}, {pipeline_mode = #tpu.pipeline_mode<synchronous>, transform_indices = @transform_8, window_bounds = array<i64: 1, 128>}, {pipeline_mode = #tpu.pipeline_mode<synchronous>, transform_indices = @transform_9, window_bounds = array<i64: 8, 128>}]} {
    %c0_i32 = arith.constant 0 : i32
    %0 = arith.cmpi eq, %arg0, %c0_i32 : i32
    %1 = arith.extui %0 : i1 to i32
    %c0_i32_0 = arith.constant 0 : i32
    %2 = arith.cmpi ne, %1, %c0_i32_0 : i32
    scf.if %2 {
      %cst_128 = arith.constant 0.000000e+00 : f32
      %501 = vector.broadcast %cst_128 : f32 to vector<8x128xf32>
      %c0_129 = arith.constant 0 : index
      %c0_130 = arith.constant 0 : index
      %502 = vector.load %arg12[%c0_129, %c0_130] : memref<8x128xf32, #tpu.memory_space<vmem>>, vector<8x128xf32>
      tpu.vector_store %arg12[%c0_129, %c0_130], %501 {strides = array<i32>} : memref<8x128xf32, #tpu.memory_space<vmem>>, vector<8x128xf32>,
      %cst_131 = arith.constant 0xFF800000 : f32
      %503 = vector.broadcast %cst_131 : f32 to vector<8x1xf32>
      %c0_132 = arith.constant 0 : index
      %c0_133 = arith.constant 0 : index
      %504 = vector.load %arg13[%c0_132, %c0_133] : memref<8x1xf32, #tpu.memory_space<vmem>>, vector<8x1xf32>
      tpu.vector_store %arg13[%c0_132, %c0_133], %503 {strides = array<i32>} : memref<8x1xf32, #tpu.memory_space<vmem>>, vector<8x1xf32>,
      %cst_134 = arith.constant 0.000000e+00 : f32
      %505 = vector.broadcast %cst_134 : f32 to vector<8x1xf32>
      %c0_135 = arith.constant 0 : index
      %c0_136 = arith.constant 0 : index
      %506 = vector.load %arg14[%c0_135, %c0_136] : memref<8x1xf32, #tpu.memory_space<vmem>>, vector<8x1xf32>
      tpu.vector_store %arg14[%c0_135, %c0_136], %505 {strides = array<i32>} : memref<8x1xf32, #tpu.memory_space<vmem>>, vector<8x1xf32>,
      %cst_137 = arith.constant 0.000000e+00 : f32
      %507 = vector.broadcast %cst_137 : f32 to vector<8x128xf32>
      %c0_138 = arith.constant 0 : index
      %c0_139 = arith.constant 0 : index
      %508 = vector.load %arg15[%c0_138, %c0_139] : memref<8x128xf32, #tpu.memory_space<vmem>>, vector<8x128xf32>
      tpu.vector_store %arg15[%c0_138, %c0_139], %507 {strides = array<i32>} : memref<8x128xf32, #tpu.memory_space<vmem>>, vector<8x128xf32>,
    } else {
    }
    %c0 = arith.constant 0 : index
    %c0_1 = arith.constant 0 : index
    %3 = vector.load %arg3[%c0, %c0_1] : memref<1x384xf32, #tpu.memory_space<vmem>>, vector<1x384xf32>
    %c0_2 = arith.constant 0 : index
    %c0_3 = arith.constant 0 : index
    %4 = vector.load %arg2[%c0_2, %c0_3] : memref<8x384xbf16, #tpu.memory_space<vmem>>, vector<8x384xbf16>
    %c0_4 = arith.constant 0 : index
    %c0_5 = arith.constant 0 : index
    %c0_6 = arith.constant 0 : index
    %5 = vector.load %arg1[%c0_4, %c0_5, %c0_6] : memref<8x8x8xf32, #tpu.memory_space<vmem>>, vector<8x8x8xf32>
    %6 = arith.truncf %5 : vector<8x8x8xf32> to vector<8x8x8xbf16>
    %7 = vector.extract_strided_slice %6 {offsets = [0, 0, 0], sizes = [8, 1, 8], strides = [1, 1, 1]} : vector<8x8x8xbf16> to vector<8x1x8xbf16>
    %8 = vector.shape_cast %7 : vector<8x1x8xbf16> to vector<8x8xbf16>
    %cst = arith.constant dense<0.000000e+00> : vector<8x384xf32>
    %9 = tpu.matmul %8, %4, %cst {dimension_numbers = #tpu.dot_dimension_numbers<[1], [0], [0], [1], [0, 0, 1, 1], [], []>} : vector<8x8xbf16>, vector<8x384xbf16>, vector<8x384xf32> -> vector<8x384xf32>
    %10 = vector.broadcast %3 : vector<1x384xf32> to vector<8x384xf32>
    %11 = arith.addf %9, %10 : vector<8x384xf32>
    %c0_7 = arith.constant 0 : index
    %c0_8 = arith.constant 0 : index
    %c0_9 = arith.constant 0 : index
    %12 = vector.load %arg11[%c0_7, %c0_8, %c0_9] : memref<8x8x384xf32, #tpu.memory_space<vmem>>, vector<1x8x384xf32>
    %13 = vector.shape_cast %12 : vector<1x8x384xf32> to vector<8x384xf32>
    %14 = vector.shape_cast %11 : vector<8x384xf32> to vector<1x8x384xf32>
    tpu.vector_store %arg11[%c0_7, %c0_8, %c0_9], %14 {strides = array<i32>} : memref<8x8x384xf32, #tpu.memory_space<vmem>>, vector<1x8x384xf32>,
    %15 = vector.extract_strided_slice %6 {offsets = [0, 1, 0], sizes = [8, 1, 8], strides = [1, 1, 1]} : vector<8x8x8xbf16> to vector<8x1x8xbf16>
    %16 = vector.shape_cast %15 : vector<8x1x8xbf16> to vector<8x8xbf16>
    %cst_10 = arith.constant dense<0.000000e+00> : vector<8x384xf32>
    %17 = tpu.matmul %16, %4, %cst_10 {dimension_numbers = #tpu.dot_dimension_numbers<[1], [0], [0], [1], [0, 0, 1, 1], [], []>} : vector<8x8xbf16>, vector<8x384xbf16>, vector<8x384xf32> -> vector<8x384xf32>
    %18 = vector.broadcast %3 : vector<1x384xf32> to vector<8x384xf32>
    %19 = arith.addf %17, %18 : vector<8x384xf32>
    %c1 = arith.constant 1 : index
    %c0_11 = arith.constant 0 : index
    %c0_12 = arith.constant 0 : index
    %20 = vector.load %arg11[%c1, %c0_11, %c0_12] : memref<8x8x384xf32, #tpu.memory_space<vmem>>, vector<1x8x384xf32>
    %21 = vector.shape_cast %20 : vector<1x8x384xf32> to vector<8x384xf32>
    %22 = vector.shape_cast %19 : vector<8x384xf32> to vector<1x8x384xf32>
    tpu.vector_store %arg11[%c1, %c0_11, %c0_12], %22 {strides = array<i32>} : memref<8x8x384xf32, #tpu.memory_space<vmem>>, vector<1x8x384xf32>,
    %23 = vector.extract_strided_slice %6 {offsets = [0, 2, 0], sizes = [8, 1, 8], strides = [1, 1, 1]} : vector<8x8x8xbf16> to vector<8x1x8xbf16>
    %24 = vector.shape_cast %23 : vector<8x1x8xbf16> to vector<8x8xbf16>
    %cst_13 = arith.constant dense<0.000000e+00> : vector<8x384xf32>
    %25 = tpu.matmul %24, %4, %cst_13 {dimension_numbers = #tpu.dot_dimension_numbers<[1], [0], [0], [1], [0, 0, 1, 1], [], []>} : vector<8x8xbf16>, vector<8x384xbf16>, vector<8x384xf32> -> vector<8x384xf32>
    %26 = vector.broadcast %3 : vector<1x384xf32> to vector<8x384xf32>
    %27 = arith.addf %25, %26 : vector<8x384xf32>
    %c2 = arith.constant 2 : index
    %c0_14 = arith.constant 0 : index
    %c0_15 = arith.constant 0 : index
    %28 = vector.load %arg11[%c2, %c0_14, %c0_15] : memref<8x8x384xf32, #tpu.memory_space<vmem>>, vector<1x8x384xf32>
    %29 = vector.shape_cast %28 : vector<1x8x384xf32> to vector<8x384xf32>
    %30 = vector.shape_cast %27 : vector<8x384xf32> to vector<1x8x384xf32>
    tpu.vector_store %arg11[%c2, %c0_14, %c0_15], %30 {strides = array<i32>} : memref<8x8x384xf32, #tpu.memory_space<vmem>>, vector<1x8x384xf32>,
    %31 = vector.extract_strided_slice %6 {offsets = [0, 3, 0], sizes = [8, 1, 8], strides = [1, 1, 1]} : vector<8x8x8xbf16> to vector<8x1x8xbf16>
    %32 = vector.shape_cast %31 : vector<8x1x8xbf16> to vector<8x8xbf16>
    %cst_16 = arith.constant dense<0.000000e+00> : vector<8x384xf32>
    %33 = tpu.matmul %32, %4, %cst_16 {dimension_numbers = #tpu.dot_dimension_numbers<[1], [0], [0], [1], [0, 0, 1, 1], [], []>} : vector<8x8xbf16>, vector<8x384xbf16>, vector<8x384xf32> -> vector<8x384xf32>
    %34 = vector.broadcast %3 : vector<1x384xf32> to vector<8x384xf32>
    %35 = arith.addf %33, %34 : vector<8x384xf32>
    %c3 = arith.constant 3 : index
    %c0_17 = arith.constant 0 : index
    %c0_18 = arith.constant 0 : index
    %36 = vector.load %arg11[%c3, %c0_17, %c0_18] : memref<8x8x384xf32, #tpu.memory_space<vmem>>, vector<1x8x384xf32>
    %37 = vector.shape_cast %36 : vector<1x8x384xf32> to vector<8x384xf32>
    %38 = vector.shape_cast %35 : vector<8x384xf32> to vector<1x8x384xf32>
    tpu.vector_store %arg11[%c3, %c0_17, %c0_18], %38 {strides = array<i32>} : memref<8x8x384xf32, #tpu.memory_space<vmem>>, vector<1x8x384xf32>,
    %39 = vector.extract_strided_slice %6 {offsets = [0, 4, 0], sizes = [8, 1, 8], strides = [1, 1, 1]} : vector<8x8x8xbf16> to vector<8x1x8xbf16>
    %40 = vector.shape_cast %39 : vector<8x1x8xbf16> to vector<8x8xbf16>
    %cst_19 = arith.constant dense<0.000000e+00> : vector<8x384xf32>
    %41 = tpu.matmul %40, %4, %cst_19 {dimension_numbers = #tpu.dot_dimension_numbers<[1], [0], [0], [1], [0, 0, 1, 1], [], []>} : vector<8x8xbf16>, vector<8x384xbf16>, vector<8x384xf32> -> vector<8x384xf32>
    %42 = vector.broadcast %3 : vector<1x384xf32> to vector<8x384xf32>
    %43 = arith.addf %41, %42 : vector<8x384xf32>
    %c4 = arith.constant 4 : index
    %c0_20 = arith.constant 0 : index
    %c0_21 = arith.constant 0 : index
    %44 = vector.load %arg11[%c4, %c0_20, %c0_21] : memref<8x8x384xf32, #tpu.memory_space<vmem>>, vector<1x8x384xf32>
    %45 = vector.shape_cast %44 : vector<1x8x384xf32> to vector<8x384xf32>
    %46 = vector.shape_cast %43 : vector<8x384xf32> to vector<1x8x384xf32>
    tpu.vector_store %arg11[%c4, %c0_20, %c0_21], %46 {strides = array<i32>} : memref<8x8x384xf32, #tpu.memory_space<vmem>>, vector<1x8x384xf32>,
    %47 = vector.extract_strided_slice %6 {offsets = [0, 5, 0], sizes = [8, 1, 8], strides = [1, 1, 1]} : vector<8x8x8xbf16> to vector<8x1x8xbf16>
    %48 = vector.shape_cast %47 : vector<8x1x8xbf16> to vector<8x8xbf16>
    %cst_22 = arith.constant dense<0.000000e+00> : vector<8x384xf32>
    %49 = tpu.matmul %48, %4, %cst_22 {dimension_numbers = #tpu.dot_dimension_numbers<[1], [0], [0], [1], [0, 0, 1, 1], [], []>} : vector<8x8xbf16>, vector<8x384xbf16>, vector<8x384xf32> -> vector<8x384xf32>
    %50 = vector.broadcast %3 : vector<1x384xf32> to vector<8x384xf32>
    %51 = arith.addf %49, %50 : vector<8x384xf32>
    %c5 = arith.constant 5 : index
    %c0_23 = arith.constant 0 : index
    %c0_24 = arith.constant 0 : index
    %52 = vector.load %arg11[%c5, %c0_23, %c0_24] : memref<8x8x384xf32, #tpu.memory_space<vmem>>, vector<1x8x384xf32>
    %53 = vector.shape_cast %52 : vector<1x8x384xf32> to vector<8x384xf32>
    %54 = vector.shape_cast %51 : vector<8x384xf32> to vector<1x8x384xf32>
    tpu.vector_store %arg11[%c5, %c0_23, %c0_24], %54 {strides = array<i32>} : memref<8x8x384xf32, #tpu.memory_space<vmem>>, vector<1x8x384xf32>,
    %55 = vector.extract_strided_slice %6 {offsets = [0, 6, 0], sizes = [8, 1, 8], strides = [1, 1, 1]} : vector<8x8x8xbf16> to vector<8x1x8xbf16>
    %56 = vector.shape_cast %55 : vector<8x1x8xbf16> to vector<8x8xbf16>
    %cst_25 = arith.constant dense<0.000000e+00> : vector<8x384xf32>
    %57 = tpu.matmul %56, %4, %cst_25 {dimension_numbers = #tpu.dot_dimension_numbers<[1], [0], [0], [1], [0, 0, 1, 1], [], []>} : vector<8x8xbf16>, vector<8x384xbf16>, vector<8x384xf32> -> vector<8x384xf32>
    %58 = vector.broadcast %3 : vector<1x384xf32> to vector<8x384xf32>
    %59 = arith.addf %57, %58 : vector<8x384xf32>
    %c6 = arith.constant 6 : index
    %c0_26 = arith.constant 0 : index
    %c0_27 = arith.constant 0 : index
    %60 = vector.load %arg11[%c6, %c0_26, %c0_27] : memref<8x8x384xf32, #tpu.memory_space<vmem>>, vector<1x8x384xf32>
    %61 = vector.shape_cast %60 : vector<1x8x384xf32> to vector<8x384xf32>
    %62 = vector.shape_cast %59 : vector<8x384xf32> to vector<1x8x384xf32>
    tpu.vector_store %arg11[%c6, %c0_26, %c0_27], %62 {strides = array<i32>} : memref<8x8x384xf32, #tpu.memory_space<vmem>>, vector<1x8x384xf32>,
    %63 = vector.extract_strided_slice %6 {offsets = [0, 7, 0], sizes = [8, 1, 8], strides = [1, 1, 1]} : vector<8x8x8xbf16> to vector<8x1x8xbf16>
    %64 = vector.shape_cast %63 : vector<8x1x8xbf16> to vector<8x8xbf16>
    %cst_28 = arith.constant dense<0.000000e+00> : vector<8x384xf32>
    %65 = tpu.matmul %64, %4, %cst_28 {dimension_numbers = #tpu.dot_dimension_numbers<[1], [0], [0], [1], [0, 0, 1, 1], [], []>} : vector<8x8xbf16>, vector<8x384xbf16>, vector<8x384xf32> -> vector<8x384xf32>
    %66 = vector.broadcast %3 : vector<1x384xf32> to vector<8x384xf32>
    %67 = arith.addf %65, %66 : vector<8x384xf32>
    %c7 = arith.constant 7 : index
    %c0_29 = arith.constant 0 : index
    %c0_30 = arith.constant 0 : index
    %68 = vector.load %arg11[%c7, %c0_29, %c0_30] : memref<8x8x384xf32, #tpu.memory_space<vmem>>, vector<1x8x384xf32>
    %69 = vector.shape_cast %68 : vector<1x8x384xf32> to vector<8x384xf32>
    %70 = vector.shape_cast %67 : vector<8x384xf32> to vector<1x8x384xf32>
    tpu.vector_store %arg11[%c7, %c0_29, %c0_30], %70 {strides = array<i32>} : memref<8x8x384xf32, #tpu.memory_space<vmem>>, vector<1x8x384xf32>,
    %c0_31 = arith.constant 0 : index
    %c0_32 = arith.constant 0 : index
    %71 = vector.load %arg5[%c0_31, %c0_32] : memref<1x384xf32, #tpu.memory_space<vmem>>, vector<1x384xf32>
    %c0_33 = arith.constant 0 : index
    %c0_34 = arith.constant 0 : index
    %72 = vector.load %arg6[%c0_33, %c0_34] : memref<1x128xf32, #tpu.memory_space<vmem>>, vector<1x128xf32>
    %c0_35 = arith.constant 0 : index
    %c0_36 = arith.constant 0 : index
    %73 = vector.load %arg7[%c0_35, %c0_36] : memref<1x1xf32, #tpu.memory_space<vmem>>, vector<1x1xf32>
    %c0_37 = arith.constant 0 : index
    %c0_38 = arith.constant 0 : index
    %74 = vector.load %arg12[%c0_37, %c0_38] : memref<8x128xf32, #tpu.memory_space<vmem>>, vector<8x128xf32>
    %c0_39 = arith.constant 0 : index
    %c0_40 = arith.constant 0 : index
    %75 = vector.load %arg13[%c0_39, %c0_40] : memref<8x1xf32, #tpu.memory_space<vmem>>, vector<8x1xf32>
    %c0_41 = arith.constant 0 : index
    %c0_42 = arith.constant 0 : index
    %76 = vector.load %arg14[%c0_41, %c0_42] : memref<8x1xf32, #tpu.memory_space<vmem>>, vector<8x1xf32>
    %c0_43 = arith.constant 0 : index
    %c0_44 = arith.constant 0 : index
    %77 = vector.load %arg15[%c0_43, %c0_44] : memref<8x128xf32, #tpu.memory_space<vmem>>, vector<8x128xf32>
    %c0_i32_45 = arith.constant 0 : i32
    %78 = arith.index_cast %c0_i32_45 : i32 to index
    %c0_46 = arith.constant 0 : index
    %c0_47 = arith.constant 0 : index
    %79 = vector.load %arg11[%78, %c0_46, %c0_47] : memref<8x8x384xf32, #tpu.memory_space<vmem>>, vector<1x8x384xf32>
    %80 = vector.shape_cast %79 : vector<1x8x384xf32> to vector<8x384xf32>
    %81 = arith.truncf %74 : vector<8x128xf32> to vector<8x128xbf16>
    %c0_48 = arith.constant 0 : index
    %c0_49 = arith.constant 0 : index
    %82 = vector.load %arg4[%c0_48, %c0_49] : memref<128x384xbf16, #tpu.memory_space<vmem>>, vector<128x384xbf16>
    %cst_50 = arith.constant dense<0.000000e+00> : vector<8x384xf32>
    %83 = tpu.matmul %81, %82, %cst_50 {dimension_numbers = #tpu.dot_dimension_numbers<[1], [0], [0], [1], [0, 0, 1, 1], [], []>} : vector<8x128xbf16>, vector<128x384xbf16>, vector<8x384xf32> -> vector<8x384xf32>
    %84 = vector.broadcast %71 : vector<1x384xf32> to vector<8x384xf32>
    %85 = arith.addf %83, %84 : vector<8x384xf32>
    %86 = vector.extract_strided_slice %80 {offsets = [0, 0], sizes = [8, 128], strides = [1, 1]} : vector<8x384xf32> to vector<8x128xf32>
    %87 = vector.extract_strided_slice %85 {offsets = [0, 0], sizes = [8, 128], strides = [1, 1]} : vector<8x384xf32> to vector<8x128xf32>
    %88 = arith.addf %86, %87 : vector<8x128xf32>
    %89 = arith.negf %88 : vector<8x128xf32>
    %90 = math.exp %89 : vector<8x128xf32>
    %cst_51 = arith.constant 1.000000e+00 : f32
    %91 = vector.broadcast %cst_51 : f32 to vector<8x128xf32>
    %92 = arith.addf %91, %90 : vector<8x128xf32>
    %93 = arith.divf %91, %92 : vector<8x128xf32>
    %94 = vector.extract_strided_slice %80 {offsets = [0, 128], sizes = [8, 128], strides = [1, 1]} : vector<8x384xf32> to vector<8x128xf32>
    %95 = vector.extract_strided_slice %85 {offsets = [0, 128], sizes = [8, 128], strides = [1, 1]} : vector<8x384xf32> to vector<8x128xf32>
    %96 = arith.addf %94, %95 : vector<8x128xf32>
    %97 = arith.negf %96 : vector<8x128xf32>
    %98 = math.exp %97 : vector<8x128xf32>
    %cst_52 = arith.constant 1.000000e+00 : f32
    %99 = vector.broadcast %cst_52 : f32 to vector<8x128xf32>
    %100 = arith.addf %99, %98 : vector<8x128xf32>
    %101 = arith.divf %99, %100 : vector<8x128xf32>
    %102 = vector.extract_strided_slice %80 {offsets = [0, 256], sizes = [8, 128], strides = [1, 1]} : vector<8x384xf32> to vector<8x128xf32>
    %103 = vector.extract_strided_slice %85 {offsets = [0, 256], sizes = [8, 128], strides = [1, 1]} : vector<8x384xf32> to vector<8x128xf32>
    %104 = arith.mulf %93, %103 : vector<8x128xf32>
    %105 = arith.addf %102, %104 : vector<8x128xf32>
    %106 = math.tanh %105 : vector<8x128xf32>
    %cst_53 = arith.constant 1.000000e+00 : f32
    %107 = vector.broadcast %cst_53 : f32 to vector<8x128xf32>
    %108 = arith.subf %107, %101 : vector<8x128xf32>
    %109 = arith.mulf %108, %106 : vector<8x128xf32>
    %110 = arith.mulf %101, %74 : vector<8x128xf32>
    %111 = arith.addf %109, %110 : vector<8x128xf32>
    %112 = vector.broadcast %72 : vector<1x128xf32> to vector<8x128xf32>
    %113 = arith.mulf %111, %112 : vector<8x128xf32>
    %cst_54 = arith.constant dense<0.000000e+00> : vector<8xf32>
    %114 = vector.multi_reduction <add>, %113, %cst_54 [1] : vector<8x128xf32> to vector<8xf32>
    %115 = vector.shape_cast %114 : vector<8xf32> to vector<8x1xf32>
    %116 = vector.broadcast %73 : vector<1x1xf32> to vector<8x1xf32>
    %117 = arith.addf %115, %116 : vector<8x1xf32>
    %118 = arith.maximumf %75, %117 : vector<8x1xf32>
    %119 = arith.subf %75, %118 : vector<8x1xf32>
    %120 = math.exp %119 : vector<8x1xf32>
    %121 = arith.subf %117, %118 : vector<8x1xf32>
    %122 = math.exp %121 : vector<8x1xf32>
    %123 = arith.mulf %120, %76 : vector<8x1xf32>
    %124 = arith.addf %123, %122 : vector<8x1xf32>
    %125 = vector.broadcast %120 : vector<8x1xf32> to vector<8x128xf32>
    %126 = arith.mulf %125, %77 : vector<8x128xf32>
    %127 = vector.broadcast %122 : vector<8x1xf32> to vector<8x128xf32>
    %128 = arith.mulf %127, %111 : vector<8x128xf32>
    %129 = arith.addf %126, %128 : vector<8x128xf32>
    %c1_i32 = arith.constant 1 : i32
    %130 = arith.index_cast %c1_i32 : i32 to index
    %c0_55 = arith.constant 0 : index
    %c0_56 = arith.constant 0 : index
    %131 = vector.load %arg11[%130, %c0_55, %c0_56] : memref<8x8x384xf32, #tpu.memory_space<vmem>>, vector<1x8x384xf32>
    %132 = vector.shape_cast %131 : vector<1x8x384xf32> to vector<8x384xf32>
    %133 = arith.truncf %111 : vector<8x128xf32> to vector<8x128xbf16>
    %c0_57 = arith.constant 0 : index
    %c0_58 = arith.constant 0 : index
    %134 = vector.load %arg4[%c0_57, %c0_58] : memref<128x384xbf16, #tpu.memory_space<vmem>>, vector<128x384xbf16>
    %cst_59 = arith.constant dense<0.000000e+00> : vector<8x384xf32>
    %135 = tpu.matmul %133, %134, %cst_59 {dimension_numbers = #tpu.dot_dimension_numbers<[1], [0], [0], [1], [0, 0, 1, 1], [], []>} : vector<8x128xbf16>, vector<128x384xbf16>, vector<8x384xf32> -> vector<8x384xf32>
    %136 = vector.broadcast %71 : vector<1x384xf32> to vector<8x384xf32>
    %137 = arith.addf %135, %136 : vector<8x384xf32>
    %138 = vector.extract_strided_slice %132 {offsets = [0, 0], sizes = [8, 128], strides = [1, 1]} : vector<8x384xf32> to vector<8x128xf32>
    %139 = vector.extract_strided_slice %137 {offsets = [0, 0], sizes = [8, 128], strides = [1, 1]} : vector<8x384xf32> to vector<8x128xf32>
    %140 = arith.addf %138, %139 : vector<8x128xf32>
    %141 = arith.negf %140 : vector<8x128xf32>
    %142 = math.exp %141 : vector<8x128xf32>
    %cst_60 = arith.constant 1.000000e+00 : f32
    %143 = vector.broadcast %cst_60 : f32 to vector<8x128xf32>
    %144 = arith.addf %143, %142 : vector<8x128xf32>
    %145 = arith.divf %143, %144 : vector<8x128xf32>
    %146 = vector.extract_strided_slice %132 {offsets = [0, 128], sizes = [8, 128], strides = [1, 1]} : vector<8x384xf32> to vector<8x128xf32>
    %147 = vector.extract_strided_slice %137 {offsets = [0, 128], sizes = [8, 128], strides = [1, 1]} : vector<8x384xf32> to vector<8x128xf32>
    %148 = arith.addf %146, %147 : vector<8x128xf32>
    %149 = arith.negf %148 : vector<8x128xf32>
    %150 = math.exp %149 : vector<8x128xf32>
    %cst_61 = arith.constant 1.000000e+00 : f32
    %151 = vector.broadcast %cst_61 : f32 to vector<8x128xf32>
    %152 = arith.addf %151, %150 : vector<8x128xf32>
    %153 = arith.divf %151, %152 : vector<8x128xf32>
    %154 = vector.extract_strided_slice %132 {offsets = [0, 256], sizes = [8, 128], strides = [1, 1]} : vector<8x384xf32> to vector<8x128xf32>
    %155 = vector.extract_strided_slice %137 {offsets = [0, 256], sizes = [8, 128], strides = [1, 1]} : vector<8x384xf32> to vector<8x128xf32>
    %156 = arith.mulf %145, %155 : vector<8x128xf32>
    %157 = arith.addf %154, %156 : vector<8x128xf32>
    %158 = math.tanh %157 : vector<8x128xf32>
    %cst_62 = arith.constant 1.000000e+00 : f32
    %159 = vector.broadcast %cst_62 : f32 to vector<8x128xf32>
    %160 = arith.subf %159, %153 : vector<8x128xf32>
    %161 = arith.mulf %160, %158 : vector<8x128xf32>
    %162 = arith.mulf %153, %111 : vector<8x128xf32>
    %163 = arith.addf %161, %162 : vector<8x128xf32>
    %164 = vector.broadcast %72 : vector<1x128xf32> to vector<8x128xf32>
    %165 = arith.mulf %163, %164 : vector<8x128xf32>
    %cst_63 = arith.constant dense<0.000000e+00> : vector<8xf32>
    %166 = vector.multi_reduction <add>, %165, %cst_63 [1] : vector<8x128xf32> to vector<8xf32>
    %167 = vector.shape_cast %166 : vector<8xf32> to vector<8x1xf32>
    %168 = vector.broadcast %73 : vector<1x1xf32> to vector<8x1xf32>
    %169 = arith.addf %167, %168 : vector<8x1xf32>
    %170 = arith.maximumf %118, %169 : vector<8x1xf32>
    %171 = arith.subf %118, %170 : vector<8x1xf32>
    %172 = math.exp %171 : vector<8x1xf32>
    %173 = arith.subf %169, %170 : vector<8x1xf32>
    %174 = math.exp %173 : vector<8x1xf32>
    %175 = arith.mulf %172, %124 : vector<8x1xf32>
    %176 = arith.addf %175, %174 : vector<8x1xf32>
    %177 = vector.broadcast %172 : vector<8x1xf32> to vector<8x128xf32>
    %178 = arith.mulf %177, %129 : vector<8x128xf32>
    %179 = vector.broadcast %174 : vector<8x1xf32> to vector<8x128xf32>
    %180 = arith.mulf %179, %163 : vector<8x128xf32>
    %181 = arith.addf %178, %180 : vector<8x128xf32>
    %c2_i32 = arith.constant 2 : i32
    %182 = arith.index_cast %c2_i32 : i32 to index
    %c0_64 = arith.constant 0 : index
    %c0_65 = arith.constant 0 : index
    %183 = vector.load %arg11[%182, %c0_64, %c0_65] : memref<8x8x384xf32, #tpu.memory_space<vmem>>, vector<1x8x384xf32>
    %184 = vector.shape_cast %183 : vector<1x8x384xf32> to vector<8x384xf32>
    %185 = arith.truncf %163 : vector<8x128xf32> to vector<8x128xbf16>
    %c0_66 = arith.constant 0 : index
    %c0_67 = arith.constant 0 : index
    %186 = vector.load %arg4[%c0_66, %c0_67] : memref<128x384xbf16, #tpu.memory_space<vmem>>, vector<128x384xbf16>
    %cst_68 = arith.constant dense<0.000000e+00> : vector<8x384xf32>
    %187 = tpu.matmul %185, %186, %cst_68 {dimension_numbers = #tpu.dot_dimension_numbers<[1], [0], [0], [1], [0, 0, 1, 1], [], []>} : vector<8x128xbf16>, vector<128x384xbf16>, vector<8x384xf32> -> vector<8x384xf32>
    %188 = vector.broadcast %71 : vector<1x384xf32> to vector<8x384xf32>
    %189 = arith.addf %187, %188 : vector<8x384xf32>
    %190 = vector.extract_strided_slice %184 {offsets = [0, 0], sizes = [8, 128], strides = [1, 1]} : vector<8x384xf32> to vector<8x128xf32>
    %191 = vector.extract_strided_slice %189 {offsets = [0, 0], sizes = [8, 128], strides = [1, 1]} : vector<8x384xf32> to vector<8x128xf32>
    %192 = arith.addf %190, %191 : vector<8x128xf32>
    %193 = arith.negf %192 : vector<8x128xf32>
    %194 = math.exp %193 : vector<8x128xf32>
    %cst_69 = arith.constant 1.000000e+00 : f32
    %195 = vector.broadcast %cst_69 : f32 to vector<8x128xf32>
    %196 = arith.addf %195, %194 : vector<8x128xf32>
    %197 = arith.divf %195, %196 : vector<8x128xf32>
    %198 = vector.extract_strided_slice %184 {offsets = [0, 128], sizes = [8, 128], strides = [1, 1]} : vector<8x384xf32> to vector<8x128xf32>
    %199 = vector.extract_strided_slice %189 {offsets = [0, 128], sizes = [8, 128], strides = [1, 1]} : vector<8x384xf32> to vector<8x128xf32>
    %200 = arith.addf %198, %199 : vector<8x128xf32>
    %201 = arith.negf %200 : vector<8x128xf32>
    %202 = math.exp %201 : vector<8x128xf32>
    %cst_70 = arith.constant 1.000000e+00 : f32
    %203 = vector.broadcast %cst_70 : f32 to vector<8x128xf32>
    %204 = arith.addf %203, %202 : vector<8x128xf32>
    %205 = arith.divf %203, %204 : vector<8x128xf32>
    %206 = vector.extract_strided_slice %184 {offsets = [0, 256], sizes = [8, 128], strides = [1, 1]} : vector<8x384xf32> to vector<8x128xf32>
    %207 = vector.extract_strided_slice %189 {offsets = [0, 256], sizes = [8, 128], strides = [1, 1]} : vector<8x384xf32> to vector<8x128xf32>
    %208 = arith.mulf %197, %207 : vector<8x128xf32>
    %209 = arith.addf %206, %208 : vector<8x128xf32>
    %210 = math.tanh %209 : vector<8x128xf32>
    %cst_71 = arith.constant 1.000000e+00 : f32
    %211 = vector.broadcast %cst_71 : f32 to vector<8x128xf32>
    %212 = arith.subf %211, %205 : vector<8x128xf32>
    %213 = arith.mulf %212, %210 : vector<8x128xf32>
    %214 = arith.mulf %205, %163 : vector<8x128xf32>
    %215 = arith.addf %213, %214 : vector<8x128xf32>
    %216 = vector.broadcast %72 : vector<1x128xf32> to vector<8x128xf32>
    %217 = arith.mulf %215, %216 : vector<8x128xf32>
    %cst_72 = arith.constant dense<0.000000e+00> : vector<8xf32>
    %218 = vector.multi_reduction <add>, %217, %cst_72 [1] : vector<8x128xf32> to vector<8xf32>
    %219 = vector.shape_cast %218 : vector<8xf32> to vector<8x1xf32>
    %220 = vector.broadcast %73 : vector<1x1xf32> to vector<8x1xf32>
    %221 = arith.addf %219, %220 : vector<8x1xf32>
    %222 = arith.maximumf %170, %221 : vector<8x1xf32>
    %223 = arith.subf %170, %222 : vector<8x1xf32>
    %224 = math.exp %223 : vector<8x1xf32>
    %225 = arith.subf %221, %222 : vector<8x1xf32>
    %226 = math.exp %225 : vector<8x1xf32>
    %227 = arith.mulf %224, %176 : vector<8x1xf32>
    %228 = arith.addf %227, %226 : vector<8x1xf32>
    %229 = vector.broadcast %224 : vector<8x1xf32> to vector<8x128xf32>
    %230 = arith.mulf %229, %181 : vector<8x128xf32>
    %231 = vector.broadcast %226 : vector<8x1xf32> to vector<8x128xf32>
    %232 = arith.mulf %231, %215 : vector<8x128xf32>
    %233 = arith.addf %230, %232 : vector<8x128xf32>
    %c3_i32 = arith.constant 3 : i32
    %234 = arith.index_cast %c3_i32 : i32 to index
    %c0_73 = arith.constant 0 : index
    %c0_74 = arith.constant 0 : index
    %235 = vector.load %arg11[%234, %c0_73, %c0_74] : memref<8x8x384xf32, #tpu.memory_space<vmem>>, vector<1x8x384xf32>
    %236 = vector.shape_cast %235 : vector<1x8x384xf32> to vector<8x384xf32>
    %237 = arith.truncf %215 : vector<8x128xf32> to vector<8x128xbf16>
    %c0_75 = arith.constant 0 : index
    %c0_76 = arith.constant 0 : index
    %238 = vector.load %arg4[%c0_75, %c0_76] : memref<128x384xbf16, #tpu.memory_space<vmem>>, vector<128x384xbf16>
    %cst_77 = arith.constant dense<0.000000e+00> : vector<8x384xf32>
    %239 = tpu.matmul %237, %238, %cst_77 {dimension_numbers = #tpu.dot_dimension_numbers<[1], [0], [0], [1], [0, 0, 1, 1], [], []>} : vector<8x128xbf16>, vector<128x384xbf16>, vector<8x384xf32> -> vector<8x384xf32>
    %240 = vector.broadcast %71 : vector<1x384xf32> to vector<8x384xf32>
    %241 = arith.addf %239, %240 : vector<8x384xf32>
    %242 = vector.extract_strided_slice %236 {offsets = [0, 0], sizes = [8, 128], strides = [1, 1]} : vector<8x384xf32> to vector<8x128xf32>
    %243 = vector.extract_strided_slice %241 {offsets = [0, 0], sizes = [8, 128], strides = [1, 1]} : vector<8x384xf32> to vector<8x128xf32>
    %244 = arith.addf %242, %243 : vector<8x128xf32>
    %245 = arith.negf %244 : vector<8x128xf32>
    %246 = math.exp %245 : vector<8x128xf32>
    %cst_78 = arith.constant 1.000000e+00 : f32
    %247 = vector.broadcast %cst_78 : f32 to vector<8x128xf32>
    %248 = arith.addf %247, %246 : vector<8x128xf32>
    %249 = arith.divf %247, %248 : vector<8x128xf32>
    %250 = vector.extract_strided_slice %236 {offsets = [0, 128], sizes = [8, 128], strides = [1, 1]} : vector<8x384xf32> to vector<8x128xf32>
    %251 = vector.extract_strided_slice %241 {offsets = [0, 128], sizes = [8, 128], strides = [1, 1]} : vector<8x384xf32> to vector<8x128xf32>
    %252 = arith.addf %250, %251 : vector<8x128xf32>
    %253 = arith.negf %252 : vector<8x128xf32>
    %254 = math.exp %253 : vector<8x128xf32>
    %cst_79 = arith.constant 1.000000e+00 : f32
    %255 = vector.broadcast %cst_79 : f32 to vector<8x128xf32>
    %256 = arith.addf %255, %254 : vector<8x128xf32>
    %257 = arith.divf %255, %256 : vector<8x128xf32>
    %258 = vector.extract_strided_slice %236 {offsets = [0, 256], sizes = [8, 128], strides = [1, 1]} : vector<8x384xf32> to vector<8x128xf32>
    %259 = vector.extract_strided_slice %241 {offsets = [0, 256], sizes = [8, 128], strides = [1, 1]} : vector<8x384xf32> to vector<8x128xf32>
    %260 = arith.mulf %249, %259 : vector<8x128xf32>
    %261 = arith.addf %258, %260 : vector<8x128xf32>
    %262 = math.tanh %261 : vector<8x128xf32>
    %cst_80 = arith.constant 1.000000e+00 : f32
    %263 = vector.broadcast %cst_80 : f32 to vector<8x128xf32>
    %264 = arith.subf %263, %257 : vector<8x128xf32>
    %265 = arith.mulf %264, %262 : vector<8x128xf32>
    %266 = arith.mulf %257, %215 : vector<8x128xf32>
    %267 = arith.addf %265, %266 : vector<8x128xf32>
    %268 = vector.broadcast %72 : vector<1x128xf32> to vector<8x128xf32>
    %269 = arith.mulf %267, %268 : vector<8x128xf32>
    %cst_81 = arith.constant dense<0.000000e+00> : vector<8xf32>
    %270 = vector.multi_reduction <add>, %269, %cst_81 [1] : vector<8x128xf32> to vector<8xf32>
    %271 = vector.shape_cast %270 : vector<8xf32> to vector<8x1xf32>
    %272 = vector.broadcast %73 : vector<1x1xf32> to vector<8x1xf32>
    %273 = arith.addf %271, %272 : vector<8x1xf32>
    %274 = arith.maximumf %222, %273 : vector<8x1xf32>
    %275 = arith.subf %222, %274 : vector<8x1xf32>
    %276 = math.exp %275 : vector<8x1xf32>
    %277 = arith.subf %273, %274 : vector<8x1xf32>
    %278 = math.exp %277 : vector<8x1xf32>
    %279 = arith.mulf %276, %228 : vector<8x1xf32>
    %280 = arith.addf %279, %278 : vector<8x1xf32>
    %281 = vector.broadcast %276 : vector<8x1xf32> to vector<8x128xf32>
    %282 = arith.mulf %281, %233 : vector<8x128xf32>
    %283 = vector.broadcast %278 : vector<8x1xf32> to vector<8x128xf32>
    %284 = arith.mulf %283, %267 : vector<8x128xf32>
    %285 = arith.addf %282, %284 : vector<8x128xf32>
    %c4_i32 = arith.constant 4 : i32
    %286 = arith.index_cast %c4_i32 : i32 to index
    %c0_82 = arith.constant 0 : index
    %c0_83 = arith.constant 0 : index
    %287 = vector.load %arg11[%286, %c0_82, %c0_83] : memref<8x8x384xf32, #tpu.memory_space<vmem>>, vector<1x8x384xf32>
    %288 = vector.shape_cast %287 : vector<1x8x384xf32> to vector<8x384xf32>
    %289 = arith.truncf %267 : vector<8x128xf32> to vector<8x128xbf16>
    %c0_84 = arith.constant 0 : index
    %c0_85 = arith.constant 0 : index
    %290 = vector.load %arg4[%c0_84, %c0_85] : memref<128x384xbf16, #tpu.memory_space<vmem>>, vector<128x384xbf16>
    %cst_86 = arith.constant dense<0.000000e+00> : vector<8x384xf32>
    %291 = tpu.matmul %289, %290, %cst_86 {dimension_numbers = #tpu.dot_dimension_numbers<[1], [0], [0], [1], [0, 0, 1, 1], [], []>} : vector<8x128xbf16>, vector<128x384xbf16>, vector<8x384xf32> -> vector<8x384xf32>
    %292 = vector.broadcast %71 : vector<1x384xf32> to vector<8x384xf32>
    %293 = arith.addf %291, %292 : vector<8x384xf32>
    %294 = vector.extract_strided_slice %288 {offsets = [0, 0], sizes = [8, 128], strides = [1, 1]} : vector<8x384xf32> to vector<8x128xf32>
    %295 = vector.extract_strided_slice %293 {offsets = [0, 0], sizes = [8, 128], strides = [1, 1]} : vector<8x384xf32> to vector<8x128xf32>
    %296 = arith.addf %294, %295 : vector<8x128xf32>
    %297 = arith.negf %296 : vector<8x128xf32>
    %298 = math.exp %297 : vector<8x128xf32>
    %cst_87 = arith.constant 1.000000e+00 : f32
    %299 = vector.broadcast %cst_87 : f32 to vector<8x128xf32>
    %300 = arith.addf %299, %298 : vector<8x128xf32>
    %301 = arith.divf %299, %300 : vector<8x128xf32>
    %302 = vector.extract_strided_slice %288 {offsets = [0, 128], sizes = [8, 128], strides = [1, 1]} : vector<8x384xf32> to vector<8x128xf32>
    %303 = vector.extract_strided_slice %293 {offsets = [0, 128], sizes = [8, 128], strides = [1, 1]} : vector<8x384xf32> to vector<8x128xf32>
    %304 = arith.addf %302, %303 : vector<8x128xf32>
    %305 = arith.negf %304 : vector<8x128xf32>
    %306 = math.exp %305 : vector<8x128xf32>
    %cst_88 = arith.constant 1.000000e+00 : f32
    %307 = vector.broadcast %cst_88 : f32 to vector<8x128xf32>
    %308 = arith.addf %307, %306 : vector<8x128xf32>
    %309 = arith.divf %307, %308 : vector<8x128xf32>
    %310 = vector.extract_strided_slice %288 {offsets = [0, 256], sizes = [8, 128], strides = [1, 1]} : vector<8x384xf32> to vector<8x128xf32>
    %311 = vector.extract_strided_slice %293 {offsets = [0, 256], sizes = [8, 128], strides = [1, 1]} : vector<8x384xf32> to vector<8x128xf32>
    %312 = arith.mulf %301, %311 : vector<8x128xf32>
    %313 = arith.addf %310, %312 : vector<8x128xf32>
    %314 = math.tanh %313 : vector<8x128xf32>
    %cst_89 = arith.constant 1.000000e+00 : f32
    %315 = vector.broadcast %cst_89 : f32 to vector<8x128xf32>
    %316 = arith.subf %315, %309 : vector<8x128xf32>
    %317 = arith.mulf %316, %314 : vector<8x128xf32>
    %318 = arith.mulf %309, %267 : vector<8x128xf32>
    %319 = arith.addf %317, %318 : vector<8x128xf32>
    %320 = vector.broadcast %72 : vector<1x128xf32> to vector<8x128xf32>
    %321 = arith.mulf %319, %320 : vector<8x128xf32>
    %cst_90 = arith.constant dense<0.000000e+00> : vector<8xf32>
    %322 = vector.multi_reduction <add>, %321, %cst_90 [1] : vector<8x128xf32> to vector<8xf32>
    %323 = vector.shape_cast %322 : vector<8xf32> to vector<8x1xf32>
    %324 = vector.broadcast %73 : vector<1x1xf32> to vector<8x1xf32>
    %325 = arith.addf %323, %324 : vector<8x1xf32>
    %326 = arith.maximumf %274, %325 : vector<8x1xf32>
    %327 = arith.subf %274, %326 : vector<8x1xf32>
    %328 = math.exp %327 : vector<8x1xf32>
    %329 = arith.subf %325, %326 : vector<8x1xf32>
    %330 = math.exp %329 : vector<8x1xf32>
    %331 = arith.mulf %328, %280 : vector<8x1xf32>
    %332 = arith.addf %331, %330 : vector<8x1xf32>
    %333 = vector.broadcast %328 : vector<8x1xf32> to vector<8x128xf32>
    %334 = arith.mulf %333, %285 : vector<8x128xf32>
    %335 = vector.broadcast %330 : vector<8x1xf32> to vector<8x128xf32>
    %336 = arith.mulf %335, %319 : vector<8x128xf32>
    %337 = arith.addf %334, %336 : vector<8x128xf32>
    %c5_i32 = arith.constant 5 : i32
    %338 = arith.index_cast %c5_i32 : i32 to index
    %c0_91 = arith.constant 0 : index
    %c0_92 = arith.constant 0 : index
    %339 = vector.load %arg11[%338, %c0_91, %c0_92] : memref<8x8x384xf32, #tpu.memory_space<vmem>>, vector<1x8x384xf32>
    %340 = vector.shape_cast %339 : vector<1x8x384xf32> to vector<8x384xf32>
    %341 = arith.truncf %319 : vector<8x128xf32> to vector<8x128xbf16>
    %c0_93 = arith.constant 0 : index
    %c0_94 = arith.constant 0 : index
    %342 = vector.load %arg4[%c0_93, %c0_94] : memref<128x384xbf16, #tpu.memory_space<vmem>>, vector<128x384xbf16>
    %cst_95 = arith.constant dense<0.000000e+00> : vector<8x384xf32>
    %343 = tpu.matmul %341, %342, %cst_95 {dimension_numbers = #tpu.dot_dimension_numbers<[1], [0], [0], [1], [0, 0, 1, 1], [], []>} : vector<8x128xbf16>, vector<128x384xbf16>, vector<8x384xf32> -> vector<8x384xf32>
    %344 = vector.broadcast %71 : vector<1x384xf32> to vector<8x384xf32>
    %345 = arith.addf %343, %344 : vector<8x384xf32>
    %346 = vector.extract_strided_slice %340 {offsets = [0, 0], sizes = [8, 128], strides = [1, 1]} : vector<8x384xf32> to vector<8x128xf32>
    %347 = vector.extract_strided_slice %345 {offsets = [0, 0], sizes = [8, 128], strides = [1, 1]} : vector<8x384xf32> to vector<8x128xf32>
    %348 = arith.addf %346, %347 : vector<8x128xf32>
    %349 = arith.negf %348 : vector<8x128xf32>
    %350 = math.exp %349 : vector<8x128xf32>
    %cst_96 = arith.constant 1.000000e+00 : f32
    %351 = vector.broadcast %cst_96 : f32 to vector<8x128xf32>
    %352 = arith.addf %351, %350 : vector<8x128xf32>
    %353 = arith.divf %351, %352 : vector<8x128xf32>
    %354 = vector.extract_strided_slice %340 {offsets = [0, 128], sizes = [8, 128], strides = [1, 1]} : vector<8x384xf32> to vector<8x128xf32>
    %355 = vector.extract_strided_slice %345 {offsets = [0, 128], sizes = [8, 128], strides = [1, 1]} : vector<8x384xf32> to vector<8x128xf32>
    %356 = arith.addf %354, %355 : vector<8x128xf32>
    %357 = arith.negf %356 : vector<8x128xf32>
    %358 = math.exp %357 : vector<8x128xf32>
    %cst_97 = arith.constant 1.000000e+00 : f32
    %359 = vector.broadcast %cst_97 : f32 to vector<8x128xf32>
    %360 = arith.addf %359, %358 : vector<8x128xf32>
    %361 = arith.divf %359, %360 : vector<8x128xf32>
    %362 = vector.extract_strided_slice %340 {offsets = [0, 256], sizes = [8, 128], strides = [1, 1]} : vector<8x384xf32> to vector<8x128xf32>
    %363 = vector.extract_strided_slice %345 {offsets = [0, 256], sizes = [8, 128], strides = [1, 1]} : vector<8x384xf32> to vector<8x128xf32>
    %364 = arith.mulf %353, %363 : vector<8x128xf32>
    %365 = arith.addf %362, %364 : vector<8x128xf32>
    %366 = math.tanh %365 : vector<8x128xf32>
    %cst_98 = arith.constant 1.000000e+00 : f32
    %367 = vector.broadcast %cst_98 : f32 to vector<8x128xf32>
    %368 = arith.subf %367, %361 : vector<8x128xf32>
    %369 = arith.mulf %368, %366 : vector<8x128xf32>
    %370 = arith.mulf %361, %319 : vector<8x128xf32>
    %371 = arith.addf %369, %370 : vector<8x128xf32>
    %372 = vector.broadcast %72 : vector<1x128xf32> to vector<8x128xf32>
    %373 = arith.mulf %371, %372 : vector<8x128xf32>
    %cst_99 = arith.constant dense<0.000000e+00> : vector<8xf32>
    %374 = vector.multi_reduction <add>, %373, %cst_99 [1] : vector<8x128xf32> to vector<8xf32>
    %375 = vector.shape_cast %374 : vector<8xf32> to vector<8x1xf32>
    %376 = vector.broadcast %73 : vector<1x1xf32> to vector<8x1xf32>
    %377 = arith.addf %375, %376 : vector<8x1xf32>
    %378 = arith.maximumf %326, %377 : vector<8x1xf32>
    %379 = arith.subf %326, %378 : vector<8x1xf32>
    %380 = math.exp %379 : vector<8x1xf32>
    %381 = arith.subf %377, %378 : vector<8x1xf32>
    %382 = math.exp %381 : vector<8x1xf32>
    %383 = arith.mulf %380, %332 : vector<8x1xf32>
    %384 = arith.addf %383, %382 : vector<8x1xf32>
    %385 = vector.broadcast %380 : vector<8x1xf32> to vector<8x128xf32>
    %386 = arith.mulf %385, %337 : vector<8x128xf32>
    %387 = vector.broadcast %382 : vector<8x1xf32> to vector<8x128xf32>
    %388 = arith.mulf %387, %371 : vector<8x128xf32>
    %389 = arith.addf %386, %388 : vector<8x128xf32>
    %c6_i32 = arith.constant 6 : i32
    %390 = arith.index_cast %c6_i32 : i32 to index
    %c0_100 = arith.constant 0 : index
    %c0_101 = arith.constant 0 : index
    %391 = vector.load %arg11[%390, %c0_100, %c0_101] : memref<8x8x384xf32, #tpu.memory_space<vmem>>, vector<1x8x384xf32>
    %392 = vector.shape_cast %391 : vector<1x8x384xf32> to vector<8x384xf32>
    %393 = arith.truncf %371 : vector<8x128xf32> to vector<8x128xbf16>
    %c0_102 = arith.constant 0 : index
    %c0_103 = arith.constant 0 : index
    %394 = vector.load %arg4[%c0_102, %c0_103] : memref<128x384xbf16, #tpu.memory_space<vmem>>, vector<128x384xbf16>
    %cst_104 = arith.constant dense<0.000000e+00> : vector<8x384xf32>
    %395 = tpu.matmul %393, %394, %cst_104 {dimension_numbers = #tpu.dot_dimension_numbers<[1], [0], [0], [1], [0, 0, 1, 1], [], []>} : vector<8x128xbf16>, vector<128x384xbf16>, vector<8x384xf32> -> vector<8x384xf32>
    %396 = vector.broadcast %71 : vector<1x384xf32> to vector<8x384xf32>
    %397 = arith.addf %395, %396 : vector<8x384xf32>
    %398 = vector.extract_strided_slice %392 {offsets = [0, 0], sizes = [8, 128], strides = [1, 1]} : vector<8x384xf32> to vector<8x128xf32>
    %399 = vector.extract_strided_slice %397 {offsets = [0, 0], sizes = [8, 128], strides = [1, 1]} : vector<8x384xf32> to vector<8x128xf32>
    %400 = arith.addf %398, %399 : vector<8x128xf32>
    %401 = arith.negf %400 : vector<8x128xf32>
    %402 = math.exp %401 : vector<8x128xf32>
    %cst_105 = arith.constant 1.000000e+00 : f32
    %403 = vector.broadcast %cst_105 : f32 to vector<8x128xf32>
    %404 = arith.addf %403, %402 : vector<8x128xf32>
    %405 = arith.divf %403, %404 : vector<8x128xf32>
    %406 = vector.extract_strided_slice %392 {offsets = [0, 128], sizes = [8, 128], strides = [1, 1]} : vector<8x384xf32> to vector<8x128xf32>
    %407 = vector.extract_strided_slice %397 {offsets = [0, 128], sizes = [8, 128], strides = [1, 1]} : vector<8x384xf32> to vector<8x128xf32>
    %408 = arith.addf %406, %407 : vector<8x128xf32>
    %409 = arith.negf %408 : vector<8x128xf32>
    %410 = math.exp %409 : vector<8x128xf32>
    %cst_106 = arith.constant 1.000000e+00 : f32
    %411 = vector.broadcast %cst_106 : f32 to vector<8x128xf32>
    %412 = arith.addf %411, %410 : vector<8x128xf32>
    %413 = arith.divf %411, %412 : vector<8x128xf32>
    %414 = vector.extract_strided_slice %392 {offsets = [0, 256], sizes = [8, 128], strides = [1, 1]} : vector<8x384xf32> to vector<8x128xf32>
    %415 = vector.extract_strided_slice %397 {offsets = [0, 256], sizes = [8, 128], strides = [1, 1]} : vector<8x384xf32> to vector<8x128xf32>
    %416 = arith.mulf %405, %415 : vector<8x128xf32>
    %417 = arith.addf %414, %416 : vector<8x128xf32>
    %418 = math.tanh %417 : vector<8x128xf32>
    %cst_107 = arith.constant 1.000000e+00 : f32
    %419 = vector.broadcast %cst_107 : f32 to vector<8x128xf32>
    %420 = arith.subf %419, %413 : vector<8x128xf32>
    %421 = arith.mulf %420, %418 : vector<8x128xf32>
    %422 = arith.mulf %413, %371 : vector<8x128xf32>
    %423 = arith.addf %421, %422 : vector<8x128xf32>
    %424 = vector.broadcast %72 : vector<1x128xf32> to vector<8x128xf32>
    %425 = arith.mulf %423, %424 : vector<8x128xf32>
    %cst_108 = arith.constant dense<0.000000e+00> : vector<8xf32>
    %426 = vector.multi_reduction <add>, %425, %cst_108 [1] : vector<8x128xf32> to vector<8xf32>
    %427 = vector.shape_cast %426 : vector<8xf32> to vector<8x1xf32>
    %428 = vector.broadcast %73 : vector<1x1xf32> to vector<8x1xf32>
    %429 = arith.addf %427, %428 : vector<8x1xf32>
    %430 = arith.maximumf %378, %429 : vector<8x1xf32>
    %431 = arith.subf %378, %430 : vector<8x1xf32>
    %432 = math.exp %431 : vector<8x1xf32>
    %433 = arith.subf %429, %430 : vector<8x1xf32>
    %434 = math.exp %433 : vector<8x1xf32>
    %435 = arith.mulf %432, %384 : vector<8x1xf32>
    %436 = arith.addf %435, %434 : vector<8x1xf32>
    %437 = vector.broadcast %432 : vector<8x1xf32> to vector<8x128xf32>
    %438 = arith.mulf %437, %389 : vector<8x128xf32>
    %439 = vector.broadcast %434 : vector<8x1xf32> to vector<8x128xf32>
    %440 = arith.mulf %439, %423 : vector<8x128xf32>
    %441 = arith.addf %438, %440 : vector<8x128xf32>
    %c7_i32 = arith.constant 7 : i32
    %442 = arith.index_cast %c7_i32 : i32 to index
    %c0_109 = arith.constant 0 : index
    %c0_110 = arith.constant 0 : index
    %443 = vector.load %arg11[%442, %c0_109, %c0_110] : memref<8x8x384xf32, #tpu.memory_space<vmem>>, vector<1x8x384xf32>
    %444 = vector.shape_cast %443 : vector<1x8x384xf32> to vector<8x384xf32>
    %445 = arith.truncf %423 : vector<8x128xf32> to vector<8x128xbf16>
    %c0_111 = arith.constant 0 : index
    %c0_112 = arith.constant 0 : index
    %446 = vector.load %arg4[%c0_111, %c0_112] : memref<128x384xbf16, #tpu.memory_space<vmem>>, vector<128x384xbf16>
    %cst_113 = arith.constant dense<0.000000e+00> : vector<8x384xf32>
    %447 = tpu.matmul %445, %446, %cst_113 {dimension_numbers = #tpu.dot_dimension_numbers<[1], [0], [0], [1], [0, 0, 1, 1], [], []>} : vector<8x128xbf16>, vector<128x384xbf16>, vector<8x384xf32> -> vector<8x384xf32>
    %448 = vector.broadcast %71 : vector<1x384xf32> to vector<8x384xf32>
    %449 = arith.addf %447, %448 : vector<8x384xf32>
    %450 = vector.extract_strided_slice %444 {offsets = [0, 0], sizes = [8, 128], strides = [1, 1]} : vector<8x384xf32> to vector<8x128xf32>
    %451 = vector.extract_strided_slice %449 {offsets = [0, 0], sizes = [8, 128], strides = [1, 1]} : vector<8x384xf32> to vector<8x128xf32>
    %452 = arith.addf %450, %451 : vector<8x128xf32>
    %453 = arith.negf %452 : vector<8x128xf32>
    %454 = math.exp %453 : vector<8x128xf32>
    %cst_114 = arith.constant 1.000000e+00 : f32
    %455 = vector.broadcast %cst_114 : f32 to vector<8x128xf32>
    %456 = arith.addf %455, %454 : vector<8x128xf32>
    %457 = arith.divf %455, %456 : vector<8x128xf32>
    %458 = vector.extract_strided_slice %444 {offsets = [0, 128], sizes = [8, 128], strides = [1, 1]} : vector<8x384xf32> to vector<8x128xf32>
    %459 = vector.extract_strided_slice %449 {offsets = [0, 128], sizes = [8, 128], strides = [1, 1]} : vector<8x384xf32> to vector<8x128xf32>
    %460 = arith.addf %458, %459 : vector<8x128xf32>
    %461 = arith.negf %460 : vector<8x128xf32>
    %462 = math.exp %461 : vector<8x128xf32>
    %cst_115 = arith.constant 1.000000e+00 : f32
    %463 = vector.broadcast %cst_115 : f32 to vector<8x128xf32>
    %464 = arith.addf %463, %462 : vector<8x128xf32>
    %465 = arith.divf %463, %464 : vector<8x128xf32>
    %466 = vector.extract_strided_slice %444 {offsets = [0, 256], sizes = [8, 128], strides = [1, 1]} : vector<8x384xf32> to vector<8x128xf32>
    %467 = vector.extract_strided_slice %449 {offsets = [0, 256], sizes = [8, 128], strides = [1, 1]} : vector<8x384xf32> to vector<8x128xf32>
    %468 = arith.mulf %457, %467 : vector<8x128xf32>
    %469 = arith.addf %466, %468 : vector<8x128xf32>
    %470 = math.tanh %469 : vector<8x128xf32>
    %cst_116 = arith.constant 1.000000e+00 : f32
    %471 = vector.broadcast %cst_116 : f32 to vector<8x128xf32>
    %472 = arith.subf %471, %465 : vector<8x128xf32>
    %473 = arith.mulf %472, %470 : vector<8x128xf32>
    %474 = arith.mulf %465, %423 : vector<8x128xf32>
    %475 = arith.addf %473, %474 : vector<8x128xf32>
    %476 = vector.broadcast %72 : vector<1x128xf32> to vector<8x128xf32>
    %477 = arith.mulf %475, %476 : vector<8x128xf32>
    %cst_117 = arith.constant dense<0.000000e+00> : vector<8xf32>
    %478 = vector.multi_reduction <add>, %477, %cst_117 [1] : vector<8x128xf32> to vector<8xf32>
    %479 = vector.shape_cast %478 : vector<8xf32> to vector<8x1xf32>
    %480 = vector.broadcast %73 : vector<1x1xf32> to vector<8x1xf32>
    %481 = arith.addf %479, %480 : vector<8x1xf32>
    %482 = arith.maximumf %430, %481 : vector<8x1xf32>
    %483 = arith.subf %430, %482 : vector<8x1xf32>
    %484 = math.exp %483 : vector<8x1xf32>
    %485 = arith.subf %481, %482 : vector<8x1xf32>
    %486 = math.exp %485 : vector<8x1xf32>
    %487 = arith.mulf %484, %436 : vector<8x1xf32>
    %488 = arith.addf %487, %486 : vector<8x1xf32>
    %489 = vector.broadcast %484 : vector<8x1xf32> to vector<8x128xf32>
    %490 = arith.mulf %489, %441 : vector<8x128xf32>
    %491 = vector.broadcast %486 : vector<8x1xf32> to vector<8x128xf32>
    %492 = arith.mulf %491, %475 : vector<8x128xf32>
    %493 = arith.addf %490, %492 : vector<8x128xf32>
    %c8_i32 = arith.constant 8 : i32
    %c0_118 = arith.constant 0 : index
    %c0_119 = arith.constant 0 : index
    %494 = vector.load %arg12[%c0_118, %c0_119] : memref<8x128xf32, #tpu.memory_space<vmem>>, vector<8x128xf32>
    tpu.vector_store %arg12[%c0_118, %c0_119], %475 {strides = array<i32>} : memref<8x128xf32, #tpu.memory_space<vmem>>, vector<8x128xf32>,
    %c0_120 = arith.constant 0 : index
    %c0_121 = arith.constant 0 : index
    %495 = vector.load %arg13[%c0_120, %c0_121] : memref<8x1xf32, #tpu.memory_space<vmem>>, vector<8x1xf32>
    tpu.vector_store %arg13[%c0_120, %c0_121], %482 {strides = array<i32>} : memref<8x1xf32, #tpu.memory_space<vmem>>, vector<8x1xf32>,
    %c0_122 = arith.constant 0 : index
    %c0_123 = arith.constant 0 : index
    %496 = vector.load %arg14[%c0_122, %c0_123] : memref<8x1xf32, #tpu.memory_space<vmem>>, vector<8x1xf32>
    tpu.vector_store %arg14[%c0_122, %c0_123], %488 {strides = array<i32>} : memref<8x1xf32, #tpu.memory_space<vmem>>, vector<8x1xf32>,
    %c0_124 = arith.constant 0 : index
    %c0_125 = arith.constant 0 : index
    %497 = vector.load %arg15[%c0_124, %c0_125] : memref<8x128xf32, #tpu.memory_space<vmem>>, vector<8x128xf32>
    tpu.vector_store %arg15[%c0_124, %c0_125], %493 {strides = array<i32>} : memref<8x128xf32, #tpu.memory_space<vmem>>, vector<8x128xf32>,
    %c1_i32_126 = arith.constant 1 : i32
    %498 = arith.cmpi eq, %arg0, %c1_i32_126 : i32
    %499 = arith.extui %498 : i1 to i32
    %c0_i32_127 = arith.constant 0 : i32
    %500 = arith.cmpi ne, %499, %c0_i32_127 : i32
    scf.if %500 {
      %501 = vector.broadcast %488 : vector<8x1xf32> to vector<8x128xf32>
      %502 = arith.divf %493, %501 : vector<8x128xf32>
      %503 = arith.truncf %502 : vector<8x128xf32> to vector<8x128xbf16>
      %c0_128 = arith.constant 0 : index
      %c0_129 = arith.constant 0 : index
      %504 = vector.load %arg8[%c0_128, %c0_129] : memref<128x128xbf16, #tpu.memory_space<vmem>>, vector<128x128xbf16>
      %cst_130 = arith.constant dense<0.000000e+00> : vector<8x128xf32>
      %505 = tpu.matmul %503, %504, %cst_130 {dimension_numbers = #tpu.dot_dimension_numbers<[1], [0], [0], [1], [0, 0, 1, 1], [], []>} : vector<8x128xbf16>, vector<128x128xbf16>, vector<8x128xf32> -> vector<8x128xf32>
      %c0_131 = arith.constant 0 : index
      %c0_132 = arith.constant 0 : index
      %506 = vector.load %arg9[%c0_131, %c0_132] : memref<1x128xf32, #tpu.memory_space<vmem>>, vector<1x128xf32>
      %507 = vector.broadcast %506 : vector<1x128xf32> to vector<8x128xf32>
      %508 = arith.addf %505, %507 : vector<8x128xf32>
      %c0_133 = arith.constant 0 : index
      %c0_134 = arith.constant 0 : index
      %509 = vector.load %arg10[%c0_133, %c0_134] : memref<8x128xf32, #tpu.memory_space<vmem>>, vector<8x128xf32>
      tpu.vector_store %arg10[%c0_133, %c0_134], %508 {strides = array<i32>} : memref<8x128xf32, #tpu.memory_space<vmem>>, vector<8x128xf32>,
    } else {
    }
    return
  }
  func.func @transform_0(%arg0: i32) -> (i32, i32, i32) {
    %c0_i32 = arith.constant 0 : i32
    %c0_i32_0 = arith.constant 0 : i32
    %c0_i32_1 = arith.constant 0 : i32
    return %c0_i32, %arg0, %c0_i32_0 : i32, i32, i32
  }
  func.func @transform_1(%arg0: i32) -> (i32, i32) {
    %c0_i32 = arith.constant 0 : i32
    %c0_i32_0 = arith.constant 0 : i32
    %c0_i32_1 = arith.constant 0 : i32
    return %c0_i32, %c0_i32_0 : i32, i32
  }
  func.func @transform_2(%arg0: i32) -> (i32, i32) {
    %c0_i32 = arith.constant 0 : i32
    %c0_i32_0 = arith.constant 0 : i32
    %c0_i32_1 = arith.constant 0 : i32
    return %c0_i32, %c0_i32_0 : i32, i32
  }
  func.func @transform_3(%arg0: i32) -> (i32, i32) {
    %c0_i32 = arith.constant 0 : i32
    %c0_i32_0 = arith.constant 0 : i32
    %c0_i32_1 = arith.constant 0 : i32
    return %c0_i32, %c0_i32_0 : i32, i32
  }
  func.func @transform_4(%arg0: i32) -> (i32, i32) {
    %c0_i32 = arith.constant 0 : i32
    %c0_i32_0 = arith.constant 0 : i32
    %c0_i32_1 = arith.constant 0 : i32
    return %c0_i32, %c0_i32_0 : i32, i32
  }
  func.func @transform_5(%arg0: i32) -> (i32, i32) {
    %c0_i32 = arith.constant 0 : i32
    %c0_i32_0 = arith.constant 0 : i32
    %c0_i32_1 = arith.constant 0 : i32
    return %c0_i32, %c0_i32_0 : i32, i32
  }
  func.func @transform_6(%arg0: i32) -> (i32, i32) {
    %c0_i32 = arith.constant 0 : i32
    %c0_i32_0 = arith.constant 0 : i32
    %c0_i32_1 = arith.constant 0 : i32
    return %c0_i32, %c0_i32_0 : i32, i32
  }
  func.func @transform_7(%arg0: i32) -> (i32, i32) {
    %c0_i32 = arith.constant 0 : i32
    %c0_i32_0 = arith.constant 0 : i32
    %c0_i32_1 = arith.constant 0 : i32
    return %c0_i32, %c0_i32_0 : i32, i32
  }
  func.func @transform_8(%arg0: i32) -> (i32, i32) {
    %c0_i32 = arith.constant 0 : i32
    %c0_i32_0 = arith.constant 0 : i32
    %c0_i32_1 = arith.constant 0 : i32
    return %c0_i32, %c0_i32_0 : i32, i32
  }
  func.func @transform_9(%arg0: i32) -> (i32, i32) {
    %c0_i32 = arith.constant 0 : i32
    %c0_i32_0 = arith.constant 0 : i32
    %c0_i32_1 = arith.constant 0 : i32
    return %c0_i32, %c0_i32_0 : i32, i32
  }
}

</mosaic_0001>

<llo_original>
// kernel: attention_model_forward.1
$region0: #{attention_model_forward.1}
  #allocation0 [shape = 'u32[]', space=smem, size = 0x4, offset = 0x4, fixed_abs, tag = 'smem constant byte address 0x4 - core index']
  #allocation1 [shape = 'u32[72,128]{1,0:T(1,128)}', space=vmem, size = 0x9000, scoped, tag = 'internal scratch']
  #allocation2 [shape = 'f32[8,8,384]{2,1,0:T(8,128)}', space=vmem, size = 0x18000, scoped, tag = 'scratch operand']
  #allocation3 [shape = 'f32[8,128]{1,0:T(8,128)}', space=vmem, size = 0x1000, scoped, tag = 'scratch operand']
  #allocation4 [shape = 'f32[8,1]{1,0:T(8,128)}', space=vmem, size = 0x1000, scoped, tag = 'scratch operand']
  #allocation5 [shape = 'f32[8,1]{1,0:T(8,128)}', space=vmem, size = 0x1000, scoped, tag = 'scratch operand']
  #allocation6 [shape = 'f32[8,128]{1,0:T(8,128)}', space=vmem, size = 0x1000, scoped, tag = 'scratch operand']
  #allocation7 [shape = 'f32[1,1]{1,0:T(1,128)S(1)}', space=vmem, size = 0x200, scoped, tag = 'scoped memory for attention_model_forward.1']
  %s0 = inlined_call_operand.vmem [shape: f32[8,16,8], index: 0, kind: input, shape index: {}]
  %s1 = inlined_call_operand.vmem [shape: bf16[8,384], index: 1, kind: input, shape index: {}]
  %s2 = inlined_call_operand.vmem [shape: f32[1,384], index: 2, kind: input, shape index: {}]
  %s3 = inlined_call_operand.vmem [shape: bf16[128,384], index: 3, kind: input, shape index: {}]
  %s4 = inlined_call_operand.vmem [shape: f32[1,384], index: 4, kind: input, shape index: {}]
  %s5 = inlined_call_operand.vmem [shape: f32[1,128], index: 5, kind: input, shape index: {}]
  %s6 = inlined_call_operand.<no memory space> [shape: f32[1,1], index: 6, kind: input, shape index: {}]
  %s7 = inlined_call_operand.vmem [shape: bf16[128,128], index: 7, kind: input, shape index: {}]
  %s8 = inlined_call_operand.vmem [shape: f32[1,128], index: 8, kind: input, shape index: {}]
  %s9 = inlined_call_operand.vmem [shape: f32[8,128], index: 9, kind: output, shape index: {}]
  %s10 = sld [smem:[#allocation0]]
  $region115: #{attention_model_forward.1} parent=0
    _
  %s12 = ssub.s32 1, %s10
  %s13 = scalar_select 0, %s12, %s10
  %v14 = vstv %s6
  %15 = vst [vmem:[#allocation7] sm:$0x1] %v14
  $region1: #{attention_model_forward.1} parent=0
    #allocation8 [shape = 'u8[65536]{0}', space=vmem, size = 0x10000, scoped, tag = 'input window, operand 0']
    loop: start=0, step=1, limit=4
    $region2: #{attention_model_forward.1} parent=1 // loop_pre_header
      _
    $region3: #{attention_model_forward.1} parent=1 // loop_header
      %s17 = sphi 0, %s21
      %p18 = scmp.ge.s32.totalorder %s17, 4
      %s27 = sphi 0, %s29
      %s30 = sphi 0, %s27
      %s31 = sphi 0, %s30
      %s47 = sphi 0, %s31
      %s51 = sphi 0, %s51
      %s53 = sphi 0, %s51
      %s54 = sphi 0, %s53
      %s68 = sphi 0, %s54
      %s72 = sphi 0, %s72
      %s74 = sphi 0, %s72
      %s75 = sphi 0, %s74
      %s89 = sphi 0, %s75
      %s93 = sphi 0, %s93
      %s95 = sphi 0, %s93
      %s96 = sphi 0, %s95
      %s110 = sphi 0, %s96
      %s114 = sphi 0, %s114
      %s116 = sphi 0, %s114
      %s117 = sphi 0, %s116
      %s131 = sphi 0, %s117
      %s135 = sphi 0, %s135
      %s137 = sphi 0, %s135
      %s138 = sphi 0, %s137
      %s152 = sphi 0, %s138
      %s156 = sphi 0, %s156
      %s158 = sphi 0, %s156
      %s159 = sphi 0, %s158
      %s173 = sphi 0, %s159
      %s177 = sphi 0, %s177
      %s179 = sphi 0, %s177
      %s180 = sphi 0, %s179
      %s194 = sphi 0, %s180
      %s198 = sphi 0, %s198
      %s200 = sphi 0, %s198
      %s201 = sphi 0, %s200
      %s215 = sphi 0, %s201
      %s219 = sphi 0, %s219
      %s221 = sphi 0, %s219
      %s222 = sphi 0, %s221
      %s236 = sphi 0, %s222
    $region4: #{attention_model_forward.1} parent=1 // loop_header_branch
      %20 = sbr.rel (%p18) target = $region8
    $region5: #{attention_model_forward.1} parent=1 // loop_body
      %s22 = ssub.s32 %s17, 1
      %s23 = ssub.s32 %s17, 2
      %s24 = sadd.s32 %s17, 1
      %s25 = ssub.s32 %s17, %s24
      %p26 = scmp.eq.s32.totalorder %s25, 0
      %s28 = sadd.s32 %s27, 1
      %s29 = scalar_select %p26, %s27, %s28
      %p32 = pneg %p26
      %p33 = scmp.eq.s32.totalorder %s17, 1
      %p34 = por %p32, %p33
      %p35 = scmp.ne.s32.totalorder %s27, %s30
      %p36 = scmp.eq.s32.totalorder %s17, 0
      %p37 = por %p35, %p36
      %p38 = scmp.ne.s32.totalorder %s27, %s30
      %p39 = scmp.eq.s32.totalorder %s22, 1
      %p40 = por %p38, %p39
      %p41 = scmp.ne.s32.totalorder %s30, %s31
      %p42 = scmp.eq.s32.totalorder %s22, 0
      %p43 = por %p41, %p42
      %p44 = scmp.ne.s32.totalorder %s30, %s31
      %p45 = scmp.eq.s32.totalorder %s23, 1
      %p46 = por %p44, %p45
      %p48 = scmp.ne.s32.totalorder %s31, %s47
      %p49 = scmp.eq.s32.totalorder %s23, 0
      %p50 = por %p48, %p49
      %s52 = sadd.s32 %s51, 1
      %p55 = scmp.eq.s32.totalorder %s17, 1
      %p56 = scmp.ne.s32.totalorder %s51, %s53
      %p57 = scmp.eq.s32.totalorder %s17, 0
      %p58 = por %p56, %p57
      %p59 = scmp.ne.s32.totalorder %s51, %s53
      %p60 = scmp.eq.s32.totalorder %s22, 1
      %p61 = por %p59, %p60
      %p62 = scmp.ne.s32.totalorder %s53, %s54
      %p63 = scmp.eq.s32.totalorder %s22, 0
      %p64 = por %p62, %p63
      %p65 = scmp.ne.s32.totalorder %s53, %s54
      %p66 = scmp.eq.s32.totalorder %s23, 1
      %p67 = por %p65, %p66
      %p69 = scmp.ne.s32.totalorder %s54, %s68
      %p70 = scmp.eq.s32.totalorder %s23, 0
      %p71 = por %p69, %p70
      %s73 = sadd.s32 %s72, 1
      %p76 = scmp.eq.s32.totalorder %s17, 1
      %p77 = scmp.ne.s32.totalorder %s72, %s74
      %p78 = scmp.eq.s32.totalorder %s17, 0
      %p79 = por %p77, %p78
      %p80 = scmp.ne.s32.totalorder %s72, %s74
      %p81 = scmp.eq.s32.totalorder %s22, 1
      %p82 = por %p80, %p81
      %p83 = scmp.ne.s32.totalorder %s74, %s75
      %p84 = scmp.eq.s32.totalorder %s22, 0
      %p85 = por %p83, %p84
      %p86 = scmp.ne.s32.totalorder %s74, %s75
      %p87 = scmp.eq.s32.totalorder %s23, 1
      %p88 = por %p86, %p87
      %p90 = scmp.ne.s32.totalorder %s75, %s89
      %p91 = scmp.eq.s32.totalorder %s23, 0
      %p92 = por %p90, %p91
      %s94 = sadd.s32 %s93, 1
      %p97 = scmp.eq.s32.totalorder %s17, 1
      %p98 = scmp.ne.s32.totalorder %s93, %s95
      %p99 = scmp.eq.s32.totalorder %s17, 0
      %p100 = por %p98, %p99
      %p101 = scmp.ne.s32.totalorder %s93, %s95
      %p102 = scmp.eq.s32.totalorder %s22, 1
      %p103 = por %p101, %p102
      %p104 = scmp.ne.s32.totalorder %s95, %s96
      %p105 = scmp.eq.s32.totalorder %s22, 0
      %p106 = por %p104, %p105
      %p107 = scmp.ne.s32.totalorder %s95, %s96
      %p108 = scmp.eq.s32.totalorder %s23, 1
      %p109 = por %p107, %p108
      %p111 = scmp.ne.s32.totalorder %s96, %s110
      %p112 = scmp.eq.s32.totalorder %s23, 0
      %p113 = por %p111, %p112
      %s115 = sadd.s32 %s114, 1
      %p118 = scmp.eq.s32.totalorder %s17, 1
      %p119 = scmp.ne.s32.totalorder %s114, %s116
      %p120 = scmp.eq.s32.totalorder %s17, 0
      %p121 = por %p119, %p120
      %p122 = scmp.ne.s32.totalorder %s114, %s116
      %p123 = scmp.eq.s32.totalorder %s22, 1
      %p124 = por %p122, %p123
      %p125 = scmp.ne.s32.totalorder %s116, %s117
      %p126 = scmp.eq.s32.totalorder %s22, 0
      %p127 = por %p125, %p126
      %p128 = scmp.ne.s32.totalorder %s116, %s117
      %p129 = scmp.eq.s32.totalorder %s23, 1
      %p130 = por %p128, %p129
      %p132 = scmp.ne.s32.totalorder %s117, %s131
      %p133 = scmp.eq.s32.totalorder %s23, 0
      %p134 = por %p132, %p133
      %s136 = sadd.s32 %s135, 1
      %p139 = scmp.eq.s32.totalorder %s17, 1
      %p140 = scmp.ne.s32.totalorder %s135, %s137
      %p141 = scmp.eq.s32.totalorder %s17, 0
      %p142 = por %p140, %p141
      %p143 = scmp.ne.s32.totalorder %s135, %s137
      %p144 = scmp.eq.s32.totalorder %s22, 1
      %p145 = por %p143, %p144
      %p146 = scmp.ne.s32.totalorder %s137, %s138
      %p147 = scmp.eq.s32.totalorder %s22, 0
      %p148 = por %p146, %p147
      %p149 = scmp.ne.s32.totalorder %s137, %s138
      %p150 = scmp.eq.s32.totalorder %s23, 1
      %p151 = por %p149, %p150
      %p153 = scmp.ne.s32.totalorder %s138, %s152
      %p154 = scmp.eq.s32.totalorder %s23, 0
      %p155 = por %p153, %p154
      %s157 = sadd.s32 %s156, 1
      %p160 = scmp.eq.s32.totalorder %s17, 1
      %p161 = scmp.ne.s32.totalorder %s156, %s158
      %p162 = scmp.eq.s32.totalorder %s17, 0
      %p163 = por %p161, %p162
      %p164 = scmp.ne.s32.totalorder %s156, %s158
      %p165 = scmp.eq.s32.totalorder %s22, 1
      %p166 = por %p164, %p165
      %p167 = scmp.ne.s32.totalorder %s158, %s159
      %p168 = scmp.eq.s32.totalorder %s22, 0
      %p169 = por %p167, %p168
      %p170 = scmp.ne.s32.totalorder %s158, %s159
      %p171 = scmp.eq.s32.totalorder %s23, 1
      %p172 = por %p170, %p171
      %p174 = scmp.ne.s32.totalorder %s159, %s173
      %p175 = scmp.eq.s32.totalorder %s23, 0
      %p176 = por %p174, %p175
      %s178 = sadd.s32 %s177, 1
      %p181 = scmp.eq.s32.totalorder %s17, 1
      %p182 = scmp.ne.s32.totalorder %s177, %s179
      %p183 = scmp.eq.s32.totalorder %s17, 0
      %p184 = por %p182, %p183
      %p185 = scmp.ne.s32.totalorder %s177, %s179
      %p186 = scmp.eq.s32.totalorder %s22, 1
      %p187 = por %p185, %p186
      %p188 = scmp.ne.s32.totalorder %s179, %s180
      %p189 = scmp.eq.s32.totalorder %s22, 0
      %p190 = por %p188, %p189
      %p191 = scmp.ne.s32.totalorder %s179, %s180
      %p192 = scmp.eq.s32.totalorder %s23, 1
      %p193 = por %p191, %p192
      %p195 = scmp.ne.s32.totalorder %s180, %s194
      %p196 = scmp.eq.s32.totalorder %s23, 0
      %p197 = por %p195, %p196
      %s199 = sadd.s32 %s198, 1
      %p202 = scmp.eq.s32.totalorder %s17, 1
      %p203 = scmp.ne.s32.totalorder %s198, %s200
      %p204 = scmp.eq.s32.totalorder %s17, 0
      %p205 = por %p203, %p204
      %p206 = scmp.ne.s32.totalorder %s198, %s200
      %p207 = scmp.eq.s32.totalorder %s22, 1
      %p208 = por %p206, %p207
      %p209 = scmp.ne.s32.totalorder %s200, %s201
      %p210 = scmp.eq.s32.totalorder %s22, 0
      %p211 = por %p209, %p210
      %p212 = scmp.ne.s32.totalorder %s200, %s201
      %p213 = scmp.eq.s32.totalorder %s23, 1
      %p214 = por %p212, %p213
      %p216 = scmp.ne.s32.totalorder %s201, %s215
      %p217 = scmp.eq.s32.totalorder %s23, 0
      %p218 = por %p216, %p217
      %s220 = sadd.s32 %s219, 1
      %p223 = scmp.eq.s32.totalorder %s17, 1
      %p224 = scmp.ne.s32.totalorder %s219, %s221
      %p225 = scmp.eq.s32.totalorder %s17, 0
      %p226 = por %p224, %p225
      %p227 = scmp.ne.s32.totalorder %s219, %s221
      %p228 = scmp.eq.s32.totalorder %s22, 1
      %p229 = por %p227, %p228
      %p230 = scmp.ne.s32.totalorder %s221, %s222
      %p231 = scmp.eq.s32.totalorder %s22, 0
      %p232 = por %p230, %p231
      %p233 = scmp.ne.s32.totalorder %s221, %s222
      %p234 = scmp.eq.s32.totalorder %s23, 1
      %p235 = por %p233, %p234
      %p237 = scmp.ne.s32.totalorder %s222, %s236
      %p238 = scmp.eq.s32.totalorder %s23, 0
      %p239 = por %p237, %p238
      %p240 = scmp.le.s32.totalorder 1, %s17
      %p241 = scmp.lt.s32.totalorder %s17, 3
      %p242 = pnand %p240, %p241
      %p243 = pneg %p242
      // Predicated region
      $region9: #{attention_model_forward.1} parent=5 // pred_check
        _
      $region10: #{attention_model_forward.1} parent=5 // pred_check_branch
        %245 = sbr.rel (%p242) target = $region12
      $region11: #{attention_model_forward.1} parent=5 // pred_region
        %s246 = ssub.s32 %s17, 1
        // Predicated region
        $region13: #{attention_model_forward.1} parent=11 // pred_check
          %p247 = pneg %p64
        $region14: #{attention_model_forward.1} parent=11 // pred_check_branch
          %249 = sbr.rel (%p247) target = $region16
        $region15: #{attention_model_forward.1} parent=11 // pred_region
          _
        $region16: #{attention_model_forward.1} parent=11 // pred_fallthru
          _
        // Predicated region
        $region17: #{attention_model_forward.1} parent=11 // pred_check
          %p250 = pneg %p85
        $region18: #{attention_model_forward.1} parent=11 // pred_check_branch
          %252 = sbr.rel (%p250) target = $region20
        $region19: #{attention_model_forward.1} parent=11 // pred_region
          _
        $region20: #{attention_model_forward.1} parent=11 // pred_fallthru
          _
        // Predicated region
        $region21: #{attention_model_forward.1} parent=11 // pred_check
          %p253 = pneg %p106
        $region22: #{attention_model_forward.1} parent=11 // pred_check_branch
          %255 = sbr.rel (%p253) target = $region24
        $region23: #{attention_model_forward.1} parent=11 // pred_region
          _
        $region24: #{attention_model_forward.1} parent=11 // pred_fallthru
          _
        // Predicated region
        $region25: #{attention_model_forward.1} parent=11 // pred_check
          %p256 = pneg %p127
        $region26: #{attention_model_forward.1} parent=11 // pred_check_branch
          %258 = sbr.rel (%p256) target = $region28
        $region27: #{attention_model_forward.1} parent=11 // pred_region
          _
        $region28: #{attention_model_forward.1} parent=11 // pred_fallthru
          _
        // Predicated region
        $region29: #{attention_model_forward.1} parent=11 // pred_check
          %p259 = pneg %p148
        $region30: #{attention_model_forward.1} parent=11 // pred_check_branch
          %261 = sbr.rel (%p259) target = $region32
        $region31: #{attention_model_forward.1} parent=11 // pred_region
          _
        $region32: #{attention_model_forward.1} parent=11 // pred_fallthru
          _
        // Predicated region
        $region33: #{attention_model_forward.1} parent=11 // pred_check
          %p262 = pneg %p169
        $region34: #{attention_model_forward.1} parent=11 // pred_check_branch
          %264 = sbr.rel (%p262) target = $region36
        $region35: #{attention_model_forward.1} parent=11 // pred_region
          _
        $region36: #{attention_model_forward.1} parent=11 // pred_fallthru
          _
        // Predicated region
        $region37: #{attention_model_forward.1} parent=11 // pred_check
          %p265 = pneg %p190
        $region38: #{attention_model_forward.1} parent=11 // pred_check_branch
          %267 = sbr.rel (%p265) target = $region40
        $region39: #{attention_model_forward.1} parent=11 // pred_region
          _
        $region40: #{attention_model_forward.1} parent=11 // pred_fallthru
          _
        // Predicated region
        $region41: #{attention_model_forward.1} parent=11 // pred_check
          %p268 = pneg %p211
        $region42: #{attention_model_forward.1} parent=11 // pred_check_branch
          %270 = sbr.rel (%p268) target = $region44
        $region43: #{attention_model_forward.1} parent=11 // pred_region
          _
        $region44: #{attention_model_forward.1} parent=11 // pred_fallthru
          _
      $region12: #{attention_model_forward.1} parent=5 // pred_fallthru
        _
      %p271 = scmp.lt.s32.totalorder %s17, 2
      // Predicated region
      $region45: #{attention_model_forward.1} parent=5 // pred_check
        %p272 = pneg %p271
      $region46: #{attention_model_forward.1} parent=5 // pred_check_branch
        %274 = sbr.rel (%p272) target = $region48
      $region47: #{attention_model_forward.1} parent=5 // pred_region
        // Predicated region
        $region49: #{attention_model_forward.1} parent=47 // pred_check
          %p275 = pneg %p37
        $region50: #{attention_model_forward.1} parent=47 // pred_check_branch
          %277 = sbr.rel (%p275) target = $region52
        $region51: #{attention_model_forward.1} parent=47 // pred_region
          %s278 = sand.u32 %s27, 1
          %s279 = sand.u32 %s27, 1
          %s280 = smul.addr %s279, 64
          %s281 = scalar_lea.vmem [#allocation8], %s280
          %s282 = smul.addr %s17, 8
          %s283 = scalar_lea.vmem %s0, %s282
          // Predicated region
          $region53: #{attention_model_forward.1} parent=51 // pred_check
            _
          $region54: #{attention_model_forward.1} parent=51 // pred_check_branch
            %285 = sbr.rel (0) target = $region56
          $region55: #{attention_model_forward.1} parent=51 // pred_region
            // Predicated region
            $region57: #{attention_model_forward.1} parent=55 // pred_check
              _
            $region58: #{attention_model_forward.1} parent=55 // pred_check_branch
              %287 = sbr.rel (0) target = $region60
            $region59: #{attention_model_forward.1} parent=55 // pred_region
              // Predicated region
              $region72: #{attention_model_forward.1} parent=59 // pred_check
                _
              $region73: #{attention_model_forward.1} parent=59 // pred_check_branch
                %317 = sbr.rel (0) target = $region75
              $region74: #{attention_model_forward.1} parent=59 // pred_region
                loop: start=0, step=1, limit=1
                $region76: #{attention_model_forward.1} parent=74 // loop_pre_header
                  _
                $region77: #{attention_model_forward.1} parent=74 // loop_header
                  %s319 = sphi 0, %s323
                  %p320 = scmp.ge.s32.totalorder %s319, 1
                  %s324 = sphi %s283, %s283
                  %s325 = sphi %s281, %s281
                $region78: #{attention_model_forward.1} parent=74 // loop_header_branch
                  %322 = sbr.rel (%p320) target = $region82
                $region79: #{attention_model_forward.1} parent=74 // loop_body
                  %v326 = vld [vmem:[%s324] sm:$0xff]
                  %327 = vst [vmem:[%s325] sm:$0xff] %v326
                  %v328 = vld [vmem:[%s324 + $0x10] sm:$0xff]
                  %329 = vst [vmem:[%s325 + $0x8] sm:$0xff] %v328
                  %v330 = vld [vmem:[%s324 + $0x20] sm:$0xff]
                  %331 = vst [vmem:[%s325 + $0x10] sm:$0xff] %v330
                  %v332 = vld [vmem:[%s324 + $0x30] sm:$0xff]
                  %333 = vst [vmem:[%s325 + $0x18] sm:$0xff] %v332
                  %v334 = vld [vmem:[%s324 + $0x40] sm:$0xff]
                  %335 = vst [vmem:[%s325 + $0x20] sm:$0xff] %v334
                  %v336 = vld [vmem:[%s324 + $0x50] sm:$0xff]
                  %337 = vst [vmem:[%s325 + $0x28] sm:$0xff] %v336
                  %v338 = vld [vmem:[%s324 + $0x60] sm:$0xff]
                  %339 = vst [vmem:[%s325 + $0x30] sm:$0xff] %v338
                  %v340 = vld [vmem:[%s324 + $0x70] sm:$0xff]
                  %341 = vst [vmem:[%s325 + $0x38] sm:$0xff] %v340
                $region80: #{attention_model_forward.1} parent=74 // loop_footer
                  %s323 = sadd.s32 1, %s319
                $region81: #{attention_model_forward.1} parent=74 // loop_footer_branch
                  %318 = sbr.rel target = $region77
                $region82: #{attention_model_forward.1} parent=74 // loop_exit
                  _
              $region75: #{attention_model_forward.1} parent=59 // pred_fallthru
                _
              // Predicated region
              $region83: #{attention_model_forward.1} parent=59 // pred_check
                _
              $region84: #{attention_model_forward.1} parent=59 // pred_check_branch
                %343 = sbr.rel target = $region86
              $region85: #{attention_model_forward.1} parent=59 // pred_region
                _
              $region86: #{attention_model_forward.1} parent=59 // pred_fallthru
                _
            $region60: #{attention_model_forward.1} parent=55 // pred_fallthru
              _
            // Predicated region
            $region61: #{attention_model_forward.1} parent=55 // pred_check
              _
            $region62: #{attention_model_forward.1} parent=55 // pred_check_branch
              %289 = sbr.rel target = $region64
            $region63: #{attention_model_forward.1} parent=55 // pred_region
              %s291 = ssub.s32 256, 1
              loop: start=0, step=1, limit=1
              $region65: #{attention_model_forward.1} parent=63 // loop_pre_header
                _
              $region66: #{attention_model_forward.1} parent=63 // loop_header
                %s293 = sphi 0, %s297
                %p294 = scmp.ge.s32.totalorder %s293, 1
                %s298 = sphi %s283, %s283
                %s299 = sphi %s281, %s281
              $region67: #{attention_model_forward.1} parent=63 // loop_header_branch
                %296 = sbr.rel (%p294) target = $region71
              $region68: #{attention_model_forward.1} parent=63 // loop_body
                %v300 = vld [vmem:[%s298] sm:%s291]
                %301 = vst [vmem:[%s299] sm:%s291] %v300
                %v302 = vld [vmem:[%s298 + $0x10] sm:%s291]
                %303 = vst [vmem:[%s299 + $0x8] sm:%s291] %v302
                %v304 = vld [vmem:[%s298 + $0x20] sm:%s291]
                %305 = vst [vmem:[%s299 + $0x10] sm:%s291] %v304
                %v306 = vld [vmem:[%s298 + $0x30] sm:%s291]
                %307 = vst [vmem:[%s299 + $0x18] sm:%s291] %v306
                %v308 = vld [vmem:[%s298 + $0x40] sm:%s291]
                %309 = vst [vmem:[%s299 + $0x20] sm:%s291] %v308
                %v310 = vld [vmem:[%s298 + $0x50] sm:%s291]
                %311 = vst [vmem:[%s299 + $0x28] sm:%s291] %v310
                %v312 = vld [vmem:[%s298 + $0x60] sm:%s291]
                %313 = vst [vmem:[%s299 + $0x30] sm:%s291] %v312
                %v314 = vld [vmem:[%s298 + $0x70] sm:%s291]
                %315 = vst [vmem:[%s299 + $0x38] sm:%s291] %v314
              $region69: #{attention_model_forward.1} parent=63 // loop_footer
                %s297 = sadd.s32 1, %s293
              $region70: #{attention_model_forward.1} parent=63 // loop_footer_branch
                %292 = sbr.rel target = $region66
              $region71: #{attention_model_forward.1} parent=63 // loop_exit
                _
            $region64: #{attention_model_forward.1} parent=55 // pred_fallthru
              _
          $region56: #{attention_model_forward.1} parent=51 // pred_fallthru
            _
          %344 = vnop
        $region52: #{attention_model_forward.1} parent=47 // pred_fallthru
          _
      $region48: #{attention_model_forward.1} parent=5 // pred_fallthru
        _
      %p345 = scmp.le.s32.totalorder 1, %s17
      %p346 = scmp.lt.s32.totalorder %s17, 3
      %p347 = pnand %p345, %p346
      %p348 = pneg %p347
      // Predicated region
      $region87: #{attention_model_forward.1} parent=5 // pred_check
        _
      $region88: #{attention_model_forward.1} parent=5 // pred_check_branch
        %350 = sbr.rel (%p347) target = $region90
      $region89: #{attention_model_forward.1} parent=5 // pred_region
        %s351 = ssub.s32 %s17, 1
        %s352 = sand.u32 %s30, 1
        %s353 = sand.u32 %s30, 1
        %s354 = smul.addr %s353, 64
        %s355 = scalar_lea.vmem [#allocation8], %s354
        // Predicated region
        $region91: #{attention_model_forward.1} parent=89 // pred_check
          %p356 = pneg %p43
        $region92: #{attention_model_forward.1} parent=89 // pred_check_branch
          %358 = sbr.rel (%p356) target = $region94
        $region93: #{attention_model_forward.1} parent=89 // pred_region
          _
        $region94: #{attention_model_forward.1} parent=89 // pred_fallthru
          _
        %s359 = sand.u32 %s30, 1
        %s360 = sand.u32 %s30, 1
        %s361 = smul.addr %s360, 64
        %s362 = scalar_lea.vmem [#allocation8], %s361
        %p363 = pneg %p43
        %p364 = pneg %p40
        %p365 = pneg %p64
        %p366 = pneg %p61
        %p367 = pneg %p85
        %p368 = pneg %p82
        %p369 = pneg %p106
        %p370 = pneg %p103
        %p371 = pneg %p127
        %p372 = pneg %p124
        %p373 = pneg %p148
        %p374 = pneg %p145
        %p375 = pneg %p169
        %p376 = pneg %p166
        %p377 = pneg %p190
        %p378 = pneg %p187
        %p379 = pneg %p211
        %p380 = pneg %p208
        %p381 = pneg %p232
        %p382 = pneg %p229
        %p384 = scmp.eq.s32.totalorder %s22, 0
        // Predicated region
        $region95: #{attention_model_forward.1} parent=89 // pred_check
          %p385 = pneg %p384
        $region96: #{attention_model_forward.1} parent=89 // pred_check_branch
          %387 = sbr.rel (%p385) target = $region98
        $region97: #{attention_model_forward.1} parent=89 // pred_region
          %388 = vst [vmem:[#allocation3] sm:$0xff] 0.0
          %vm389 = vcmask 7168
          %390 = vst.msk [vmem:[#allocation4] sm:$0xff] %vm389, -inf
          %391 = vst.msk [vmem:[#allocation5] sm:$0xff] %vm389, 0.0
          %392 = vst [vmem:[#allocation6] sm:$0xff] 0.0
        $region98: #{attention_model_forward.1} parent=89 // pred_fallthru
          _
        %v393 = vld [vmem:[%s2] sm:$0x7]
        %v394 = vld [vmem:[%s1] sm:$0xff]
        %v395 = vld [vmem:[%s1 + $0x8] sm:$0xf]
        %v396 = vld [vmem:[%s355] sm:$0xff]
        %v397 = vld [vmem:[%s355 + $0x8] sm:$0xff]
        %v398 = vld [vmem:[%s355 + $0x10] sm:$0xff]
        %v399 = vld [vmem:[%s355 + $0x18] sm:$0xff]
        %v400 = vld [vmem:[%s355 + $0x20] sm:$0xff]
        %v401 = vld [vmem:[%s355 + $0x28] sm:$0xff]
        %v402 = vld [vmem:[%s355 + $0x30] sm:$0xff]
        %v403 = vld [vmem:[%s355 + $0x38] sm:$0xff]
        %v404 = vpack.c.bf16 %v396, %v396
        %v405 = vpack.c.bf16 %v397, %v397
        %v406 = vpack.c.bf16 %v398, %v398
        %v407 = vpack.c.bf16 %v399, %v399
        %v408 = vpack.c.bf16 %v400, %v400
        %v409 = vpack.c.bf16 %v401, %v401
        %v410 = vpack.c.bf16 %v402, %v402
        %v411 = vpack.c.bf16 %v403, %v403
        %v413 = vperm.slane %v393, 0
        %v414 = vperm.slane %v393, 1
        %v415 = vperm.slane %v393, 2
        %v427 = vunpack.c.l.b16 %v404
        %v428 = vunpack.c.l.b16 %v405
        %v429 = vunpack.c.l.b16 %v406
        %v430 = vunpack.c.l.b16 %v407
        %v431 = vunpack.c.l.b16 %v408
        %v432 = vunpack.c.l.b16 %v409
        %v433 = vunpack.c.l.b16 %v410
        %v434 = vunpack.c.l.b16 %v411
        %v435 = vpack.c.b16 %v427, %v427
        %v436 = vpack.c.b16 %v428, %v428
        %v437 = vpack.c.b16 %v429, %v429
        %v438 = vpack.c.b16 %v430, %v430
        %v439 = vpack.c.b16 %v431, %v431
        %v440 = vpack.c.b16 %v432, %v432
        %v441 = vpack.c.b16 %v433, %v433
        %v442 = vpack.c.b16 %v434, %v434
        %v443 = vunpack.c.l.b16 %v435
        %v444 = vunpack.c.l.b16 %v436
        %v445 = vunpack.c.l.b16 %v437
        %v446 = vunpack.c.l.b16 %v438
        %v447 = vunpack.c.l.b16 %v439
        %v448 = vunpack.c.l.b16 %v440
        %v449 = vunpack.c.l.b16 %v441
        %v450 = vunpack.c.l.b16 %v442
        %v451 = vrot.slane %v444, 7
        %vm452 = vcmask 1041409
        %v453 = vsel %vm452, %v451, %v443
        %v454 = vrot.slane %v445, 6
        %vm455 = vcmask 1042434
        %v456 = vsel %vm455, %v454, %v453
        %v457 = vrot.slane %v446, 5
        %vm458 = vcmask 1043459
        %v459 = vsel %vm458, %v457, %v456
        %v460 = vrot.slane %v447, 4
        %vm461 = vcmask 1044484
        %v462 = vsel %vm461, %v460, %v459
        %v463 = vrot.slane %v448, 3
        %vm464 = vcmask 1045509
        %v465 = vsel %vm464, %v463, %v462
        %v466 = vrot.slane %v449, 2
        %vm467 = vcmask 1046534
        %v468 = vsel %vm467, %v466, %v465
        %v469 = vrot.slane %v450, 1
        %vm470 = vcmask 1047559
        %v471 = vsel %vm470, %v469, %v468
        %v472 = vpack.c.b16 %v471, %v471
        %v475 = vunpack.c.l.b16 %v394
        %v476 = vunpack.c.h.b16 %v394
        %v477 = vunpack.c.l.b16 %v395
        %v478 = vpack.c.b16 %v475, %v475
        %v479 = vpack.c.b16 %v476, %v476
        %v480 = vpack.c.b16 %v477, %v477
        %vm481 = vcmask 64512
        %v483 = vsel %vm481, %v472, 0
        %vm485 = vcmask 1043456
        %v487 = vsel %vm485, %v478, 0
        %v490 = vsel %vm485, %v479, 0
        %v493 = vsel %vm485, %v480, 0
        %495 = vmatpush.bf16.msra.mxu0 0
        %496 = vmatpush.bf16.msra.mxu0 0
        %497 = vmatpush.bf16.msra.mxu0 0
        %498 = vmatpush.bf16.msra.mxu0 0
        %499 = vmatpush.bf16.msra.mxu0 0
        %500 = vmatpush.bf16.msra.mxu0 0
        %501 = vmatpush.bf16.msra.mxu0 0
        %502 = vmatpush.bf16.msra.mxu0 %v487
        %503 = vmatmul.bf16.gmra.mxu0 %v483
        %v504 = vpop.f32.mrf.mxu0
        %v505 = vadd.f32 %v413, %v504
        %v506 = vpop.f32.mrf.mxu0
        %507 = vdwg.mxu0
        %508 = vmatpush.bf16.msra.mxu0 0
        %509 = vmatpush.bf16.msra.mxu0 0
        %510 = vmatpush.bf16.msra.mxu0 0
        %511 = vmatpush.bf16.msra.mxu0 0
        %512 = vmatpush.bf16.msra.mxu0 0
        %513 = vmatpush.bf16.msra.mxu0 0
        %514 = vmatpush.bf16.msra.mxu0 0
        %515 = vmatpush.bf16.msra.mxu0 %v490
        %516 = vmatmul.bf16.gmra.mxu0 %v483
        %v517 = vpop.f32.mrf.mxu0
        %v518 = vadd.f32 %v414, %v517
        %v519 = vpop.f32.mrf.mxu0
        %520 = vdwg.mxu0
        %521 = vmatpush.bf16.msra.mxu0 0
        %522 = vmatpush.bf16.msra.mxu0 0
        %523 = vmatpush.bf16.msra.mxu0 0
        %524 = vmatpush.bf16.msra.mxu0 0
        %525 = vmatpush.bf16.msra.mxu0 0
        %526 = vmatpush.bf16.msra.mxu0 0
        %527 = vmatpush.bf16.msra.mxu0 0
        %528 = vmatpush.bf16.msra.mxu0 %v493
        %529 = vmatmul.bf16.gmra.mxu0 %v483
        %v530 = vpop.f32.mrf.mxu0
        %v531 = vadd.f32 %v415, %v530
        %v532 = vpop.f32.mrf.mxu0
        %533 = vdwg.mxu0
        %534 = vst [vmem:[#allocation2] sm:$0xff] %v505
        %535 = vst [vmem:[#allocation2 + $0x8] sm:$0xff] %v518
        %536 = vst [vmem:[#allocation2 + $0x10] sm:$0xff] %v531
        %v537 = vrot.slane %v443, 1
        %v538 = vsel %vm452, %v444, %v537
        %v539 = vrot.slane %v445, 7
        %v540 = vsel %vm455, %v539, %v538
        %v541 = vrot.slane %v446, 6
        %v542 = vsel %vm458, %v541, %v540
        %v543 = vrot.slane %v447, 5
        %v544 = vsel %vm461, %v543, %v542
        %v545 = vrot.slane %v448, 4
        %v546 = vsel %vm464, %v545, %v544
        %v547 = vrot.slane %v449, 3
        %v548 = vsel %vm467, %v547, %v546
        %v549 = vrot.slane %v450, 2
        %v550 = vsel %vm470, %v549, %v548
        %v551 = vpack.c.b16 %v550, %v550
        %v553 = vsel %vm481, %v551, 0
        %555 = vmatpush.bf16.msra.mxu0 0
        %556 = vmatpush.bf16.msra.mxu0 0
        %557 = vmatpush.bf16.msra.mxu0 0
        %558 = vmatpush.bf16.msra.mxu0 0
        %559 = vmatpush.bf16.msra.mxu0 0
        %560 = vmatpush.bf16.msra.mxu0 0
        %561 = vmatpush.bf16.msra.mxu0 0
        %562 = vmatpush.bf16.msra.mxu0 %v487
        %563 = vmatmul.bf16.gmra.mxu0 %v553
        %v564 = vpop.f32.mrf.mxu0
        %v565 = vadd.f32 %v413, %v564
        %v566 = vpop.f32.mrf.mxu0
        %567 = vdwg.mxu0
        %568 = vmatpush.bf16.msra.mxu0 0
        %569 = vmatpush.bf16.msra.mxu0 0
        %570 = vmatpush.bf16.msra.mxu0 0
        %571 = vmatpush.bf16.msra.mxu0 0
        %572 = vmatpush.bf16.msra.mxu0 0
        %573 = vmatpush.bf16.msra.mxu0 0
        %574 = vmatpush.bf16.msra.mxu0 0
        %575 = vmatpush.bf16.msra.mxu0 %v490
        %576 = vmatmul.bf16.gmra.mxu0 %v553
        %v577 = vpop.f32.mrf.mxu0
        %v578 = vadd.f32 %v414, %v577
        %v579 = vpop.f32.mrf.mxu0
        %580 = vdwg.mxu0
        %581 = vmatpush.bf16.msra.mxu0 0
        %582 = vmatpush.bf16.msra.mxu0 0
        %583 = vmatpush.bf16.msra.mxu0 0
        %584 = vmatpush.bf16.msra.mxu0 0
        %585 = vmatpush.bf16.msra.mxu0 0
        %586 = vmatpush.bf16.msra.mxu0 0
        %587 = vmatpush.bf16.msra.mxu0 0
        %588 = vmatpush.bf16.msra.mxu0 %v493
        %589 = vmatmul.bf16.gmra.mxu0 %v553
        %v590 = vpop.f32.mrf.mxu0
        %v591 = vadd.f32 %v415, %v590
        %v592 = vpop.f32.mrf.mxu0
        %593 = vdwg.mxu0
        %s594 = scalar_lea.vmem [#allocation2], 24
        %595 = vst [vmem:[%s594] sm:$0xff] %v565
        %596 = vst [vmem:[%s594 + $0x8] sm:$0xff] %v578
        %597 = vst [vmem:[%s594 + $0x10] sm:$0xff] %v591
        %v598 = vrot.slane %v443, 2
        %v599 = vrot.slane %v444, 1
        %v600 = vsel %vm452, %v599, %v598
        %v601 = vsel %vm455, %v445, %v600
        %v602 = vrot.slane %v446, 7
        %v603 = vsel %vm458, %v602, %v601
        %v604 = vrot.slane %v447, 6
        %v605 = vsel %vm461, %v604, %v603
        %v606 = vrot.slane %v448, 5
        %v607 = vsel %vm464, %v606, %v605
        %v608 = vrot.slane %v449, 4
        %v609 = vsel %vm467, %v608, %v607
        %v610 = vrot.slane %v450, 3
        %v611 = vsel %vm470, %v610, %v609
        %v612 = vpack.c.b16 %v611, %v611
        %v614 = vsel %vm481, %v612, 0
        %616 = vmatpush.bf16.msra.mxu0 0
        %617 = vmatpush.bf16.msra.mxu0 0
        %618 = vmatpush.bf16.msra.mxu0 0
        %619 = vmatpush.bf16.msra.mxu0 0
        %620 = vmatpush.bf16.msra.mxu0 0
        %621 = vmatpush.bf16.msra.mxu0 0
        %622 = vmatpush.bf16.msra.mxu0 0
        %623 = vmatpush.bf16.msra.mxu0 %v487
        %624 = vmatmul.bf16.gmra.mxu0 %v614
        %v625 = vpop.f32.mrf.mxu0
        %v626 = vadd.f32 %v413, %v625
        %v627 = vpop.f32.mrf.mxu0
        %628 = vdwg.mxu0
        %629 = vmatpush.bf16.msra.mxu0 0
        %630 = vmatpush.bf16.msra.mxu0 0
        %631 = vmatpush.bf16.msra.mxu0 0
        %632 = vmatpush.bf16.msra.mxu0 0
        %633 = vmatpush.bf16.msra.mxu0 0
        %634 = vmatpush.bf16.msra.mxu0 0
        %635 = vmatpush.bf16.msra.mxu0 0
        %636 = vmatpush.bf16.msra.mxu0 %v490
        %637 = vmatmul.bf16.gmra.mxu0 %v614
        %v638 = vpop.f32.mrf.mxu0
        %v639 = vadd.f32 %v414, %v638
        %v640 = vpop.f32.mrf.mxu0
        %641 = vdwg.mxu0
        %642 = vmatpush.bf16.msra.mxu0 0
        %643 = vmatpush.bf16.msra.mxu0 0
        %644 = vmatpush.bf16.msra.mxu0 0
        %645 = vmatpush.bf16.msra.mxu0 0
        %646 = vmatpush.bf16.msra.mxu0 0
        %647 = vmatpush.bf16.msra.mxu0 0
        %648 = vmatpush.bf16.msra.mxu0 0
        %649 = vmatpush.bf16.msra.mxu0 %v493
        %650 = vmatmul.bf16.gmra.mxu0 %v614
        %v651 = vpop.f32.mrf.mxu0
        %v652 = vadd.f32 %v415, %v651
        %v653 = vpop.f32.mrf.mxu0
        %654 = vdwg.mxu0
        %s655 = scalar_lea.vmem [#allocation2], 48
        %656 = vst [vmem:[%s655] sm:$0xff] %v626
        %657 = vst [vmem:[%s655 + $0x8] sm:$0xff] %v639
        %658 = vst [vmem:[%s655 + $0x10] sm:$0xff] %v652
        %v659 = vrot.slane %v443, 3
        %v660 = vrot.slane %v444, 2
        %v661 = vsel %vm452, %v660, %v659
        %v662 = vrot.slane %v445, 1
        %v663 = vsel %vm455, %v662, %v661
        %v664 = vsel %vm458, %v446, %v663
        %v665 = vrot.slane %v447, 7
        %v666 = vsel %vm461, %v665, %v664
        %v667 = vrot.slane %v448, 6
        %v668 = vsel %vm464, %v667, %v666
        %v669 = vrot.slane %v449, 5
        %v670 = vsel %vm467, %v669, %v668
        %v671 = vrot.slane %v450, 4
        %v672 = vsel %vm470, %v671, %v670
        %v673 = vpack.c.b16 %v672, %v672
        %v675 = vsel %vm481, %v673, 0
        %677 = vmatpush.bf16.msra.mxu0 0
        %678 = vmatpush.bf16.msra.mxu0 0
        %679 = vmatpush.bf16.msra.mxu0 0
        %680 = vmatpush.bf16.msra.mxu0 0
        %681 = vmatpush.bf16.msra.mxu0 0
        %682 = vmatpush.bf16.msra.mxu0 0
        %683 = vmatpush.bf16.msra.mxu0 0
        %684 = vmatpush.bf16.msra.mxu0 %v487
        %685 = vmatmul.bf16.gmra.mxu0 %v675
        %v686 = vpop.f32.mrf.mxu0
        %v687 = vadd.f32 %v413, %v686
        %v688 = vpop.f32.mrf.mxu0
        %689 = vdwg.mxu0
        %690 = vmatpush.bf16.msra.mxu0 0
        %691 = vmatpush.bf16.msra.mxu0 0
        %692 = vmatpush.bf16.msra.mxu0 0
        %693 = vmatpush.bf16.msra.mxu0 0
        %694 = vmatpush.bf16.msra.mxu0 0
        %695 = vmatpush.bf16.msra.mxu0 0
        %696 = vmatpush.bf16.msra.mxu0 0
        %697 = vmatpush.bf16.msra.mxu0 %v490
        %698 = vmatmul.bf16.gmra.mxu0 %v675
        %v699 = vpop.f32.mrf.mxu0
        %v700 = vadd.f32 %v414, %v699
        %v701 = vpop.f32.mrf.mxu0
        %702 = vdwg.mxu0
        %703 = vmatpush.bf16.msra.mxu0 0
        %704 = vmatpush.bf16.msra.mxu0 0
        %705 = vmatpush.bf16.msra.mxu0 0
        %706 = vmatpush.bf16.msra.mxu0 0
        %707 = vmatpush.bf16.msra.mxu0 0
        %708 = vmatpush.bf16.msra.mxu0 0
        %709 = vmatpush.bf16.msra.mxu0 0
        %710 = vmatpush.bf16.msra.mxu0 %v493
        %711 = vmatmul.bf16.gmra.mxu0 %v675
        %v712 = vpop.f32.mrf.mxu0
        %v713 = vadd.f32 %v415, %v712
        %v714 = vpop.f32.mrf.mxu0
        %715 = vdwg.mxu0
        %s716 = scalar_lea.vmem [#allocation2], 72
        %717 = vst [vmem:[%s716] sm:$0xff] %v687
        %718 = vst [vmem:[%s716 + $0x8] sm:$0xff] %v700
        %719 = vst [vmem:[%s716 + $0x10] sm:$0xff] %v713
        %v720 = vrot.slane %v443, 4
        %v721 = vrot.slane %v444, 3
        %v722 = vsel %vm452, %v721, %v720
        %v723 = vrot.slane %v445, 2
        %v724 = vsel %vm455, %v723, %v722
        %v725 = vrot.slane %v446, 1
        %v726 = vsel %vm458, %v725, %v724
        %v727 = vsel %vm461, %v447, %v726
        %v728 = vrot.slane %v448, 7
        %v729 = vsel %vm464, %v728, %v727
        %v730 = vrot.slane %v449, 6
        %v731 = vsel %vm467, %v730, %v729
        %v732 = vrot.slane %v450, 5
        %v733 = vsel %vm470, %v732, %v731
        %v734 = vpack.c.b16 %v733, %v733
        %v736 = vsel %vm481, %v734, 0
        %738 = vmatpush.bf16.msra.mxu0 0
        %739 = vmatpush.bf16.msra.mxu0 0
        %740 = vmatpush.bf16.msra.mxu0 0
        %741 = vmatpush.bf16.msra.mxu0 0
        %742 = vmatpush.bf16.msra.mxu0 0
        %743 = vmatpush.bf16.msra.mxu0 0
        %744 = vmatpush.bf16.msra.mxu0 0
        %745 = vmatpush.bf16.msra.mxu0 %v487
        %746 = vmatmul.bf16.gmra.mxu0 %v736
        %v747 = vpop.f32.mrf.mxu0
        %v748 = vadd.f32 %v413, %v747
        %v749 = vpop.f32.mrf.mxu0
        %750 = vdwg.mxu0
        %751 = vmatpush.bf16.msra.mxu0 0
        %752 = vmatpush.bf16.msra.mxu0 0
        %753 = vmatpush.bf16.msra.mxu0 0
        %754 = vmatpush.bf16.msra.mxu0 0
        %755 = vmatpush.bf16.msra.mxu0 0
        %756 = vmatpush.bf16.msra.mxu0 0
        %757 = vmatpush.bf16.msra.mxu0 0
        %758 = vmatpush.bf16.msra.mxu0 %v490
        %759 = vmatmul.bf16.gmra.mxu0 %v736
        %v760 = vpop.f32.mrf.mxu0
        %v761 = vadd.f32 %v414, %v760
        %v762 = vpop.f32.mrf.mxu0
        %763 = vdwg.mxu0
        %764 = vmatpush.bf16.msra.mxu0 0
        %765 = vmatpush.bf16.msra.mxu0 0
        %766 = vmatpush.bf16.msra.mxu0 0
        %767 = vmatpush.bf16.msra.mxu0 0
        %768 = vmatpush.bf16.msra.mxu0 0
        %769 = vmatpush.bf16.msra.mxu0 0
        %770 = vmatpush.bf16.msra.mxu0 0
        %771 = vmatpush.bf16.msra.mxu0 %v493
        %772 = vmatmul.bf16.gmra.mxu0 %v736
        %v773 = vpop.f32.mrf.mxu0
        %v774 = vadd.f32 %v415, %v773
        %v775 = vpop.f32.mrf.mxu0
        %776 = vdwg.mxu0
        %s777 = scalar_lea.vmem [#allocation2], 96
        %778 = vst [vmem:[%s777] sm:$0xff] %v748
        %779 = vst [vmem:[%s777 + $0x8] sm:$0xff] %v761
        %780 = vst [vmem:[%s777 + $0x10] sm:$0xff] %v774
        %v781 = vrot.slane %v443, 5
        %v782 = vrot.slane %v444, 4
        %v783 = vsel %vm452, %v782, %v781
        %v784 = vrot.slane %v445, 3
        %v785 = vsel %vm455, %v784, %v783
        %v786 = vrot.slane %v446, 2
        %v787 = vsel %vm458, %v786, %v785
        %v788 = vrot.slane %v447, 1
        %v789 = vsel %vm461, %v788, %v787
        %v790 = vsel %vm464, %v448, %v789
        %v791 = vrot.slane %v449, 7
        %v792 = vsel %vm467, %v791, %v790
        %v793 = vrot.slane %v450, 6
        %v794 = vsel %vm470, %v793, %v792
        %v795 = vpack.c.b16 %v794, %v794
        %v797 = vsel %vm481, %v795, 0
        %799 = vmatpush.bf16.msra.mxu0 0
        %800 = vmatpush.bf16.msra.mxu0 0
        %801 = vmatpush.bf16.msra.mxu0 0
        %802 = vmatpush.bf16.msra.mxu0 0
        %803 = vmatpush.bf16.msra.mxu0 0
        %804 = vmatpush.bf16.msra.mxu0 0
        %805 = vmatpush.bf16.msra.mxu0 0
        %806 = vmatpush.bf16.msra.mxu0 %v487
        %807 = vmatmul.bf16.gmra.mxu0 %v797
        %v808 = vpop.f32.mrf.mxu0
        %v809 = vadd.f32 %v413, %v808
        %v810 = vpop.f32.mrf.mxu0
        %811 = vdwg.mxu0
        %812 = vmatpush.bf16.msra.mxu0 0
        %813 = vmatpush.bf16.msra.mxu0 0
        %814 = vmatpush.bf16.msra.mxu0 0
        %815 = vmatpush.bf16.msra.mxu0 0
        %816 = vmatpush.bf16.msra.mxu0 0
        %817 = vmatpush.bf16.msra.mxu0 0
        %818 = vmatpush.bf16.msra.mxu0 0
        %819 = vmatpush.bf16.msra.mxu0 %v490
        %820 = vmatmul.bf16.gmra.mxu0 %v797
        %v821 = vpop.f32.mrf.mxu0
        %v822 = vadd.f32 %v414, %v821
        %v823 = vpop.f32.mrf.mxu0
        %824 = vdwg.mxu0
        %825 = vmatpush.bf16.msra.mxu0 0
        %826 = vmatpush.bf16.msra.mxu0 0
        %827 = vmatpush.bf16.msra.mxu0 0
        %828 = vmatpush.bf16.msra.mxu0 0
        %829 = vmatpush.bf16.msra.mxu0 0
        %830 = vmatpush.bf16.msra.mxu0 0
        %831 = vmatpush.bf16.msra.mxu0 0
        %832 = vmatpush.bf16.msra.mxu0 %v493
        %833 = vmatmul.bf16.gmra.mxu0 %v797
        %v834 = vpop.f32.mrf.mxu0
        %v835 = vadd.f32 %v415, %v834
        %v836 = vpop.f32.mrf.mxu0
        %837 = vdwg.mxu0
        %s838 = scalar_lea.vmem [#allocation2], 120
        %839 = vst [vmem:[%s838] sm:$0xff] %v809
        %840 = vst [vmem:[%s838 + $0x8] sm:$0xff] %v822
        %841 = vst [vmem:[%s838 + $0x10] sm:$0xff] %v835
        %v842 = vrot.slane %v443, 6
        %v843 = vrot.slane %v444, 5
        %v844 = vsel %vm452, %v843, %v842
        %v845 = vrot.slane %v445, 4
        %v846 = vsel %vm455, %v845, %v844
        %v847 = vrot.slane %v446, 3
        %v848 = vsel %vm458, %v847, %v846
        %v849 = vrot.slane %v447, 2
        %v850 = vsel %vm461, %v849, %v848
        %v851 = vrot.slane %v448, 1
        %v852 = vsel %vm464, %v851, %v850
        %v853 = vsel %vm467, %v449, %v852
        %v854 = vrot.slane %v450, 7
        %v855 = vsel %vm470, %v854, %v853
        %v856 = vpack.c.b16 %v855, %v855
        %v858 = vsel %vm481, %v856, 0
        %860 = vmatpush.bf16.msra.mxu0 0
        %861 = vmatpush.bf16.msra.mxu0 0
        %862 = vmatpush.bf16.msra.mxu0 0
        %863 = vmatpush.bf16.msra.mxu0 0
        %864 = vmatpush.bf16.msra.mxu0 0
        %865 = vmatpush.bf16.msra.mxu0 0
        %866 = vmatpush.bf16.msra.mxu0 0
        %867 = vmatpush.bf16.msra.mxu0 %v487
        %868 = vmatmul.bf16.gmra.mxu0 %v858
        %v869 = vpop.f32.mrf.mxu0
        %v870 = vadd.f32 %v413, %v869
        %v871 = vpop.f32.mrf.mxu0
        %872 = vdwg.mxu0
        %873 = vmatpush.bf16.msra.mxu0 0
        %874 = vmatpush.bf16.msra.mxu0 0
        %875 = vmatpush.bf16.msra.mxu0 0
        %876 = vmatpush.bf16.msra.mxu0 0
        %877 = vmatpush.bf16.msra.mxu0 0
        %878 = vmatpush.bf16.msra.mxu0 0
        %879 = vmatpush.bf16.msra.mxu0 0
        %880 = vmatpush.bf16.msra.mxu0 %v490
        %881 = vmatmul.bf16.gmra.mxu0 %v858
        %v882 = vpop.f32.mrf.mxu0
        %v883 = vadd.f32 %v414, %v882
        %v884 = vpop.f32.mrf.mxu0
        %885 = vdwg.mxu0
        %886 = vmatpush.bf16.msra.mxu0 0
        %887 = vmatpush.bf16.msra.mxu0 0
        %888 = vmatpush.bf16.msra.mxu0 0
        %889 = vmatpush.bf16.msra.mxu0 0
        %890 = vmatpush.bf16.msra.mxu0 0
        %891 = vmatpush.bf16.msra.mxu0 0
        %892 = vmatpush.bf16.msra.mxu0 0
        %893 = vmatpush.bf16.msra.mxu0 %v493
        %894 = vmatmul.bf16.gmra.mxu0 %v858
        %v895 = vpop.f32.mrf.mxu0
        %v896 = vadd.f32 %v415, %v895
        %v897 = vpop.f32.mrf.mxu0
        %898 = vdwg.mxu0
        %s899 = scalar_lea.vmem [#allocation2], 144
        %900 = vst [vmem:[%s899] sm:$0xff] %v870
        %901 = vst [vmem:[%s899 + $0x8] sm:$0xff] %v883
        %902 = vst [vmem:[%s899 + $0x10] sm:$0xff] %v896
        %v903 = vrot.slane %v443, 7
        %v904 = vrot.slane %v444, 6
        %v905 = vsel %vm452, %v904, %v903
        %v906 = vrot.slane %v445, 5
        %v907 = vsel %vm455, %v906, %v905
        %v908 = vrot.slane %v446, 4
        %v909 = vsel %vm458, %v908, %v907
        %v910 = vrot.slane %v447, 3
        %v911 = vsel %vm461, %v910, %v909
        %v912 = vrot.slane %v448, 2
        %v913 = vsel %vm464, %v912, %v911
        %v914 = vrot.slane %v449, 1
        %v915 = vsel %vm467, %v914, %v913
        %v916 = vsel %vm470, %v450, %v915
        %v917 = vpack.c.b16 %v916, %v916
        %v919 = vsel %vm481, %v917, 0
        %921 = vmatpush.bf16.msra.mxu0 0
        %922 = vmatpush.bf16.msra.mxu0 0
        %923 = vmatpush.bf16.msra.mxu0 0
        %924 = vmatpush.bf16.msra.mxu0 0
        %925 = vmatpush.bf16.msra.mxu0 0
        %926 = vmatpush.bf16.msra.mxu0 0
        %927 = vmatpush.bf16.msra.mxu0 0
        %928 = vmatpush.bf16.msra.mxu0 %v487
        %929 = vmatmul.bf16.gmra.mxu0 %v919
        %v930 = vpop.f32.mrf.mxu0
        %v931 = vadd.f32 %v413, %v930
        %v932 = vpop.f32.mrf.mxu0
        %933 = vdwg.mxu0
        %934 = vmatpush.bf16.msra.mxu0 0
        %935 = vmatpush.bf16.msra.mxu0 0
        %936 = vmatpush.bf16.msra.mxu0 0
        %937 = vmatpush.bf16.msra.mxu0 0
        %938 = vmatpush.bf16.msra.mxu0 0
        %939 = vmatpush.bf16.msra.mxu0 0
        %940 = vmatpush.bf16.msra.mxu0 0
        %941 = vmatpush.bf16.msra.mxu0 %v490
        %942 = vmatmul.bf16.gmra.mxu0 %v919
        %v943 = vpop.f32.mrf.mxu0
        %v944 = vadd.f32 %v414, %v943
        %v945 = vpop.f32.mrf.mxu0
        %946 = vdwg.mxu0
        %947 = vmatpush.bf16.msra.mxu0 0
        %948 = vmatpush.bf16.msra.mxu0 0
        %949 = vmatpush.bf16.msra.mxu0 0
        %950 = vmatpush.bf16.msra.mxu0 0
        %951 = vmatpush.bf16.msra.mxu0 0
        %952 = vmatpush.bf16.msra.mxu0 0
        %953 = vmatpush.bf16.msra.mxu0 0
        %954 = vmatpush.bf16.msra.mxu0 %v493
        %955 = vmatmul.bf16.gmra.mxu0 %v919
        %v956 = vpop.f32.mrf.mxu0
        %v957 = vadd.f32 %v415, %v956
        %v958 = vpop.f32.mrf.mxu0
        %959 = vdwg.mxu0
        %s960 = scalar_lea.vmem [#allocation2], 168
        %961 = vst [vmem:[%s960] sm:$0xff] %v931
        %962 = vst [vmem:[%s960 + $0x8] sm:$0xff] %v944
        %963 = vst [vmem:[%s960 + $0x10] sm:$0xff] %v957
        %v964 = vld [vmem:[%s4] sm:$0x7]
        %v965 = vld [vmem:[%s5] sm:$0x1]
        %v966 = vld [vmem:[#allocation7] sm:$0x1]
        %v967 = vld [vmem:[#allocation3] sm:$0xff]
        %v968 = vld [vmem:[#allocation4] sm:$0xff]
        %v969 = vld [vmem:[#allocation5] sm:$0xff]
        %v970 = vld [vmem:[#allocation6] sm:$0xff]
        %v971 = vld [vmem:[#allocation2] sm:$0xff]
        %v972 = vld [vmem:[#allocation2 + $0x8] sm:$0xff]
        %v973 = vld [vmem:[#allocation2 + $0x10] sm:$0xff]
        %v974 = vpack.c.bf16 %v967, %v967
        %v975 = vld [vmem:[%s3] sm:$0xff]
        %v976 = vld [vmem:[%s3 + $0x8] sm:$0xf]
        %v977 = vld [vmem:[%s3 + $0xc] sm:$0xff]
        %v978 = vld [vmem:[%s3 + $0x14] sm:$0xf]
        %v979 = vld [vmem:[%s3 + $0x18] sm:$0xff]
        %v980 = vld [vmem:[%s3 + $0x20] sm:$0xf]
        %v981 = vld [vmem:[%s3 + $0x24] sm:$0xff]
        %v982 = vld [vmem:[%s3 + $0x2c] sm:$0xf]
        %v983 = vld [vmem:[%s3 + $0x30] sm:$0xff]
        %v984 = vld [vmem:[%s3 + $0x38] sm:$0xf]
        %v985 = vld [vmem:[%s3 + $0x3c] sm:$0xff]
        %v986 = vld [vmem:[%s3 + $0x44] sm:$0xf]
        %v987 = vld [vmem:[%s3 + $0x48] sm:$0xff]
        %v988 = vld [vmem:[%s3 + $0x50] sm:$0xf]
        %v989 = vld [vmem:[%s3 + $0x54] sm:$0xff]
        %v990 = vld [vmem:[%s3 + $0x5c] sm:$0xf]
        %v991 = vld [vmem:[%s3 + $0x60] sm:$0xff]
        %v992 = vld [vmem:[%s3 + $0x68] sm:$0xf]
        %v993 = vld [vmem:[%s3 + $0x6c] sm:$0xff]
        %v994 = vld [vmem:[%s3 + $0x74] sm:$0xf]
        %v995 = vld [vmem:[%s3 + $0x78] sm:$0xff]
        %v996 = vld [vmem:[%s3 + $0x80] sm:$0xf]
        %v997 = vld [vmem:[%s3 + $0x84] sm:$0xff]
        %v998 = vld [vmem:[%s3 + $0x8c] sm:$0xf]
        %v999 = vld [vmem:[%s3 + $0x90] sm:$0xff]
        %v1000 = vld [vmem:[%s3 + $0x98] sm:$0xf]
        %v1001 = vld [vmem:[%s3 + $0x9c] sm:$0xff]
        %v1002 = vld [vmem:[%s3 + $0xa4] sm:$0xf]
        %v1003 = vld [vmem:[%s3 + $0xa8] sm:$0xff]
        %v1004 = vld [vmem:[%s3 + $0xb0] sm:$0xf]
        %v1005 = vld [vmem:[%s3 + $0xb4] sm:$0xff]
        %v1006 = vld [vmem:[%s3 + $0xbc] sm:$0xf]
        %v1008 = vperm.slane %v964, 0
        %v1009 = vperm.slane %v964, 1
        %v1010 = vperm.slane %v964, 2
        %v1046 = vunpack.c.l.b16 %v975
        %v1047 = vunpack.c.h.b16 %v975
        %v1048 = vunpack.c.l.b16 %v976
        %v1049 = vunpack.c.l.b16 %v977
        %v1050 = vunpack.c.h.b16 %v977
        %v1051 = vunpack.c.l.b16 %v978
        %v1052 = vunpack.c.l.b16 %v979
        %v1053 = vunpack.c.h.b16 %v979
        %v1054 = vunpack.c.l.b16 %v980
        %v1055 = vunpack.c.l.b16 %v981
        %v1056 = vunpack.c.h.b16 %v981
        %v1057 = vunpack.c.l.b16 %v982
        %v1058 = vunpack.c.l.b16 %v983
        %v1059 = vunpack.c.h.b16 %v983
        %v1060 = vunpack.c.l.b16 %v984
        %v1061 = vunpack.c.l.b16 %v985
        %v1062 = vunpack.c.h.b16 %v985
        %v1063 = vunpack.c.l.b16 %v986
        %v1064 = vunpack.c.l.b16 %v987
        %v1065 = vunpack.c.h.b16 %v987
        %v1066 = vunpack.c.l.b16 %v988
        %v1067 = vunpack.c.l.b16 %v989
        %v1068 = vunpack.c.h.b16 %v989
        %v1069 = vunpack.c.l.b16 %v990
        %v1070 = vunpack.c.l.b16 %v991
        %v1071 = vunpack.c.h.b16 %v991
        %v1072 = vunpack.c.l.b16 %v992
        %v1073 = vunpack.c.l.b16 %v993
        %v1074 = vunpack.c.h.b16 %v993
        %v1075 = vunpack.c.l.b16 %v994
        %v1076 = vunpack.c.l.b16 %v995
        %v1077 = vunpack.c.h.b16 %v995
        %v1078 = vunpack.c.l.b16 %v996
        %v1079 = vunpack.c.l.b16 %v997
        %v1080 = vunpack.c.h.b16 %v997
        %v1081 = vunpack.c.l.b16 %v998
        %v1082 = vunpack.c.l.b16 %v999
        %v1083 = vunpack.c.h.b16 %v999
        %v1084 = vunpack.c.l.b16 %v1000
        %v1085 = vunpack.c.l.b16 %v1001
        %v1086 = vunpack.c.h.b16 %v1001
        %v1087 = vunpack.c.l.b16 %v1002
        %v1088 = vunpack.c.l.b16 %v1003
        %v1089 = vunpack.c.h.b16 %v1003
        %v1090 = vunpack.c.l.b16 %v1004
        %v1091 = vunpack.c.l.b16 %v1005
        %v1092 = vunpack.c.h.b16 %v1005
        %v1093 = vunpack.c.l.b16 %v1006
        %v1094 = vpack.c.b16 %v1049, %v1046
        %v1095 = vpack.c.b16 %v1050, %v1047
        %v1096 = vpack.c.b16 %v1051, %v1048
        %v1097 = vpack.c.b16 %v1055, %v1052
        %v1098 = vpack.c.b16 %v1056, %v1053
        %v1099 = vpack.c.b16 %v1057, %v1054
        %v1100 = vpack.c.b16 %v1061, %v1058
        %v1101 = vpack.c.b16 %v1062, %v1059
        %v1102 = vpack.c.b16 %v1063, %v1060
        %v1103 = vpack.c.b16 %v1067, %v1064
        %v1104 = vpack.c.b16 %v1068, %v1065
        %v1105 = vpack.c.b16 %v1069, %v1066
        %v1106 = vpack.c.b16 %v1073, %v1070
        %v1107 = vpack.c.b16 %v1074, %v1071
        %v1108 = vpack.c.b16 %v1075, %v1072
        %v1109 = vpack.c.b16 %v1079, %v1076
        %v1110 = vpack.c.b16 %v1080, %v1077
        %v1111 = vpack.c.b16 %v1081, %v1078
        %v1112 = vpack.c.b16 %v1085, %v1082
        %v1113 = vpack.c.b16 %v1086, %v1083
        %v1114 = vpack.c.b16 %v1087, %v1084
        %v1115 = vpack.c.b16 %v1091, %v1088
        %v1116 = vpack.c.b16 %v1092, %v1089
        %v1117 = vpack.c.b16 %v1093, %v1090
        %1142 = vmatpush.bf16.msra.mxu0 %v1115
        %1143 = vmatpush.bf16.msra.mxu0 %v1112
        %1144 = vmatpush.bf16.msra.mxu0 %v1109
        %1145 = vmatpush.bf16.msra.mxu0 %v1106
        %1146 = vmatpush.bf16.msra.mxu0 %v1103
        %1147 = vmatpush.bf16.msra.mxu0 %v1100
        %1148 = vmatpush.bf16.msra.mxu0 %v1097
        %1149 = vmatpush.bf16.msra.mxu0 %v1094
        %1150 = vmatmul.bf16.gmra.mxu0 %v974
        %v1151 = vpop.f32.mrf.mxu0
        %v1152 = vadd.f32 %v1008, %v1151
        %v1153 = vpop.f32.mrf.mxu0
        %1154 = vdwg.mxu0
        %1155 = vmatpush.bf16.msra.mxu0 %v1116
        %1156 = vmatpush.bf16.msra.mxu0 %v1113
        %1157 = vmatpush.bf16.msra.mxu0 %v1110
        %1158 = vmatpush.bf16.msra.mxu0 %v1107
        %1159 = vmatpush.bf16.msra.mxu0 %v1104
        %1160 = vmatpush.bf16.msra.mxu0 %v1101
        %1161 = vmatpush.bf16.msra.mxu0 %v1098
        %1162 = vmatpush.bf16.msra.mxu0 %v1095
        %1163 = vmatmul.bf16.gmra.mxu0 %v974
        %v1164 = vpop.f32.mrf.mxu0
        %v1165 = vadd.f32 %v1009, %v1164
        %v1166 = vpop.f32.mrf.mxu0
        %1167 = vdwg.mxu0
        %1168 = vmatpush.bf16.msra.mxu0 %v1117
        %1169 = vmatpush.bf16.msra.mxu0 %v1114
        %1170 = vmatpush.bf16.msra.mxu0 %v1111
        %1171 = vmatpush.bf16.msra.mxu0 %v1108
        %1172 = vmatpush.bf16.msra.mxu0 %v1105
        %1173 = vmatpush.bf16.msra.mxu0 %v1102
        %1174 = vmatpush.bf16.msra.mxu0 %v1099
        %1175 = vmatpush.bf16.msra.mxu0 %v1096
        %1176 = vmatmul.bf16.gmra.mxu0 %v974
        %v1177 = vpop.f32.mrf.mxu0
        %v1178 = vadd.f32 %v1010, %v1177
        %v1179 = vpop.f32.mrf.mxu0
        %1180 = vdwg.mxu0
        %v1181 = vadd.f32 %v971, %v1152
        %v1182 = vxor.u32 %v1181, 2147483648
        %v1183 = vmul.f32 %v1182, 1.442695
        %v1184 = vpow.pop %v1183
        %v1185 = vadd.f32 %v1184, 1.0
        %v1186 = vrcp.pop %v1185
        %v1187 = vmul.f32 %v1185, %v1186
        %v1188 = vsub.f32 1.0, %v1187
        %v1189 = vmul.f32 %v1186, %v1188
        %v1190 = vadd.f32 %v1186, %v1189
        %vm1191 = vweird.f32 %v1185
        %vm1192 = vweird.f32 %v1186
        %vm1193 = vmor %vm1191, %vm1192
        %v1194 = vsel %vm1193, %v1186, %v1190
        %v1195 = vand.u32 2147483647, %v1185
        %vm1196 = vcmp.eq.f32.partialorder %v1195, 8.507059e+37
        %v1197 = vand.u32 %v1185, 2147483648
        %v1198 = vor.u32 1.1754944e-38, %v1197
        %v1199 = vsel %vm1196, %v1198, %v1194
        %v1200 = vmul.f32 1.0, %v1199
        %v1201 = vadd.f32 %v972, %v1165
        %v1202 = vxor.u32 %v1201, 2147483648
        %v1203 = vmul.f32 %v1202, 1.442695
        %v1204 = vpow.pop %v1203
        %v1205 = vadd.f32 %v1204, 1.0
        %v1206 = vrcp.pop %v1205
        %v1207 = vmul.f32 %v1205, %v1206
        %v1208 = vsub.f32 1.0, %v1207
        %v1209 = vmul.f32 %v1206, %v1208
        %v1210 = vadd.f32 %v1206, %v1209
        %vm1211 = vweird.f32 %v1205
        %vm1212 = vweird.f32 %v1206
        %vm1213 = vmor %vm1211, %vm1212
        %v1214 = vsel %vm1213, %v1206, %v1210
        %v1215 = vand.u32 2147483647, %v1205
        %vm1216 = vcmp.eq.f32.partialorder %v1215, 8.507059e+37
        %v1217 = vand.u32 %v1205, 2147483648
        %v1218 = vor.u32 1.1754944e-38, %v1217
        %v1219 = vsel %vm1216, %v1218, %v1214
        %v1220 = vmul.f32 1.0, %v1219
        %v1221 = vmul.f32 %v1200, %v1178
        %v1222 = vadd.f32 %v973, %v1221
        %v1223 = vtanh.pop %v1222
        %v1224 = vsub.f32 1.0, %v1220
        %v1225 = vmul.f32 %v1224, %v1223
        %v1226 = vmul.f32 %v1220, %v967
        %v1227 = vadd.f32 %v1225, %v1226
        %v1229 = vperm.slane %v965, 0
        %v1231 = vmul.f32 %v1227, %v1229
        %1232 = vadd.xlane.f32.xlu0 %v1231
        %v1233 = vpop.xlane.xlu0 %1232
        %v1235 = vperm.slane %v966, 0
        %v1237 = vadd.f32 %v1233, %v1235
        %v1238 = vmax.f32 %v968, %v1237
        %v1239 = vsub.f32 %v968, %v1238
        %v1240 = vmul.f32 %v1239, 1.442695
        %v1241 = vpow.pop %v1240
        %v1242 = vsub.f32 %v1237, %v1238
        %v1243 = vmul.f32 %v1242, 1.442695
        %v1244 = vpow.pop %v1243
        %v1245 = vmul.f32 %v1241, %v969
        %v1246 = vadd.f32 %v1245, %v1244
        %1248 = vset.pattern.permute.xlu0 0
        %1249 = vperm.xlu0 %1248, %v1241
        %v1250 = vpop.permute.xlu0 %1249
        %v1252 = vmul.f32 %v1250, %v970
        %1254 = vset.pattern.permute.xlu0 0
        %1255 = vperm.xlu0 %1254, %v1244
        %v1256 = vpop.permute.xlu0 %1255
        %v1258 = vmul.f32 %v1256, %v1227
        %v1259 = vadd.f32 %v1252, %v1258
        %v1260 = vld [vmem:[%s594] sm:$0xff]
        %v1261 = vld [vmem:[%s594 + $0x8] sm:$0xff]
        %v1262 = vld [vmem:[%s594 + $0x10] sm:$0xff]
        %v1263 = vpack.c.bf16 %v1227, %v1227
        %1264 = vmatpush.bf16.msra.mxu0 %v1115
        %1265 = vmatpush.bf16.msra.mxu0 %v1112
        %1266 = vmatpush.bf16.msra.mxu0 %v1109
        %1267 = vmatpush.bf16.msra.mxu0 %v1106
        %1268 = vmatpush.bf16.msra.mxu0 %v1103
        %1269 = vmatpush.bf16.msra.mxu0 %v1100
        %1270 = vmatpush.bf16.msra.mxu0 %v1097
        %1271 = vmatpush.bf16.msra.mxu0 %v1094
        %1272 = vmatmul.bf16.gmra.mxu0 %v1263
        %v1273 = vpop.f32.mrf.mxu0
        %v1274 = vadd.f32 %v1008, %v1273
        %v1275 = vpop.f32.mrf.mxu0
        %1276 = vdwg.mxu0
        %1277 = vmatpush.bf16.msra.mxu0 %v1116
        %1278 = vmatpush.bf16.msra.mxu0 %v1113
        %1279 = vmatpush.bf16.msra.mxu0 %v1110
        %1280 = vmatpush.bf16.msra.mxu0 %v1107
        %1281 = vmatpush.bf16.msra.mxu0 %v1104
        %1282 = vmatpush.bf16.msra.mxu0 %v1101
        %1283 = vmatpush.bf16.msra.mxu0 %v1098
        %1284 = vmatpush.bf16.msra.mxu0 %v1095
        %1285 = vmatmul.bf16.gmra.mxu0 %v1263
        %v1286 = vpop.f32.mrf.mxu0
        %v1287 = vadd.f32 %v1009, %v1286
        %v1288 = vpop.f32.mrf.mxu0
        %1289 = vdwg.mxu0
        %1290 = vmatpush.bf16.msra.mxu0 %v1117
        %1291 = vmatpush.bf16.msra.mxu0 %v1114
        %1292 = vmatpush.bf16.msra.mxu0 %v1111
        %1293 = vmatpush.bf16.msra.mxu0 %v1108
        %1294 = vmatpush.bf16.msra.mxu0 %v1105
        %1295 = vmatpush.bf16.msra.mxu0 %v1102
        %1296 = vmatpush.bf16.msra.mxu0 %v1099
        %1297 = vmatpush.bf16.msra.mxu0 %v1096
        %1298 = vmatmul.bf16.gmra.mxu0 %v1263
        %v1299 = vpop.f32.mrf.mxu0
        %v1300 = vadd.f32 %v1010, %v1299
        %v1301 = vpop.f32.mrf.mxu0
        %1302 = vdwg.mxu0
        %v1303 = vadd.f32 %v1260, %v1274
        %v1304 = vxor.u32 %v1303, 2147483648
        %v1305 = vmul.f32 %v1304, 1.442695
        %v1306 = vpow.pop %v1305
        %v1307 = vadd.f32 %v1306, 1.0
        %v1308 = vrcp.pop %v1307
        %v1309 = vmul.f32 %v1307, %v1308
        %v1310 = vsub.f32 1.0, %v1309
        %v1311 = vmul.f32 %v1308, %v1310
        %v1312 = vadd.f32 %v1308, %v1311
        %vm1313 = vweird.f32 %v1307
        %vm1314 = vweird.f32 %v1308
        %vm1315 = vmor %vm1313, %vm1314
        %v1316 = vsel %vm1315, %v1308, %v1312
        %v1317 = vand.u32 2147483647, %v1307
        %vm1318 = vcmp.eq.f32.partialorder %v1317, 8.507059e+37
        %v1319 = vand.u32 %v1307, 2147483648
        %v1320 = vor.u32 1.1754944e-38, %v1319
        %v1321 = vsel %vm1318, %v1320, %v1316
        %v1322 = vmul.f32 1.0, %v1321
        %v1323 = vadd.f32 %v1261, %v1287
        %v1324 = vxor.u32 %v1323, 2147483648
        %v1325 = vmul.f32 %v1324, 1.442695
        %v1326 = vpow.pop %v1325
        %v1327 = vadd.f32 %v1326, 1.0
        %v1328 = vrcp.pop %v1327
        %v1329 = vmul.f32 %v1327, %v1328
        %v1330 = vsub.f32 1.0, %v1329
        %v1331 = vmul.f32 %v1328, %v1330
        %v1332 = vadd.f32 %v1328, %v1331
        %vm1333 = vweird.f32 %v1327
        %vm1334 = vweird.f32 %v1328
        %vm1335 = vmor %vm1333, %vm1334
        %v1336 = vsel %vm1335, %v1328, %v1332
        %v1337 = vand.u32 2147483647, %v1327
        %vm1338 = vcmp.eq.f32.partialorder %v1337, 8.507059e+37
        %v1339 = vand.u32 %v1327, 2147483648
        %v1340 = vor.u32 1.1754944e-38, %v1339
        %v1341 = vsel %vm1338, %v1340, %v1336
        %v1342 = vmul.f32 1.0, %v1341
        %v1343 = vmul.f32 %v1322, %v1300
        %v1344 = vadd.f32 %v1262, %v1343
        %v1345 = vtanh.pop %v1344
        %v1346 = vsub.f32 1.0, %v1342
        %v1347 = vmul.f32 %v1346, %v1345
        %v1348 = vmul.f32 %v1342, %v1227
        %v1349 = vadd.f32 %v1347, %v1348
        %v1350 = vmul.f32 %v1349, %v1229
        %1351 = vadd.xlane.f32.xlu0 %v1350
        %v1352 = vpop.xlane.xlu0 %1351
        %v1353 = vadd.f32 %v1352, %v1235
        %v1354 = vmax.f32 %v1238, %v1353
        %v1355 = vsub.f32 %v1238, %v1354
        %v1356 = vmul.f32 %v1355, 1.442695
        %v1357 = vpow.pop %v1356
        %v1358 = vsub.f32 %v1353, %v1354
        %v1359 = vmul.f32 %v1358, 1.442695
        %v1360 = vpow.pop %v1359
        %v1361 = vmul.f32 %v1357, %v1246
        %v1362 = vadd.f32 %v1361, %v1360
        %1364 = vset.pattern.permute.xlu0 0
        %1365 = vperm.xlu0 %1364, %v1357
        %v1366 = vpop.permute.xlu0 %1365
        %v1368 = vmul.f32 %v1366, %v1259
        %1370 = vset.pattern.permute.xlu0 0
        %1371 = vperm.xlu0 %1370, %v1360
        %v1372 = vpop.permute.xlu0 %1371
        %v1374 = vmul.f32 %v1372, %v1349
        %v1375 = vadd.f32 %v1368, %v1374
        %v1376 = vld [vmem:[%s655] sm:$0xff]
        %v1377 = vld [vmem:[%s655 + $0x8] sm:$0xff]
        %v1378 = vld [vmem:[%s655 + $0x10] sm:$0xff]
        %v1379 = vpack.c.bf16 %v1349, %v1349
        %1380 = vmatpush.bf16.msra.mxu0 %v1115
        %1381 = vmatpush.bf16.msra.mxu0 %v1112
        %1382 = vmatpush.bf16.msra.mxu0 %v1109
        %1383 = vmatpush.bf16.msra.mxu0 %v1106
        %1384 = vmatpush.bf16.msra.mxu0 %v1103
        %1385 = vmatpush.bf16.msra.mxu0 %v1100
        %1386 = vmatpush.bf16.msra.mxu0 %v1097
        %1387 = vmatpush.bf16.msra.mxu0 %v1094
        %1388 = vmatmul.bf16.gmra.mxu0 %v1379
        %v1389 = vpop.f32.mrf.mxu0
        %v1390 = vadd.f32 %v1008, %v1389
        %v1391 = vpop.f32.mrf.mxu0
        %1392 = vdwg.mxu0
        %1393 = vmatpush.bf16.msra.mxu0 %v1116
        %1394 = vmatpush.bf16.msra.mxu0 %v1113
        %1395 = vmatpush.bf16.msra.mxu0 %v1110
        %1396 = vmatpush.bf16.msra.mxu0 %v1107
        %1397 = vmatpush.bf16.msra.mxu0 %v1104
        %1398 = vmatpush.bf16.msra.mxu0 %v1101
        %1399 = vmatpush.bf16.msra.mxu0 %v1098
        %1400 = vmatpush.bf16.msra.mxu0 %v1095
        %1401 = vmatmul.bf16.gmra.mxu0 %v1379
        %v1402 = vpop.f32.mrf.mxu0
        %v1403 = vadd.f32 %v1009, %v1402
        %v1404 = vpop.f32.mrf.mxu0
        %1405 = vdwg.mxu0
        %1406 = vmatpush.bf16.msra.mxu0 %v1117
        %1407 = vmatpush.bf16.msra.mxu0 %v1114
        %1408 = vmatpush.bf16.msra.mxu0 %v1111
        %1409 = vmatpush.bf16.msra.mxu0 %v1108
        %1410 = vmatpush.bf16.msra.mxu0 %v1105
        %1411 = vmatpush.bf16.msra.mxu0 %v1102
        %1412 = vmatpush.bf16.msra.mxu0 %v1099
        %1413 = vmatpush.bf16.msra.mxu0 %v1096
        %1414 = vmatmul.bf16.gmra.mxu0 %v1379
        %v1415 = vpop.f32.mrf.mxu0
        %v1416 = vadd.f32 %v1010, %v1415
        %v1417 = vpop.f32.mrf.mxu0
        %1418 = vdwg.mxu0
        %v1419 = vadd.f32 %v1376, %v1390
        %v1420 = vxor.u32 %v1419, 2147483648
        %v1421 = vmul.f32 %v1420, 1.442695
        %v1422 = vpow.pop %v1421
        %v1423 = vadd.f32 %v1422, 1.0
        %v1424 = vrcp.pop %v1423
        %v1425 = vmul.f32 %v1423, %v1424
        %v1426 = vsub.f32 1.0, %v1425
        %v1427 = vmul.f32 %v1424, %v1426
        %v1428 = vadd.f32 %v1424, %v1427
        %vm1429 = vweird.f32 %v1423
        %vm1430 = vweird.f32 %v1424
        %vm1431 = vmor %vm1429, %vm1430
        %v1432 = vsel %vm1431, %v1424, %v1428
        %v1433 = vand.u32 2147483647, %v1423
        %vm1434 = vcmp.eq.f32.partialorder %v1433, 8.507059e+37
        %v1435 = vand.u32 %v1423, 2147483648
        %v1436 = vor.u32 1.1754944e-38, %v1435
        %v1437 = vsel %vm1434, %v1436, %v1432
        %v1438 = vmul.f32 1.0, %v1437
        %v1439 = vadd.f32 %v1377, %v1403
        %v1440 = vxor.u32 %v1439, 2147483648
        %v1441 = vmul.f32 %v1440, 1.442695
        %v1442 = vpow.pop %v1441
        %v1443 = vadd.f32 %v1442, 1.0
        %v1444 = vrcp.pop %v1443
        %v1445 = vmul.f32 %v1443, %v1444
        %v1446 = vsub.f32 1.0, %v1445
        %v1447 = vmul.f32 %v1444, %v1446
        %v1448 = vadd.f32 %v1444, %v1447
        %vm1449 = vweird.f32 %v1443
        %vm1450 = vweird.f32 %v1444
        %vm1451 = vmor %vm1449, %vm1450
        %v1452 = vsel %vm1451, %v1444, %v1448
        %v1453 = vand.u32 2147483647, %v1443
        %vm1454 = vcmp.eq.f32.partialorder %v1453, 8.507059e+37
        %v1455 = vand.u32 %v1443, 2147483648
        %v1456 = vor.u32 1.1754944e-38, %v1455
        %v1457 = vsel %vm1454, %v1456, %v1452
        %v1458 = vmul.f32 1.0, %v1457
        %v1459 = vmul.f32 %v1438, %v1416
        %v1460 = vadd.f32 %v1378, %v1459
        %v1461 = vtanh.pop %v1460
        %v1462 = vsub.f32 1.0, %v1458
        %v1463 = vmul.f32 %v1462, %v1461
        %v1464 = vmul.f32 %v1458, %v1349
        %v1465 = vadd.f32 %v1463, %v1464
        %v1466 = vmul.f32 %v1465, %v1229
        %1467 = vadd.xlane.f32.xlu0 %v1466
        %v1468 = vpop.xlane.xlu0 %1467
        %v1469 = vadd.f32 %v1468, %v1235
        %v1470 = vmax.f32 %v1354, %v1469
        %v1471 = vsub.f32 %v1354, %v1470
        %v1472 = vmul.f32 %v1471, 1.442695
        %v1473 = vpow.pop %v1472
        %v1474 = vsub.f32 %v1469, %v1470
        %v1475 = vmul.f32 %v1474, 1.442695
        %v1476 = vpow.pop %v1475
        %v1477 = vmul.f32 %v1473, %v1362
        %v1478 = vadd.f32 %v1477, %v1476
        %1480 = vset.pattern.permute.xlu0 0
        %1481 = vperm.xlu0 %1480, %v1473
        %v1482 = vpop.permute.xlu0 %1481
        %v1484 = vmul.f32 %v1482, %v1375
        %1486 = vset.pattern.permute.xlu0 0
        %1487 = vperm.xlu0 %1486, %v1476
        %v1488 = vpop.permute.xlu0 %1487
        %v1490 = vmul.f32 %v1488, %v1465
        %v1491 = vadd.f32 %v1484, %v1490
        %v1492 = vld [vmem:[%s716] sm:$0xff]
        %v1493 = vld [vmem:[%s716 + $0x8] sm:$0xff]
        %v1494 = vld [vmem:[%s716 + $0x10] sm:$0xff]
        %v1495 = vpack.c.bf16 %v1465, %v1465
        %1496 = vmatpush.bf16.msra.mxu0 %v1115
        %1497 = vmatpush.bf16.msra.mxu0 %v1112
        %1498 = vmatpush.bf16.msra.mxu0 %v1109
        %1499 = vmatpush.bf16.msra.mxu0 %v1106
        %1500 = vmatpush.bf16.msra.mxu0 %v1103
        %1501 = vmatpush.bf16.msra.mxu0 %v1100
        %1502 = vmatpush.bf16.msra.mxu0 %v1097
        %1503 = vmatpush.bf16.msra.mxu0 %v1094
        %1504 = vmatmul.bf16.gmra.mxu0 %v1495
        %v1505 = vpop.f32.mrf.mxu0
        %v1506 = vadd.f32 %v1008, %v1505
        %v1507 = vpop.f32.mrf.mxu0
        %1508 = vdwg.mxu0
        %1509 = vmatpush.bf16.msra.mxu0 %v1116
        %1510 = vmatpush.bf16.msra.mxu0 %v1113
        %1511 = vmatpush.bf16.msra.mxu0 %v1110
        %1512 = vmatpush.bf16.msra.mxu0 %v1107
        %1513 = vmatpush.bf16.msra.mxu0 %v1104
        %1514 = vmatpush.bf16.msra.mxu0 %v1101
        %1515 = vmatpush.bf16.msra.mxu0 %v1098
        %1516 = vmatpush.bf16.msra.mxu0 %v1095
        %1517 = vmatmul.bf16.gmra.mxu0 %v1495
        %v1518 = vpop.f32.mrf.mxu0
        %v1519 = vadd.f32 %v1009, %v1518
        %v1520 = vpop.f32.mrf.mxu0
        %1521 = vdwg.mxu0
        %1522 = vmatpush.bf16.msra.mxu0 %v1117
        %1523 = vmatpush.bf16.msra.mxu0 %v1114
        %1524 = vmatpush.bf16.msra.mxu0 %v1111
        %1525 = vmatpush.bf16.msra.mxu0 %v1108
        %1526 = vmatpush.bf16.msra.mxu0 %v1105
        %1527 = vmatpush.bf16.msra.mxu0 %v1102
        %1528 = vmatpush.bf16.msra.mxu0 %v1099
        %1529 = vmatpush.bf16.msra.mxu0 %v1096
        %1530 = vmatmul.bf16.gmra.mxu0 %v1495
        %v1531 = vpop.f32.mrf.mxu0
        %v1532 = vadd.f32 %v1010, %v1531
        %v1533 = vpop.f32.mrf.mxu0
        %1534 = vdwg.mxu0
        %v1535 = vadd.f32 %v1492, %v1506
        %v1536 = vxor.u32 %v1535, 2147483648
        %v1537 = vmul.f32 %v1536, 1.442695
        %v1538 = vpow.pop %v1537
        %v1539 = vadd.f32 %v1538, 1.0
        %v1540 = vrcp.pop %v1539
        %v1541 = vmul.f32 %v1539, %v1540
        %v1542 = vsub.f32 1.0, %v1541
        %v1543 = vmul.f32 %v1540, %v1542
        %v1544 = vadd.f32 %v1540, %v1543
        %vm1545 = vweird.f32 %v1539
        %vm1546 = vweird.f32 %v1540
        %vm1547 = vmor %vm1545, %vm1546
        %v1548 = vsel %vm1547, %v1540, %v1544
        %v1549 = vand.u32 2147483647, %v1539
        %vm1550 = vcmp.eq.f32.partialorder %v1549, 8.507059e+37
        %v1551 = vand.u32 %v1539, 2147483648
        %v1552 = vor.u32 1.1754944e-38, %v1551
        %v1553 = vsel %vm1550, %v1552, %v1548
        %v1554 = vmul.f32 1.0, %v1553
        %v1555 = vadd.f32 %v1493, %v1519
        %v1556 = vxor.u32 %v1555, 2147483648
        %v1557 = vmul.f32 %v1556, 1.442695
        %v1558 = vpow.pop %v1557
        %v1559 = vadd.f32 %v1558, 1.0
        %v1560 = vrcp.pop %v1559
        %v1561 = vmul.f32 %v1559, %v1560
        %v1562 = vsub.f32 1.0, %v1561
        %v1563 = vmul.f32 %v1560, %v1562
        %v1564 = vadd.f32 %v1560, %v1563
        %vm1565 = vweird.f32 %v1559
        %vm1566 = vweird.f32 %v1560
        %vm1567 = vmor %vm1565, %vm1566
        %v1568 = vsel %vm1567, %v1560, %v1564
        %v1569 = vand.u32 2147483647, %v1559
        %vm1570 = vcmp.eq.f32.partialorder %v1569, 8.507059e+37
        %v1571 = vand.u32 %v1559, 2147483648
        %v1572 = vor.u32 1.1754944e-38, %v1571
        %v1573 = vsel %vm1570, %v1572, %v1568
        %v1574 = vmul.f32 1.0, %v1573
        %v1575 = vmul.f32 %v1554, %v1532
        %v1576 = vadd.f32 %v1494, %v1575
        %v1577 = vtanh.pop %v1576
        %v1578 = vsub.f32 1.0, %v1574
        %v1579 = vmul.f32 %v1578, %v1577
        %v1580 = vmul.f32 %v1574, %v1465
        %v1581 = vadd.f32 %v1579, %v1580
        %v1582 = vmul.f32 %v1581, %v1229
        %1583 = vadd.xlane.f32.xlu0 %v1582
        %v1584 = vpop.xlane.xlu0 %1583
        %v1585 = vadd.f32 %v1584, %v1235
        %v1586 = vmax.f32 %v1470, %v1585
        %v1587 = vsub.f32 %v1470, %v1586
        %v1588 = vmul.f32 %v1587, 1.442695
        %v1589 = vpow.pop %v1588
        %v1590 = vsub.f32 %v1585, %v1586
        %v1591 = vmul.f32 %v1590, 1.442695
        %v1592 = vpow.pop %v1591
        %v1593 = vmul.f32 %v1589, %v1478
        %v1594 = vadd.f32 %v1593, %v1592
        %1596 = vset.pattern.permute.xlu0 0
        %1597 = vperm.xlu0 %1596, %v1589
        %v1598 = vpop.permute.xlu0 %1597
        %v1600 = vmul.f32 %v1598, %v1491
        %1602 = vset.pattern.permute.xlu0 0
        %1603 = vperm.xlu0 %1602, %v1592
        %v1604 = vpop.permute.xlu0 %1603
        %v1606 = vmul.f32 %v1604, %v1581
        %v1607 = vadd.f32 %v1600, %v1606
        %v1608 = vld [vmem:[%s777] sm:$0xff]
        %v1609 = vld [vmem:[%s777 + $0x8] sm:$0xff]
        %v1610 = vld [vmem:[%s777 + $0x10] sm:$0xff]
        %v1611 = vpack.c.bf16 %v1581, %v1581
        %1612 = vmatpush.bf16.msra.mxu0 %v1115
        %1613 = vmatpush.bf16.msra.mxu0 %v1112
        %1614 = vmatpush.bf16.msra.mxu0 %v1109
        %1615 = vmatpush.bf16.msra.mxu0 %v1106
        %1616 = vmatpush.bf16.msra.mxu0 %v1103
        %1617 = vmatpush.bf16.msra.mxu0 %v1100
        %1618 = vmatpush.bf16.msra.mxu0 %v1097
        %1619 = vmatpush.bf16.msra.mxu0 %v1094
        %1620 = vmatmul.bf16.gmra.mxu0 %v1611
        %v1621 = vpop.f32.mrf.mxu0
        %v1622 = vadd.f32 %v1008, %v1621
        %v1623 = vpop.f32.mrf.mxu0
        %1624 = vdwg.mxu0
        %1625 = vmatpush.bf16.msra.mxu0 %v1116
        %1626 = vmatpush.bf16.msra.mxu0 %v1113
        %1627 = vmatpush.bf16.msra.mxu0 %v1110
        %1628 = vmatpush.bf16.msra.mxu0 %v1107
        %1629 = vmatpush.bf16.msra.mxu0 %v1104
        %1630 = vmatpush.bf16.msra.mxu0 %v1101
        %1631 = vmatpush.bf16.msra.mxu0 %v1098
        %1632 = vmatpush.bf16.msra.mxu0 %v1095
        %1633 = vmatmul.bf16.gmra.mxu0 %v1611
        %v1634 = vpop.f32.mrf.mxu0
        %v1635 = vadd.f32 %v1009, %v1634
        %v1636 = vpop.f32.mrf.mxu0
        %1637 = vdwg.mxu0
        %1638 = vmatpush.bf16.msra.mxu0 %v1117
        %1639 = vmatpush.bf16.msra.mxu0 %v1114
        %1640 = vmatpush.bf16.msra.mxu0 %v1111
        %1641 = vmatpush.bf16.msra.mxu0 %v1108
        %1642 = vmatpush.bf16.msra.mxu0 %v1105
        %1643 = vmatpush.bf16.msra.mxu0 %v1102
        %1644 = vmatpush.bf16.msra.mxu0 %v1099
        %1645 = vmatpush.bf16.msra.mxu0 %v1096
        %1646 = vmatmul.bf16.gmra.mxu0 %v1611
        %v1647 = vpop.f32.mrf.mxu0
        %v1648 = vadd.f32 %v1010, %v1647
        %v1649 = vpop.f32.mrf.mxu0
        %1650 = vdwg.mxu0
        %v1651 = vadd.f32 %v1608, %v1622
        %v1652 = vxor.u32 %v1651, 2147483648
        %v1653 = vmul.f32 %v1652, 1.442695
        %v1654 = vpow.pop %v1653
        %v1655 = vadd.f32 %v1654, 1.0
        %v1656 = vrcp.pop %v1655
        %v1657 = vmul.f32 %v1655, %v1656
        %v1658 = vsub.f32 1.0, %v1657
        %v1659 = vmul.f32 %v1656, %v1658
        %v1660 = vadd.f32 %v1656, %v1659
        %vm1661 = vweird.f32 %v1655
        %vm1662 = vweird.f32 %v1656
        %vm1663 = vmor %vm1661, %vm1662
        %v1664 = vsel %vm1663, %v1656, %v1660
        %v1665 = vand.u32 2147483647, %v1655
        %vm1666 = vcmp.eq.f32.partialorder %v1665, 8.507059e+37
        %v1667 = vand.u32 %v1655, 2147483648
        %v1668 = vor.u32 1.1754944e-38, %v1667
        %v1669 = vsel %vm1666, %v1668, %v1664
        %v1670 = vmul.f32 1.0, %v1669
        %v1671 = vadd.f32 %v1609, %v1635
        %v1672 = vxor.u32 %v1671, 2147483648
        %v1673 = vmul.f32 %v1672, 1.442695
        %v1674 = vpow.pop %v1673
        %v1675 = vadd.f32 %v1674, 1.0
        %v1676 = vrcp.pop %v1675
        %v1677 = vmul.f32 %v1675, %v1676
        %v1678 = vsub.f32 1.0, %v1677
        %v1679 = vmul.f32 %v1676, %v1678
        %v1680 = vadd.f32 %v1676, %v1679
        %vm1681 = vweird.f32 %v1675
        %vm1682 = vweird.f32 %v1676
        %vm1683 = vmor %vm1681, %vm1682
        %v1684 = vsel %vm1683, %v1676, %v1680
        %v1685 = vand.u32 2147483647, %v1675
        %vm1686 = vcmp.eq.f32.partialorder %v1685, 8.507059e+37
        %v1687 = vand.u32 %v1675, 2147483648
        %v1688 = vor.u32 1.1754944e-38, %v1687
        %v1689 = vsel %vm1686, %v1688, %v1684
        %v1690 = vmul.f32 1.0, %v1689
        %v1691 = vmul.f32 %v1670, %v1648
        %v1692 = vadd.f32 %v1610, %v1691
        %v1693 = vtanh.pop %v1692
        %v1694 = vsub.f32 1.0, %v1690
        %v1695 = vmul.f32 %v1694, %v1693
        %v1696 = vmul.f32 %v1690, %v1581
        %v1697 = vadd.f32 %v1695, %v1696
        %v1698 = vmul.f32 %v1697, %v1229
        %1699 = vadd.xlane.f32.xlu0 %v1698
        %v1700 = vpop.xlane.xlu0 %1699
        %v1701 = vadd.f32 %v1700, %v1235
        %v1702 = vmax.f32 %v1586, %v1701
        %v1703 = vsub.f32 %v1586, %v1702
        %v1704 = vmul.f32 %v1703, 1.442695
        %v1705 = vpow.pop %v1704
        %v1706 = vsub.f32 %v1701, %v1702
        %v1707 = vmul.f32 %v1706, 1.442695
        %v1708 = vpow.pop %v1707
        %v1709 = vmul.f32 %v1705, %v1594
        %v1710 = vadd.f32 %v1709, %v1708
        %1712 = vset.pattern.permute.xlu0 0
        %1713 = vperm.xlu0 %1712, %v1705
        %v1714 = vpop.permute.xlu0 %1713
        %v1716 = vmul.f32 %v1714, %v1607
        %1718 = vset.pattern.permute.xlu0 0
        %1719 = vperm.xlu0 %1718, %v1708
        %v1720 = vpop.permute.xlu0 %1719
        %v1722 = vmul.f32 %v1720, %v1697
        %v1723 = vadd.f32 %v1716, %v1722
        %v1724 = vld [vmem:[%s838] sm:$0xff]
        %v1725 = vld [vmem:[%s838 + $0x8] sm:$0xff]
        %v1726 = vld [vmem:[%s838 + $0x10] sm:$0xff]
        %v1727 = vpack.c.bf16 %v1697, %v1697
        %1728 = vmatpush.bf16.msra.mxu0 %v1115
        %1729 = vmatpush.bf16.msra.mxu0 %v1112
        %1730 = vmatpush.bf16.msra.mxu0 %v1109
        %1731 = vmatpush.bf16.msra.mxu0 %v1106
        %1732 = vmatpush.bf16.msra.mxu0 %v1103
        %1733 = vmatpush.bf16.msra.mxu0 %v1100
        %1734 = vmatpush.bf16.msra.mxu0 %v1097
        %1735 = vmatpush.bf16.msra.mxu0 %v1094
        %1736 = vmatmul.bf16.gmra.mxu0 %v1727
        %v1737 = vpop.f32.mrf.mxu0
        %v1738 = vadd.f32 %v1008, %v1737
        %v1739 = vpop.f32.mrf.mxu0
        %1740 = vdwg.mxu0
        %1741 = vmatpush.bf16.msra.mxu0 %v1116
        %1742 = vmatpush.bf16.msra.mxu0 %v1113
        %1743 = vmatpush.bf16.msra.mxu0 %v1110
        %1744 = vmatpush.bf16.msra.mxu0 %v1107
        %1745 = vmatpush.bf16.msra.mxu0 %v1104
        %1746 = vmatpush.bf16.msra.mxu0 %v1101
        %1747 = vmatpush.bf16.msra.mxu0 %v1098
        %1748 = vmatpush.bf16.msra.mxu0 %v1095
        %1749 = vmatmul.bf16.gmra.mxu0 %v1727
        %v1750 = vpop.f32.mrf.mxu0
        %v1751 = vadd.f32 %v1009, %v1750
        %v1752 = vpop.f32.mrf.mxu0
        %1753 = vdwg.mxu0
        %1754 = vmatpush.bf16.msra.mxu0 %v1117
        %1755 = vmatpush.bf16.msra.mxu0 %v1114
        %1756 = vmatpush.bf16.msra.mxu0 %v1111
        %1757 = vmatpush.bf16.msra.mxu0 %v1108
        %1758 = vmatpush.bf16.msra.mxu0 %v1105
        %1759 = vmatpush.bf16.msra.mxu0 %v1102
        %1760 = vmatpush.bf16.msra.mxu0 %v1099
        %1761 = vmatpush.bf16.msra.mxu0 %v1096
        %1762 = vmatmul.bf16.gmra.mxu0 %v1727
        %v1763 = vpop.f32.mrf.mxu0
        %v1764 = vadd.f32 %v1010, %v1763
        %v1765 = vpop.f32.mrf.mxu0
        %1766 = vdwg.mxu0
        %v1767 = vadd.f32 %v1724, %v1738
        %v1768 = vxor.u32 %v1767, 2147483648
        %v1769 = vmul.f32 %v1768, 1.442695
        %v1770 = vpow.pop %v1769
        %v1771 = vadd.f32 %v1770, 1.0
        %v1772 = vrcp.pop %v1771
        %v1773 = vmul.f32 %v1771, %v1772
        %v1774 = vsub.f32 1.0, %v1773
        %v1775 = vmul.f32 %v1772, %v1774
        %v1776 = vadd.f32 %v1772, %v1775
        %vm1777 = vweird.f32 %v1771
        %vm1778 = vweird.f32 %v1772
        %vm1779 = vmor %vm1777, %vm1778
        %v1780 = vsel %vm1779, %v1772, %v1776
        %v1781 = vand.u32 2147483647, %v1771
        %vm1782 = vcmp.eq.f32.partialorder %v1781, 8.507059e+37
        %v1783 = vand.u32 %v1771, 2147483648
        %v1784 = vor.u32 1.1754944e-38, %v1783
        %v1785 = vsel %vm1782, %v1784, %v1780
        %v1786 = vmul.f32 1.0, %v1785
        %v1787 = vadd.f32 %v1725, %v1751
        %v1788 = vxor.u32 %v1787, 2147483648
        %v1789 = vmul.f32 %v1788, 1.442695
        %v1790 = vpow.pop %v1789
        %v1791 = vadd.f32 %v1790, 1.0
        %v1792 = vrcp.pop %v1791
        %v1793 = vmul.f32 %v1791, %v1792
        %v1794 = vsub.f32 1.0, %v1793
        %v1795 = vmul.f32 %v1792, %v1794
        %v1796 = vadd.f32 %v1792, %v1795
        %vm1797 = vweird.f32 %v1791
        %vm1798 = vweird.f32 %v1792
        %vm1799 = vmor %vm1797, %vm1798
        %v1800 = vsel %vm1799, %v1792, %v1796
        %v1801 = vand.u32 2147483647, %v1791
        %vm1802 = vcmp.eq.f32.partialorder %v1801, 8.507059e+37
        %v1803 = vand.u32 %v1791, 2147483648
        %v1804 = vor.u32 1.1754944e-38, %v1803
        %v1805 = vsel %vm1802, %v1804, %v1800
        %v1806 = vmul.f32 1.0, %v1805
        %v1807 = vmul.f32 %v1786, %v1764
        %v1808 = vadd.f32 %v1726, %v1807
        %v1809 = vtanh.pop %v1808
        %v1810 = vsub.f32 1.0, %v1806
        %v1811 = vmul.f32 %v1810, %v1809
        %v1812 = vmul.f32 %v1806, %v1697
        %v1813 = vadd.f32 %v1811, %v1812
        %v1814 = vmul.f32 %v1813, %v1229
        %1815 = vadd.xlane.f32.xlu0 %v1814
        %v1816 = vpop.xlane.xlu0 %1815
        %v1817 = vadd.f32 %v1816, %v1235
        %v1818 = vmax.f32 %v1702, %v1817
        %v1819 = vsub.f32 %v1702, %v1818
        %v1820 = vmul.f32 %v1819, 1.442695
        %v1821 = vpow.pop %v1820
        %v1822 = vsub.f32 %v1817, %v1818
        %v1823 = vmul.f32 %v1822, 1.442695
        %v1824 = vpow.pop %v1823
        %v1825 = vmul.f32 %v1821, %v1710
        %v1826 = vadd.f32 %v1825, %v1824
        %1828 = vset.pattern.permute.xlu0 0
        %1829 = vperm.xlu0 %1828, %v1821
        %v1830 = vpop.permute.xlu0 %1829
        %v1832 = vmul.f32 %v1830, %v1723
        %1834 = vset.pattern.permute.xlu0 0
        %1835 = vperm.xlu0 %1834, %v1824
        %v1836 = vpop.permute.xlu0 %1835
        %v1838 = vmul.f32 %v1836, %v1813
        %v1839 = vadd.f32 %v1832, %v1838
        %v1840 = vld [vmem:[%s899] sm:$0xff]
        %v1841 = vld [vmem:[%s899 + $0x8] sm:$0xff]
        %v1842 = vld [vmem:[%s899 + $0x10] sm:$0xff]
        %v1843 = vpack.c.bf16 %v1813, %v1813
        %1844 = vmatpush.bf16.msra.mxu0 %v1115
        %1845 = vmatpush.bf16.msra.mxu0 %v1112
        %1846 = vmatpush.bf16.msra.mxu0 %v1109
        %1847 = vmatpush.bf16.msra.mxu0 %v1106
        %1848 = vmatpush.bf16.msra.mxu0 %v1103
        %1849 = vmatpush.bf16.msra.mxu0 %v1100
        %1850 = vmatpush.bf16.msra.mxu0 %v1097
        %1851 = vmatpush.bf16.msra.mxu0 %v1094
        %1852 = vmatmul.bf16.gmra.mxu0 %v1843
        %v1853 = vpop.f32.mrf.mxu0
        %v1854 = vadd.f32 %v1008, %v1853
        %v1855 = vpop.f32.mrf.mxu0
        %1856 = vdwg.mxu0
        %1857 = vmatpush.bf16.msra.mxu0 %v1116
        %1858 = vmatpush.bf16.msra.mxu0 %v1113
        %1859 = vmatpush.bf16.msra.mxu0 %v1110
        %1860 = vmatpush.bf16.msra.mxu0 %v1107
        %1861 = vmatpush.bf16.msra.mxu0 %v1104
        %1862 = vmatpush.bf16.msra.mxu0 %v1101
        %1863 = vmatpush.bf16.msra.mxu0 %v1098
        %1864 = vmatpush.bf16.msra.mxu0 %v1095
        %1865 = vmatmul.bf16.gmra.mxu0 %v1843
        %v1866 = vpop.f32.mrf.mxu0
        %v1867 = vadd.f32 %v1009, %v1866
        %v1868 = vpop.f32.mrf.mxu0
        %1869 = vdwg.mxu0
        %1870 = vmatpush.bf16.msra.mxu0 %v1117
        %1871 = vmatpush.bf16.msra.mxu0 %v1114
        %1872 = vmatpush.bf16.msra.mxu0 %v1111
        %1873 = vmatpush.bf16.msra.mxu0 %v1108
        %1874 = vmatpush.bf16.msra.mxu0 %v1105
        %1875 = vmatpush.bf16.msra.mxu0 %v1102
        %1876 = vmatpush.bf16.msra.mxu0 %v1099
        %1877 = vmatpush.bf16.msra.mxu0 %v1096
        %1878 = vmatmul.bf16.gmra.mxu0 %v1843
        %v1879 = vpop.f32.mrf.mxu0
        %v1880 = vadd.f32 %v1010, %v1879
        %v1881 = vpop.f32.mrf.mxu0
        %1882 = vdwg.mxu0
        %v1883 = vadd.f32 %v1840, %v1854
        %v1884 = vxor.u32 %v1883, 2147483648
        %v1885 = vmul.f32 %v1884, 1.442695
        %v1886 = vpow.pop %v1885
        %v1887 = vadd.f32 %v1886, 1.0
        %v1888 = vrcp.pop %v1887
        %v1889 = vmul.f32 %v1887, %v1888
        %v1890 = vsub.f32 1.0, %v1889
        %v1891 = vmul.f32 %v1888, %v1890
        %v1892 = vadd.f32 %v1888, %v1891
        %vm1893 = vweird.f32 %v1887
        %vm1894 = vweird.f32 %v1888
        %vm1895 = vmor %vm1893, %vm1894
        %v1896 = vsel %vm1895, %v1888, %v1892
        %v1897 = vand.u32 2147483647, %v1887
        %vm1898 = vcmp.eq.f32.partialorder %v1897, 8.507059e+37
        %v1899 = vand.u32 %v1887, 2147483648
        %v1900 = vor.u32 1.1754944e-38, %v1899
        %v1901 = vsel %vm1898, %v1900, %v1896
        %v1902 = vmul.f32 1.0, %v1901
        %v1903 = vadd.f32 %v1841, %v1867
        %v1904 = vxor.u32 %v1903, 2147483648
        %v1905 = vmul.f32 %v1904, 1.442695
        %v1906 = vpow.pop %v1905
        %v1907 = vadd.f32 %v1906, 1.0
        %v1908 = vrcp.pop %v1907
        %v1909 = vmul.f32 %v1907, %v1908
        %v1910 = vsub.f32 1.0, %v1909
        %v1911 = vmul.f32 %v1908, %v1910
        %v1912 = vadd.f32 %v1908, %v1911
        %vm1913 = vweird.f32 %v1907
        %vm1914 = vweird.f32 %v1908
        %vm1915 = vmor %vm1913, %vm1914
        %v1916 = vsel %vm1915, %v1908, %v1912
        %v1917 = vand.u32 2147483647, %v1907
        %vm1918 = vcmp.eq.f32.partialorder %v1917, 8.507059e+37
        %v1919 = vand.u32 %v1907, 2147483648
        %v1920 = vor.u32 1.1754944e-38, %v1919
        %v1921 = vsel %vm1918, %v1920, %v1916
        %v1922 = vmul.f32 1.0, %v1921
        %v1923 = vmul.f32 %v1902, %v1880
        %v1924 = vadd.f32 %v1842, %v1923
        %v1925 = vtanh.pop %v1924
        %v1926 = vsub.f32 1.0, %v1922
        %v1927 = vmul.f32 %v1926, %v1925
        %v1928 = vmul.f32 %v1922, %v1813
        %v1929 = vadd.f32 %v1927, %v1928
        %v1930 = vmul.f32 %v1929, %v1229
        %1931 = vadd.xlane.f32.xlu0 %v1930
        %v1932 = vpop.xlane.xlu0 %1931
        %v1933 = vadd.f32 %v1932, %v1235
        %v1934 = vmax.f32 %v1818, %v1933
        %v1935 = vsub.f32 %v1818, %v1934
        %v1936 = vmul.f32 %v1935, 1.442695
        %v1937 = vpow.pop %v1936
        %v1938 = vsub.f32 %v1933, %v1934
        %v1939 = vmul.f32 %v1938, 1.442695
        %v1940 = vpow.pop %v1939
        %v1941 = vmul.f32 %v1937, %v1826
        %v1942 = vadd.f32 %v1941, %v1940
        %1944 = vset.pattern.permute.xlu0 0
        %1945 = vperm.xlu0 %1944, %v1937
        %v1946 = vpop.permute.xlu0 %1945
        %v1948 = vmul.f32 %v1946, %v1839
        %1950 = vset.pattern.permute.xlu0 0
        %1951 = vperm.xlu0 %1950, %v1940
        %v1952 = vpop.permute.xlu0 %1951
        %v1954 = vmul.f32 %v1952, %v1929
        %v1955 = vadd.f32 %v1948, %v1954
        %v1956 = vld [vmem:[%s960] sm:$0xff]
        %v1957 = vld [vmem:[%s960 + $0x8] sm:$0xff]
        %v1958 = vld [vmem:[%s960 + $0x10] sm:$0xff]
        %v1959 = vpack.c.bf16 %v1929, %v1929
        %1960 = vmatpush.bf16.msra.mxu0 %v1115
        %1961 = vmatpush.bf16.msra.mxu0 %v1112
        %1962 = vmatpush.bf16.msra.mxu0 %v1109
        %1963 = vmatpush.bf16.msra.mxu0 %v1106
        %1964 = vmatpush.bf16.msra.mxu0 %v1103
        %1965 = vmatpush.bf16.msra.mxu0 %v1100
        %1966 = vmatpush.bf16.msra.mxu0 %v1097
        %1967 = vmatpush.bf16.msra.mxu0 %v1094
        %1968 = vmatmul.bf16.gmra.mxu0 %v1959
        %v1969 = vpop.f32.mrf.mxu0
        %v1970 = vadd.f32 %v1008, %v1969
        %v1971 = vpop.f32.mrf.mxu0
        %1972 = vdwg.mxu0
        %1973 = vmatpush.bf16.msra.mxu0 %v1116
        %1974 = vmatpush.bf16.msra.mxu0 %v1113
        %1975 = vmatpush.bf16.msra.mxu0 %v1110
        %1976 = vmatpush.bf16.msra.mxu0 %v1107
        %1977 = vmatpush.bf16.msra.mxu0 %v1104
        %1978 = vmatpush.bf16.msra.mxu0 %v1101
        %1979 = vmatpush.bf16.msra.mxu0 %v1098
        %1980 = vmatpush.bf16.msra.mxu0 %v1095
        %1981 = vmatmul.bf16.gmra.mxu0 %v1959
        %v1982 = vpop.f32.mrf.mxu0
        %v1983 = vadd.f32 %v1009, %v1982
        %v1984 = vpop.f32.mrf.mxu0
        %1985 = vdwg.mxu0
        %1986 = vmatpush.bf16.msra.mxu0 %v1117
        %1987 = vmatpush.bf16.msra.mxu0 %v1114
        %1988 = vmatpush.bf16.msra.mxu0 %v1111
        %1989 = vmatpush.bf16.msra.mxu0 %v1108
        %1990 = vmatpush.bf16.msra.mxu0 %v1105
        %1991 = vmatpush.bf16.msra.mxu0 %v1102
        %1992 = vmatpush.bf16.msra.mxu0 %v1099
        %1993 = vmatpush.bf16.msra.mxu0 %v1096
        %1994 = vmatmul.bf16.gmra.mxu0 %v1959
        %v1995 = vpop.f32.mrf.mxu0
        %v1996 = vadd.f32 %v1010, %v1995
        %v1997 = vpop.f32.mrf.mxu0
        %1998 = vdwg.mxu0
        %v1999 = vadd.f32 %v1956, %v1970
        %v2000 = vxor.u32 %v1999, 2147483648
        %v2001 = vmul.f32 %v2000, 1.442695
        %v2002 = vpow.pop %v2001
        %v2003 = vadd.f32 %v2002, 1.0
        %v2004 = vrcp.pop %v2003
        %v2005 = vmul.f32 %v2003, %v2004
        %v2006 = vsub.f32 1.0, %v2005
        %v2007 = vmul.f32 %v2004, %v2006
        %v2008 = vadd.f32 %v2004, %v2007
        %vm2009 = vweird.f32 %v2003
        %vm2010 = vweird.f32 %v2004
        %vm2011 = vmor %vm2009, %vm2010
        %v2012 = vsel %vm2011, %v2004, %v2008
        %v2013 = vand.u32 2147483647, %v2003
        %vm2014 = vcmp.eq.f32.partialorder %v2013, 8.507059e+37
        %v2015 = vand.u32 %v2003, 2147483648
        %v2016 = vor.u32 1.1754944e-38, %v2015
        %v2017 = vsel %vm2014, %v2016, %v2012
        %v2018 = vmul.f32 1.0, %v2017
        %v2019 = vadd.f32 %v1957, %v1983
        %v2020 = vxor.u32 %v2019, 2147483648
        %v2021 = vmul.f32 %v2020, 1.442695
        %v2022 = vpow.pop %v2021
        %v2023 = vadd.f32 %v2022, 1.0
        %v2024 = vrcp.pop %v2023
        %v2025 = vmul.f32 %v2023, %v2024
        %v2026 = vsub.f32 1.0, %v2025
        %v2027 = vmul.f32 %v2024, %v2026
        %v2028 = vadd.f32 %v2024, %v2027
        %vm2029 = vweird.f32 %v2023
        %vm2030 = vweird.f32 %v2024
        %vm2031 = vmor %vm2029, %vm2030
        %v2032 = vsel %vm2031, %v2024, %v2028
        %v2033 = vand.u32 2147483647, %v2023
        %vm2034 = vcmp.eq.f32.partialorder %v2033, 8.507059e+37
        %v2035 = vand.u32 %v2023, 2147483648
        %v2036 = vor.u32 1.1754944e-38, %v2035
        %v2037 = vsel %vm2034, %v2036, %v2032
        %v2038 = vmul.f32 1.0, %v2037
        %v2039 = vmul.f32 %v2018, %v1996
        %v2040 = vadd.f32 %v1958, %v2039
        %v2041 = vtanh.pop %v2040
        %v2042 = vsub.f32 1.0, %v2038
        %v2043 = vmul.f32 %v2042, %v2041
        %v2044 = vmul.f32 %v2038, %v1929
        %v2045 = vadd.f32 %v2043, %v2044
        %v2046 = vmul.f32 %v2045, %v1229
        %2047 = vadd.xlane.f32.xlu0 %v2046
        %v2048 = vpop.xlane.xlu0 %2047
        %v2049 = vadd.f32 %v2048, %v1235
        %v2050 = vmax.f32 %v1934, %v2049
        %v2051 = vsub.f32 %v1934, %v2050
        %v2052 = vmul.f32 %v2051, 1.442695
        %v2053 = vpow.pop %v2052
        %v2054 = vsub.f32 %v2049, %v2050
        %v2055 = vmul.f32 %v2054, 1.442695
        %v2056 = vpow.pop %v2055
        %v2057 = vmul.f32 %v2053, %v1942
        %v2058 = vadd.f32 %v2057, %v2056
        %2060 = vset.pattern.permute.xlu0 0
        %2061 = vperm.xlu0 %2060, %v2053
        %v2062 = vpop.permute.xlu0 %2061
        %v2064 = vmul.f32 %v2062, %v1955
        %2066 = vset.pattern.permute.xlu0 0
        %2067 = vperm.xlu0 %2066, %v2056
        %v2068 = vpop.permute.xlu0 %2067
        %v2070 = vmul.f32 %v2068, %v2045
        %v2071 = vadd.f32 %v2064, %v2070
        %2072 = vst [vmem:[#allocation3] sm:$0xff] %v2045
        %vm2073 = vcmask 7168
        %2074 = vst.msk [vmem:[#allocation4] sm:$0xff] %vm2073, %v2050
        %2075 = vst.msk [vmem:[#allocation5] sm:$0xff] %vm2073, %v2058
        %2076 = vst [vmem:[#allocation6] sm:$0xff] %v2071
        %p2077 = scmp.eq.s32.totalorder %s22, 1
        // Predicated region
        $region99: #{attention_model_forward.1} parent=89 // pred_check
          %p2078 = pneg %p2077
        $region100: #{attention_model_forward.1} parent=89 // pred_check_branch
          %2080 = sbr.rel (%p2078) target = $region102
        $region101: #{attention_model_forward.1} parent=89 // pred_region
          %2082 = vset.pattern.permute.xlu0 0
          %2083 = vperm.xlu0 %2082, %v2058
          %v2084 = vpop.permute.xlu0 %2083
          %v2086 = vrcp.pop %v2084
          %v2087 = vmul.f32 %v2084, %v2086
          %v2088 = vsub.f32 1.0, %v2087
          %v2089 = vmul.f32 %v2086, %v2088
          %v2090 = vadd.f32 %v2086, %v2089
          %vm2091 = vweird.f32 %v2084
          %vm2092 = vweird.f32 %v2086
          %vm2093 = vmor %vm2091, %vm2092
          %v2094 = vsel %vm2093, %v2086, %v2090
          %v2095 = vand.u32 2147483647, %v2084
          %vm2096 = vcmp.eq.f32.partialorder %v2095, 8.507059e+37
          %v2097 = vand.u32 %v2084, 2147483648
          %v2098 = vor.u32 1.1754944e-38, %v2097
          %v2099 = vsel %vm2096, %v2098, %v2094
          %v2100 = vmul.f32 %v2071, %v2099
          %v2101 = vpack.c.bf16 %v2100, %v2100
          %v2102 = vld [vmem:[%s7] sm:$0xf]
          %v2103 = vld [vmem:[%s7 + $0x4] sm:$0xf]
          %v2104 = vld [vmem:[%s7 + $0x8] sm:$0xf]
          %v2105 = vld [vmem:[%s7 + $0xc] sm:$0xf]
          %v2106 = vld [vmem:[%s7 + $0x10] sm:$0xf]
          %v2107 = vld [vmem:[%s7 + $0x14] sm:$0xf]
          %v2108 = vld [vmem:[%s7 + $0x18] sm:$0xf]
          %v2109 = vld [vmem:[%s7 + $0x1c] sm:$0xf]
          %v2110 = vld [vmem:[%s7 + $0x20] sm:$0xf]
          %v2111 = vld [vmem:[%s7 + $0x24] sm:$0xf]
          %v2112 = vld [vmem:[%s7 + $0x28] sm:$0xf]
          %v2113 = vld [vmem:[%s7 + $0x2c] sm:$0xf]
          %v2114 = vld [vmem:[%s7 + $0x30] sm:$0xf]
          %v2115 = vld [vmem:[%s7 + $0x34] sm:$0xf]
          %v2116 = vld [vmem:[%s7 + $0x38] sm:$0xf]
          %v2117 = vld [vmem:[%s7 + $0x3c] sm:$0xf]
          %v2118 = vld [vmem:[%s8] sm:$0x1]
          %v2120 = vperm.slane %v2118, 0
          %v2138 = vunpack.c.l.b16 %v2102
          %v2139 = vunpack.c.l.b16 %v2103
          %v2140 = vunpack.c.l.b16 %v2104
          %v2141 = vunpack.c.l.b16 %v2105
          %v2142 = vunpack.c.l.b16 %v2106
          %v2143 = vunpack.c.l.b16 %v2107
          %v2144 = vunpack.c.l.b16 %v2108
          %v2145 = vunpack.c.l.b16 %v2109
          %v2146 = vunpack.c.l.b16 %v2110
          %v2147 = vunpack.c.l.b16 %v2111
          %v2148 = vunpack.c.l.b16 %v2112
          %v2149 = vunpack.c.l.b16 %v2113
          %v2150 = vunpack.c.l.b16 %v2114
          %v2151 = vunpack.c.l.b16 %v2115
          %v2152 = vunpack.c.l.b16 %v2116
          %v2153 = vunpack.c.l.b16 %v2117
          %v2154 = vpack.c.b16 %v2139, %v2138
          %v2155 = vpack.c.b16 %v2141, %v2140
          %v2156 = vpack.c.b16 %v2143, %v2142
          %v2157 = vpack.c.b16 %v2145, %v2144
          %v2158 = vpack.c.b16 %v2147, %v2146
          %v2159 = vpack.c.b16 %v2149, %v2148
          %v2160 = vpack.c.b16 %v2151, %v2150
          %v2161 = vpack.c.b16 %v2153, %v2152
          %2170 = vmatpush.bf16.msra.mxu0 %v2161
          %2171 = vmatpush.bf16.msra.mxu0 %v2160
          %2172 = vmatpush.bf16.msra.mxu0 %v2159
          %2173 = vmatpush.bf16.msra.mxu0 %v2158
          %2174 = vmatpush.bf16.msra.mxu0 %v2157
          %2175 = vmatpush.bf16.msra.mxu0 %v2156
          %2176 = vmatpush.bf16.msra.mxu0 %v2155
          %2177 = vmatpush.bf16.msra.mxu0 %v2154
          %2178 = vmatmul.bf16.gmra.mxu0 %v2101
          %v2179 = vpop.f32.mrf.mxu0
          %v2180 = vadd.f32 %v2120, %v2179
          %v2181 = vpop.f32.mrf.mxu0
          %2182 = vdwg.mxu0
          %2183 = vst [vmem:[%s9] sm:$0xff] %v2180
        $region102: #{attention_model_forward.1} parent=89 // pred_fallthru
          _
        // Predicated region
        $region103: #{attention_model_forward.1} parent=89 // pred_check
          %p2184 = pneg %p229
        $region104: #{attention_model_forward.1} parent=89 // pred_check_branch
          %2186 = sbr.rel (%p2184) target = $region106
        $region105: #{attention_model_forward.1} parent=89 // pred_region
          _
        $region106: #{attention_model_forward.1} parent=89 // pred_fallthru
          _
        // Predicated region
        $region107: #{attention_model_forward.1} parent=89 // pred_check
          %p2187 = pneg %p229
        $region108: #{attention_model_forward.1} parent=89 // pred_check_branch
          %2189 = sbr.rel (%p2187) target = $region110
        $region109: #{attention_model_forward.1} parent=89 // pred_region
          _
        $region110: #{attention_model_forward.1} parent=89 // pred_fallthru
          _
      $region90: #{attention_model_forward.1} parent=5 // pred_fallthru
        _
      %p2190 = scmp.le.s32.totalorder 2, %s17
      // Predicated region
      $region111: #{attention_model_forward.1} parent=5 // pred_check
        %p2191 = pneg %p2190
      $region112: #{attention_model_forward.1} parent=5 // pred_check_branch
        %2193 = sbr.rel (%p2191) target = $region114
      $region113: #{attention_model_forward.1} parent=5 // pred_region
        %s2194 = ssub.s32 %s17, 2
      $region114: #{attention_model_forward.1} parent=5 // pred_fallthru
        _
    $region6: #{attention_model_forward.1} parent=1 // loop_footer
      %s21 = sadd.s32 1, %s17
    $region7: #{attention_model_forward.1} parent=1 // loop_footer_branch
      %16 = sbr.rel target = $region3
    $region8: #{attention_model_forward.1} parent=1 // loop_exit
      _

</llo_original>
